<compile_context>
chip_gen: v7x
topology: tpu7x:2x2x1
jax: 0.10.0
libtpu: 0.0.40
codegen_flags: <defaults>
</compile_context>

<pallas_src>
import functools

import numpy as np
import jax
import jax.numpy as jnp
from jax import lax
from jax.experimental import pallas as pl
from jax.experimental.pallas import tpu as pltpu


# ------------------------------- small helpers ------------------------------- #

def _full_spec(shape):
    nd = len(shape)
    return pl.BlockSpec(tuple(shape), lambda i, _nd=nd: (0,) * _nd)


def _ln(x, g, b):
    # nn.LayerNorm over the last axis: biased variance, eps = 1e-5
    mu = jnp.mean(x, axis=-1, keepdims=True)
    var = jnp.mean(jnp.square(x - mu), axis=-1, keepdims=True)
    return (x - mu) * lax.rsqrt(var + 1e-5) * g + b


def _ffdiv(x, d):
    """Exact floor(x / d) for small non-negative integer-valued f32 arrays.
    (Avoids vector integer div/mod, which Mosaic does not reliably lower.)"""
    return jnp.floor((x + 0.5) / float(d))


def _fiota(shape, dim):
    return lax.broadcasted_iota(jnp.int32, shape, dim).astype(jnp.float32)


def _block_diag_bias(m, group):
    """(m, m) additive attention bias: 0 within aligned groups of `group` rows, -1e30 across."""
    r = _fiota((m, m), 0)
    c = _fiota((m, m), 1)
    return jnp.where(_ffdiv(r, group) == _ffdiv(c, group), 0.0, -1e30)


# --------------------------- in-kernel transformer --------------------------- #

def _transformer(x, bias, vec_ref, mat_ref, vp, mp, D, heads, dh, mlp_dim):
    """Pre-norm Transformer (Attention + FeedForward(ReLU)) + final LayerNorm on a 2-D
    (tokens, D) residual stream.  `bias` forbids attention across token groups."""
    inner = heads * dh
    scale = float(dh) ** -0.5

    def vrow(off, w):
        return vec_ref[off:off + 1, 0:w]

    for lv, lm in zip(vp["layers"], mp["layers"]):
        ln1_g, ln1_b = vrow(lv["ln1_g"], D), vrow(lv["ln1_b"], D)
        ln2_g, ln2_b = vrow(lv["ln2_g"], D), vrow(lv["ln2_b"], D)
        out_b = vrow(lv["out_b"], D)
        ff1_b = vrow(lv["ff1_b"], mlp_dim)
        ff2_b = vrow(lv["ff2_b"], D)
        qkv_w = mat_ref[lm["qkv"]:lm["qkv"] + D, 0:3 * inner]        # (D, 3*inner)
        out_w = mat_ref[lm["out"]:lm["out"] + inner, 0:D]            # (inner, D)
        ff1_w = mat_ref[lm["ff1"]:lm["ff1"] + D, 0:mlp_dim]          # (D, mlp)
        ff2_w = mat_ref[lm["ff2"]:lm["ff2"] + mlp_dim, 0:D]          # (mlp, D)

        # ---- pre-norm multi-head self-attention + residual ----
        xn = _ln(x, ln1_g, ln1_b)
        # one fused, lane-dense QKV matmul; q/k/v per head are static lane slices
        qkv = jnp.dot(xn, qkv_w, preferred_element_type=jnp.float32)
        y = x + out_b                                                # residual + out-proj bias
        for h in range(heads):
            q = qkv[:, h * dh:(h + 1) * dh]
            k = qkv[:, inner + h * dh:inner + (h + 1) * dh]
            v = qkv[:, 2 * inner + h * dh:2 * inner + (h + 1) * dh]
            s = lax.dot_general(q, k, (((1,), (1,)), ((), ())),
                                preferred_element_type=jnp.float32) * scale + bias
            s = s - jnp.max(s, axis=-1, keepdims=True)
            p = jnp.exp(s)
            p = p / jnp.sum(p, axis=-1, keepdims=True)               # exact softmax
            oh = jnp.dot(p, v, preferred_element_type=jnp.float32)   # (M, dh)
            # output projection from the same 2-D packed out_w, per 8-row-aligned slice
            # (== concat(heads) @ out_w, written slice-wise for robust lowering)
            y = y + jnp.dot(oh, out_w[h * dh:(h + 1) * dh, :],
                            preferred_element_type=jnp.float32)
        x = y

        # ---- pre-norm feed-forward (Linear -> ReLU -> Linear) + residual ----
        xn = _ln(x, ln2_g, ln2_b)
        h1 = jnp.dot(xn, ff1_w, preferred_element_type=jnp.float32) + ff1_b
        h1 = jnp.maximum(h1, 0.0)
        x = x + jnp.dot(h1, ff2_w, preferred_element_type=jnp.float32) + ff2_b

    return _ln(x, vrow(vp["norm_g"], D), vrow(vp["norm_b"], D))


# ------------------------------ fused model kernel ------------------------------ #

def _tsvit_kernel(patches_ref, vec_ref, mat_ref, o_ref, *, plan):
    B, Tp, P = plan["B"], plan["Tp"], plan["P"]
    D1, d_s = plan["D1"], plan["d_s"]
    heads, dh = plan["heads"], plan["dh"]
    M1, M2 = B * Tp, B * Tp * P
    vp, mp = plan["vec"], plan["mat"]

    # ---- Conv3d (kernel == stride) as one block matmul + bias + temporal pos embedding ----
    w_conv = mat_ref[mp["conv"]:mp["conv"] + plan["K_in"], 0:D1]
    b_conv = vec_ref[vp["b_conv"]:vp["b_conv"] + 1, 0:D1]
    tpos = vec_ref[vp["tpos"]:vp["tpos"] + M1, 0:D1]
    x = jnp.dot(patches_ref[...], w_conv, preferred_element_type=jnp.float32) + b_conv + tpos

    # ---- temporal transformer (all batches at once; block-diagonal attention) ----
    x = _transformer(x, _block_diag_bias(M1, Tp), vec_ref, mat_ref,
                     vp["temporal"], mp["temporal"], D1, heads, dh, plan["mlp_t"])

    # ---- PyTorch inter-stage reshape/permute, done in-VMEM via tiny 0/1 scatter matmuls ----
    #   x.reshape(B, P, Tp, d_s).permute(0, 2, 1, 3).reshape(B*Tp*P, d_s)
    #   xr[m, d] = x[b*Tp + q//P, (q%P)*d_s + d],  q = a1*Tp + a2,
    #   with m = b*(Tp*P) + a2*P + a1   (general; not relying on Tp == P)
    mi = _fiota((M2, M1), 0)
    ii = _fiota((M2, M1), 1)
    b_ = _ffdiv(mi, Tp * P)
    r_ = mi - (Tp * P) * b_
    a2 = _ffdiv(r_, P)
    a1 = r_ - P * a2
    q_ = a1 * Tp + a2
    src_row = b_ * Tp + _ffdiv(q_, P)
    c1_of_m = q_ - P * _ffdiv(q_, P)
    row_match = src_row == ii
    spos = vec_ref[vp["spos"]:vp["spos"] + M2, 0:d_s]
    xr = spos                                                  # spatial pos embedding folded in
    for c1 in range(P):
        sel = jnp.where(jnp.logical_and(row_match, c1_of_m == float(c1)), 1.0, 0.0)
        xr = xr + jnp.dot(sel, x[:, c1 * d_s:(c1 + 1) * d_s],
                          preferred_element_type=jnp.float32)

    # ---- spatial transformer ----
    xs = _transformer(xr, _block_diag_bias(M2, P), vec_ref, mat_ref,
                      vp["spatial"], mp["spatial"], d_s, heads, dh, plan["mlp_s"])

    # ---- MLP head; the (B*Tp, P, d_s) -> (B, mlp_in) flatten is fused into the first matmul ----
    n_blk = Tp * P
    Hh = plan["mlp_hidden"]
    Wc = n_blk * Hh
    w1rt = mat_ref[mp["w1rt"]:mp["w1rt"] + Wc, 0:d_s]          # permuted+transposed mlp1 weight
    u = lax.dot_general(xs, w1rt, (((1,), (1,)), ((), ())),
                        preferred_element_type=jnp.float32)     # (M2, n_blk*Hh)
    mi2 = _fiota((M2, Wc), 0)
    ci2 = _fiota((M2, Wc), 1)
    keep = (mi2 - n_blk * _ffdiv(mi2, n_blk)) == _ffdiv(ci2, Hh)
    u = jnp.where(keep, u, 0.0)                                 # each row keeps its own column block
    gb = _fiota((B, M2), 0)
    gm = _fiota((B, M2), 1)
    gather_b = jnp.where(_ffdiv(gm, n_blk) == gb, 1.0, 0.0)     # per-batch row gather
    v_all = jnp.dot(gather_b, u, preferred_element_type=jnp.float32)   # (B, n_blk*Hh)
    acc = jnp.zeros((B, Hh), jnp.float32)
    for j in range(n_blk):
        acc = acc + v_all[:, j * Hh:(j + 1) * Hh]
    b1 = vec_ref[vp["head_b1"]:vp["head_b1"] + 1, 0:Hh]
    h1 = acc + b1
    h1 = 0.5 * h1 * (1.0 + lax.erf(h1 * 0.7071067811865476))    # exact nn.GELU
    w2 = mat_ref[mp["w2"]:mp["w2"] + Hh, 0:plan["n_out"]]
    b2 = vec_ref[vp["head_b2"]:vp["head_b2"] + 1, 0:plan["n_out"]]
    o_ref[...] = jnp.dot(h1, w2, preferred_element_type=jnp.float32) + b2


# ------------------------------ parameter packing ------------------------------ #

class _Slab:
    """Row-packs 2-D f32 blocks into one (rows, width) slab (one DMA at run time)."""

    def __init__(self, width, align=8):
        self.width = width
        self.align = align
        self.blocks = []
        self.rows = 0

    def add(self, arr):
        a = np.asarray(arr, np.float32)
        if a.ndim == 1:
            a = a[None, :]
        assert a.ndim == 2 and a.shape[1] <= self.width, a.shape
        off = ((self.rows + self.align - 1) // self.align) * self.align
        self.blocks.append((off, a))
        self.rows = off + a.shape[0]
        return off

    def build(self):
        total = max(((self.rows + 7) // 8) * 8, 8)
        out = np.zeros((total, self.width), np.float32)
        for off, a in self.blocks:
            out[off:off + a.shape[0], :a.shape[1]] = a
        return jnp.asarray(out)


def pack_params(params, cfg, batch):
    """One-time packing of all parameters into two VMEM-friendly slabs plus a static plan
    (Python ints only).  Folds: identity-one-hot positional embeddings, the Conv3d ->
    block-diagonal matmul weight, conv-bias expansion, and the MLP-head flatten permutation."""
    P, Tp = cfg["num_patches"], cfg["t_patches"]
    D1 = cfg["dim"]
    d_s = D1 // P
    oc, C = cfg["out_channels"], cfg["num_channels"]
    pd, pw, ph = cfg["patch_size_d"], cfg["patch_size_w"], cfg["patch_size_h"]
    K = C * pd * pw * ph
    heads, dh = cfg["heads"], cfg["dim_head"]
    mlp_t = D1 * cfg["scale_dim"]
    mlp_s = D1 * cfg["scale_dim"]
    Hh = cfg["mlp_hidden"]
    n_out = cfg["num_classes"]

    vec = _Slab(128, align=1)
    mat = _Slab(128, align=8)
    plan = dict(B=batch, Tp=Tp, P=P, D1=D1, d_s=d_s, heads=heads, dh=dh,
                K_in=P * K, mlp_t=mlp_t, mlp_s=mlp_s, mlp_hidden=Hh, n_out=n_out,
                vec={}, mat={})

    # positional embeddings: one_hot(arange) @ W + b == W + b; pre-tiled over the token axis
    tpos = np.asarray(params["temp_w"]) + np.asarray(params["temp_b"])[None, :]
    spos = np.asarray(params["space_pos_w"]) + np.asarray(params["space_pos_b"])[None, :]
    plan["vec"]["tpos"] = vec.add(np.tile(tpos, (batch, 1)))          # (B*Tp, D1)
    plan["vec"]["spos"] = vec.add(np.tile(spos, (batch * Tp, 1)))     # (B*Tp*P, d_s)

    # Conv3d (kernel == stride) as a block-diagonal matmul emitting (oc, Wp, Hp) column order
    wf = np.asarray(params["conv_w"]).reshape(oc, K)
    w_blk = np.zeros((P * K, oc * P), np.float32)
    for p in range(P):
        w_blk[p * K:(p + 1) * K, p::P] = wf.T
    plan["mat"]["conv"] = mat.add(w_blk)
    plan["vec"]["b_conv"] = vec.add(np.repeat(np.asarray(params["conv_b"]), P))

    def pack_transformer(tparams):
        vpl, mpl = dict(layers=[]), dict(layers=[])
        for lyr in tparams["layers"]:
            lv, lm = {}, {}
            lv["ln1_g"] = vec.add(lyr["ln1"][0])
            lv["ln1_b"] = vec.add(lyr["ln1"][1])
            lv["out_b"] = vec.add(lyr["out_b"])
            lv["ln2_g"] = vec.add(lyr["ln2"][0])
            lv["ln2_b"] = vec.add(lyr["ln2"][1])
            lv["ff1_b"] = vec.add(lyr["ff1_b"])
            lv["ff2_b"] = vec.add(lyr["ff2_b"])
            lm["qkv"] = mat.add(lyr["qkv_w"])
            lm["out"] = mat.add(lyr["out_w"])
            lm["ff1"] = mat.add(lyr["ff1_w"])
            lm["ff2"] = mat.add(lyr["ff2_w"])
            vpl["layers"].append(lv)
            mpl["layers"].append(lm)
        vpl["norm_g"] = vec.add(tparams["norm"][0])
        vpl["norm_b"] = vec.add(tparams["norm"][1])
        return vpl, mpl

    plan["vec"]["temporal"], plan["mat"]["temporal"] = pack_transformer(params["temporal"])
    plan["vec"]["spatial"], plan["mat"]["spatial"] = pack_transformer(params["space"])

    # MLP head: permute mlp1_w so the flatten fuses into a single xs @ W matmul in-kernel
    n_blk = Tp * P
    w1 = np.asarray(params["mlp1_w"])                                 # (n_blk*d_s, Hh)
    w1rt = w1.reshape(n_blk, d_s, Hh).transpose(0, 2, 1).reshape(n_blk * Hh, d_s)
    plan["mat"]["w1rt"] = mat.add(w1rt)
    plan["mat"]["w2"] = mat.add(np.asarray(params["mlp2_w"]))
    plan["vec"]["head_b1"] = vec.add(np.asarray(params["mlp1_b"]))
    plan["vec"]["head_b2"] = vec.add(np.asarray(params["mlp2_b"]))

    return vec.build(), mat.build(), plan


# ----------------------------- parameter initialization ----------------------------- #

def _init_linear(key, fan_in, fan_out):
    kw, kb = jax.random.split(key)
    w = jax.random.normal(kw, (fan_in, fan_out), jnp.float32) * 0.02
    b = jax.random.normal(kb, (fan_out,), jnp.float32) * 0.02
    return w, b


def _init_layernorm(dim):
    return jnp.ones((dim,), jnp.float32), jnp.zeros((dim,), jnp.float32)


def _init_transformer(key, dim, depth, heads, dim_head, mlp_dim):
    inner = heads * dim_head
    layers = []
    for _ in range(depth):
        key, k1, k2, k3, k4 = jax.random.split(key, 5)
        qkv_w = jax.random.normal(k1, (dim, inner * 3), jnp.float32) * 0.02
        out_w, out_b = _init_linear(k2, inner, dim)
        ff1_w, ff1_b = _init_linear(k3, dim, mlp_dim)
        ff2_w, ff2_b = _init_linear(k4, mlp_dim, dim)
        layers.append(dict(
            ln1=_init_layernorm(dim), qkv_w=qkv_w, out_w=out_w, out_b=out_b,
            ln2=_init_layernorm(dim), ff1_w=ff1_w, ff1_b=ff1_b,
            ff2_w=ff2_w, ff2_b=ff2_b,
        ))
    return dict(layers=layers, norm=_init_layernorm(dim))


def make_config():
    cfg = dict(
        image_size_w=4, image_size_h=4,
        patch_size_w=2, patch_size_h=2, patch_size_d=2,
        num_classes=2, max_seq_len=8, out_channels=8,
        temporal_depth=1, depth=1, spatial_depth=1,
        heads=4, dropout=0.0, emb_dropout=0.0,
        num_channels=6, scale_dim=2,
    )
    cfg["num_patches"] = (cfg["image_size_w"] * cfg["image_size_h"]
                          // cfg["patch_size_w"] // cfg["patch_size_h"])
    cfg["dim"] = cfg["num_patches"] * cfg["out_channels"]
    cfg["dim_head"] = cfg["dim"] // cfg["heads"]
    cfg["num_frames"] = cfg["max_seq_len"]
    cfg["t_patches"] = cfg["num_frames"] // cfg["patch_size_d"]
    cfg["mlp_in"] = cfg["dim"] * cfg["t_patches"]
    cfg["mlp_hidden"] = int(cfg["mlp_in"] / 10)
    return cfg


def init_params(key, cfg):
    ks = jax.random.split(key, 8)
    oc, C = cfg["out_channels"], cfg["num_channels"]
    pd, pw, ph = cfg["patch_size_d"], cfg["patch_size_w"], cfg["patch_size_h"]
    conv_w = jax.random.normal(ks[0], (oc, C, pd, pw, ph), jnp.float32) * 0.02
    conv_b = jax.random.normal(ks[1], (oc,), jnp.float32) * 0.02
    temp_w, temp_b = _init_linear(ks[2], cfg["t_patches"], cfg["dim"])
    space_pos_w, space_pos_b = _init_linear(ks[3], cfg["num_patches"],
                                            cfg["dim"] // cfg["num_patches"])
    temporal = _init_transformer(ks[4], cfg["dim"], cfg["temporal_depth"],
                                 cfg["heads"], cfg["dim_head"],
                                 cfg["dim"] * cfg["scale_dim"])
    space = _init_transformer(ks[5], cfg["dim"] // cfg["num_patches"],
                              cfg["spatial_depth"], cfg["heads"], cfg["dim_head"],
                              cfg["dim"] * cfg["scale_dim"])
    mlp1_w, mlp1_b = _init_linear(ks[6], cfg["mlp_in"], cfg["mlp_hidden"])
    mlp2_w, mlp2_b = _init_linear(ks[7], cfg["mlp_hidden"], cfg["num_classes"])
    # NOTE: temporal_token exists in the PyTorch module but is never used in forward.
    return dict(conv_w=conv_w, conv_b=conv_b, temp_w=temp_w, temp_b=temp_b,
                space_pos_w=space_pos_w, space_pos_b=space_pos_b,
                temporal=temporal, space=space,
                mlp1_w=mlp1_w, mlp1_b=mlp1_b, mlp2_w=mlp2_w, mlp2_b=mlp2_b)


# ---------------------------------- forward pass ---------------------------------- #

def tsvit_forward(vec_slab, mat_slab, x, *, cfg, plan):
    B, T, C, W, H = x.shape
    pd, pw, ph = cfg["patch_size_d"], cfg["patch_size_w"], cfg["patch_size_h"]
    Tp, Wp, Hp = T // pd, W // pw, H // ph
    P = Wp * Hp
    K = C * pd * pw * ph
    assert B == plan["B"] and Tp == plan["Tp"] and P == plan["P"]

    # non-overlapping Conv3d patch extraction (pure layout glue; the projection matmul is
    # fused into the kernel).  Per-row layout: patch-major, (C, pd, pw, ph)-minor.
    xp = x.transpose(0, 2, 1, 3, 4).reshape(B, C, Tp, pd, Wp, pw, Hp, ph)
    xp = xp.transpose(0, 2, 4, 6, 1, 3, 5, 7)
    patches = xp.reshape(B * Tp, P * K)

    kernel = functools.partial(_tsvit_kernel, plan=plan)
    return pl.pallas_call(
        kernel,
        out_shape=jax.ShapeDtypeStruct((B, plan["n_out"]), jnp.float32),
        grid=(1,),
        in_specs=[_full_spec(patches.shape),
                  _full_spec(vec_slab.shape),
                  _full_spec(mat_slab.shape)],
        out_specs=_full_spec((B, plan["n_out"])),
        compiler_params=pltpu.CompilerParams(dimension_semantics=("arbitrary",)),
    )(patches, vec_slab, mat_slab)


# --------------------------------------- main --------------------------------------- #

if __name__ == "__main__":
    cfg = make_config()
    key = jax.random.PRNGKey(0)
    k_param, k_x = jax.random.split(key)
    params = init_params(k_param, cfg)

    B = 2
    # one-time packing (kept off the per-forward path, per the perf review)
    vec_slab, mat_slab, plan = pack_params(params, cfg, batch=B)

    x = jax.random.normal(
        k_x, (B, cfg["max_seq_len"], cfg["num_channels"],
              cfg["image_size_w"], cfg["image_size_h"]), jnp.float32)

    fwd = jax.jit(functools.partial(tsvit_forward, cfg=cfg, plan=plan))
    out = fwd(vec_slab, mat_slab, x)
    out = jax.block_until_ready(out)
    assert out.shape == (B, cfg["num_classes"]), out.shape
    assert bool(jnp.all(jnp.isfinite(out)))
    print("KERNEL_OK")
</pallas_src>

<mosaic_0001>
module attributes {stable_mosaic.version = 11 : i64} {
  func.func @_tsvit_kernel(%arg0: i32, %arg1: memref<8x192xf32, #tpu.memory_space<vmem>>, %arg2: memref<64x128xf32, #tpu.memory_space<vmem>>, %arg3: memref<672x128xf32, #tpu.memory_space<vmem>>, %arg4: memref<2x2xf32, #tpu.memory_space<vmem>>) attributes {dimension_semantics = [#tpu.dimension_semantics<arbitrary>], iteration_bounds = array<i64: 1>, scalar_prefetch = 0 : i64, scratch_operands = 0 : i64, tpu.core_type = #tpu.core_type<tc>, window_params = [{pipeline_mode = #tpu.pipeline_mode<synchronous>, transform_indices = @transform_0, window_bounds = array<i64: 8, 192>}, {pipeline_mode = #tpu.pipeline_mode<synchronous>, transform_indices = @transform_1, window_bounds = array<i64: 64, 128>}, {pipeline_mode = #tpu.pipeline_mode<synchronous>, transform_indices = @transform_2, window_bounds = array<i64: 672, 128>}, {pipeline_mode = #tpu.pipeline_mode<synchronous>, transform_indices = @transform_3, window_bounds = array<i64: 2, 2>}]} {
    %c0 = arith.constant 0 : index
    %c0_0 = arith.constant 0 : index
    %0 = vector.load %arg3[%c0, %c0_0] : memref<672x128xf32, #tpu.memory_space<vmem>>, vector<192x32xf32>
    %c40 = arith.constant 40 : index
    %c0_1 = arith.constant 0 : index
    %1 = vector.load %arg2[%c40, %c0_1] : memref<64x128xf32, #tpu.memory_space<vmem>>, vector<1x32xf32>
    %c0_2 = arith.constant 0 : index
    %c0_3 = arith.constant 0 : index
    %2 = vector.load %arg2[%c0_2, %c0_3] : memref<64x128xf32, #tpu.memory_space<vmem>>, vector<8x32xf32>
    %c0_4 = arith.constant 0 : index
    %c0_5 = arith.constant 0 : index
    %3 = vector.load %arg1[%c0_4, %c0_5] : memref<8x192xf32, #tpu.memory_space<vmem>>, vector<8x192xf32>
    %cst = arith.constant dense<0.000000e+00> : vector<8x32xf32>
    %4 = tpu.matmul %3, %0, %cst {dimension_numbers = #tpu.dot_dimension_numbers<[1], [0], [0], [1], [0, 0, 1, 1], [], []>} : vector<8x192xf32>, vector<192x32xf32>, vector<8x32xf32> -> vector<8x32xf32>
    %5 = vector.broadcast %1 : vector<1x32xf32> to vector<8x32xf32>
    %6 = arith.addf %4, %5 : vector<8x32xf32>
    %7 = arith.addf %6, %2 : vector<8x32xf32>
    %8 = tpu.iota {dimensions = array<i32: 0>} : vector<8x8xi32>
    %9 = arith.sitofp %8 : vector<8x8xi32> to vector<8x8xf32>
    %10 = tpu.iota {dimensions = array<i32: 1>} : vector<8x8xi32>
    %11 = arith.sitofp %10 : vector<8x8xi32> to vector<8x8xf32>
    %cst_6 = arith.constant 5.000000e-01 : f32
    %12 = vector.broadcast %cst_6 : f32 to vector<8x8xf32>
    %13 = arith.addf %9, %12 : vector<8x8xf32>
    %cst_7 = arith.constant 4.000000e+00 : f32
    %14 = vector.broadcast %cst_7 : f32 to vector<8x8xf32>
    %15 = arith.divf %13, %14 : vector<8x8xf32>
    %16 = math.floor %15 : vector<8x8xf32>
    %cst_8 = arith.constant 5.000000e-01 : f32
    %17 = vector.broadcast %cst_8 : f32 to vector<8x8xf32>
    %18 = arith.addf %11, %17 : vector<8x8xf32>
    %cst_9 = arith.constant 4.000000e+00 : f32
    %19 = vector.broadcast %cst_9 : f32 to vector<8x8xf32>
    %20 = arith.divf %18, %19 : vector<8x8xf32>
    %21 = math.floor %20 : vector<8x8xf32>
    %22 = arith.cmpf oeq, %16, %21 : vector<8x8xf32>
    %cst_10 = arith.constant 0.000000e+00 : f32
    %cst_11 = arith.constant -1.000000e+30 : f32
    %23 = vector.broadcast %cst_10 : f32 to vector<8x8xf32>
    %24 = vector.broadcast %cst_11 : f32 to vector<8x8xf32>
    %25 = arith.select %22, %23, %24 : vector<8x8xi1>, vector<8x8xf32>
    %c41 = arith.constant 41 : index
    %c0_12 = arith.constant 0 : index
    %26 = vector.load %arg2[%c41, %c0_12] : memref<64x128xf32, #tpu.memory_space<vmem>>, vector<1x32xf32>
    %c42 = arith.constant 42 : index
    %c0_13 = arith.constant 0 : index
    %27 = vector.load %arg2[%c42, %c0_13] : memref<64x128xf32, #tpu.memory_space<vmem>>, vector<1x32xf32>
    %c44 = arith.constant 44 : index
    %c0_14 = arith.constant 0 : index
    %28 = vector.load %arg2[%c44, %c0_14] : memref<64x128xf32, #tpu.memory_space<vmem>>, vector<1x32xf32>
    %c45 = arith.constant 45 : index
    %c0_15 = arith.constant 0 : index
    %29 = vector.load %arg2[%c45, %c0_15] : memref<64x128xf32, #tpu.memory_space<vmem>>, vector<1x32xf32>
    %c43 = arith.constant 43 : index
    %c0_16 = arith.constant 0 : index
    %30 = vector.load %arg2[%c43, %c0_16] : memref<64x128xf32, #tpu.memory_space<vmem>>, vector<1x32xf32>
    %c46 = arith.constant 46 : index
    %c0_17 = arith.constant 0 : index
    %31 = vector.load %arg2[%c46, %c0_17] : memref<64x128xf32, #tpu.memory_space<vmem>>, vector<1x64xf32>
    %c47 = arith.constant 47 : index
    %c0_18 = arith.constant 0 : index
    %32 = vector.load %arg2[%c47, %c0_18] : memref<64x128xf32, #tpu.memory_space<vmem>>, vector<1x32xf32>
    %c192 = arith.constant 192 : index
    %c0_19 = arith.constant 0 : index
    %33 = vector.load %arg3[%c192, %c0_19] : memref<672x128xf32, #tpu.memory_space<vmem>>, vector<32x96xf32>
    %c224 = arith.constant 224 : index
    %c0_20 = arith.constant 0 : index
    %34 = vector.load %arg3[%c224, %c0_20] : memref<672x128xf32, #tpu.memory_space<vmem>>, vector<32x32xf32>
    %c256 = arith.constant 256 : index
    %c0_21 = arith.constant 0 : index
    %35 = vector.load %arg3[%c256, %c0_21] : memref<672x128xf32, #tpu.memory_space<vmem>>, vector<32x64xf32>
    %c288 = arith.constant 288 : index
    %c0_22 = arith.constant 0 : index
    %36 = vector.load %arg3[%c288, %c0_22] : memref<672x128xf32, #tpu.memory_space<vmem>>, vector<64x32xf32>
    %cst_23 = arith.constant dense<0.000000e+00> : vector<8xf32>
    %37 = vector.multi_reduction <add>, %7, %cst_23 [1] : vector<8x32xf32> to vector<8xf32>
    %38 = vector.shape_cast %37 : vector<8xf32> to vector<8x1xf32>
    %cst_24 = arith.constant 3.200000e+01 : f32
    %39 = vector.broadcast %cst_24 : f32 to vector<8x1xf32>
    %40 = arith.divf %38, %39 : vector<8x1xf32>
    %41 = vector.broadcast %40 : vector<8x1xf32> to vector<8x32xf32>
    %42 = arith.subf %7, %41 : vector<8x32xf32>
    %43 = arith.mulf %42, %42 : vector<8x32xf32>
    %cst_25 = arith.constant dense<0.000000e+00> : vector<8xf32>
    %44 = vector.multi_reduction <add>, %43, %cst_25 [1] : vector<8x32xf32> to vector<8xf32>
    %45 = vector.shape_cast %44 : vector<8xf32> to vector<8x1xf32>
    %cst_26 = arith.constant 3.200000e+01 : f32
    %46 = vector.broadcast %cst_26 : f32 to vector<8x1xf32>
    %47 = arith.divf %45, %46 : vector<8x1xf32>
    %48 = vector.broadcast %40 : vector<8x1xf32> to vector<8x32xf32>
    %49 = arith.subf %7, %48 : vector<8x32xf32>
    %cst_27 = arith.constant 9.99999974E-6 : f32
    %50 = vector.broadcast %cst_27 : f32 to vector<8x1xf32>
    %51 = arith.addf %47, %50 : vector<8x1xf32>
    %52 = math.rsqrt %51 : vector<8x1xf32>
    %53 = vector.broadcast %52 : vector<8x1xf32> to vector<8x32xf32>
    %54 = arith.mulf %49, %53 : vector<8x32xf32>
    %55 = vector.broadcast %26 : vector<1x32xf32> to vector<8x32xf32>
    %56 = arith.mulf %54, %55 : vector<8x32xf32>
    %57 = vector.broadcast %27 : vector<1x32xf32> to vector<8x32xf32>
    %58 = arith.addf %56, %57 : vector<8x32xf32>
    %cst_28 = arith.constant dense<0.000000e+00> : vector<8x96xf32>
    %59 = tpu.matmul %58, %33, %cst_28 {dimension_numbers = #tpu.dot_dimension_numbers<[1], [0], [0], [1], [0, 0, 1, 1], [], []>} : vector<8x32xf32>, vector<32x96xf32>, vector<8x96xf32> -> vector<8x96xf32>
    %60 = vector.broadcast %30 : vector<1x32xf32> to vector<8x32xf32>
    %61 = arith.addf %7, %60 : vector<8x32xf32>
    %62 = vector.extract_strided_slice %59 {offsets = [0, 0], sizes = [8, 8], strides = [1, 1]} : vector<8x96xf32> to vector<8x8xf32>
    %63 = vector.extract_strided_slice %59 {offsets = [0, 32], sizes = [8, 8], strides = [1, 1]} : vector<8x96xf32> to vector<8x8xf32>
    %64 = vector.extract_strided_slice %59 {offsets = [0, 64], sizes = [8, 8], strides = [1, 1]} : vector<8x96xf32> to vector<8x8xf32>
    %cst_29 = arith.constant dense<0.000000e+00> : vector<8x8xf32>
    %65 = tpu.matmul %62, %63, %cst_29 {dimension_numbers = #tpu.dot_dimension_numbers<[1], [1], [0], [0], [0, 0, 1, 0], [], []>} : vector<8x8xf32>, vector<8x8xf32>, vector<8x8xf32> -> vector<8x8xf32>
    %cst_30 = arith.constant 0.353553385 : f32
    %66 = vector.broadcast %cst_30 : f32 to vector<8x8xf32>
    %67 = arith.mulf %65, %66 : vector<8x8xf32>
    %68 = arith.addf %67, %25 : vector<8x8xf32>
    %cst_31 = arith.constant dense<0xFF800000> : vector<8xf32>
    %69 = vector.multi_reduction <maximumf>, %68, %cst_31 [1] : vector<8x8xf32> to vector<8xf32>
    %70 = vector.shape_cast %69 : vector<8xf32> to vector<8x1xf32>
    %71 = vector.broadcast %70 : vector<8x1xf32> to vector<8x8xf32>
    %72 = arith.subf %68, %71 : vector<8x8xf32>
    %73 = math.exp %72 : vector<8x8xf32>
    %cst_32 = arith.constant dense<0.000000e+00> : vector<8xf32>
    %74 = vector.multi_reduction <add>, %73, %cst_32 [1] : vector<8x8xf32> to vector<8xf32>
    %75 = vector.shape_cast %74 : vector<8xf32> to vector<8x1xf32>
    %76 = vector.broadcast %75 : vector<8x1xf32> to vector<8x8xf32>
    %77 = arith.divf %73, %76 : vector<8x8xf32>
    %cst_33 = arith.constant dense<0.000000e+00> : vector<8x8xf32>
    %78 = tpu.matmul %77, %64, %cst_33 {dimension_numbers = #tpu.dot_dimension_numbers<[1], [0], [0], [1], [0, 0, 1, 1], [], []>} : vector<8x8xf32>, vector<8x8xf32>, vector<8x8xf32> -> vector<8x8xf32>
    %79 = vector.extract_strided_slice %34 {offsets = [0, 0], sizes = [8, 32], strides = [1, 1]} : vector<32x32xf32> to vector<8x32xf32>
    %cst_34 = arith.constant dense<0.000000e+00> : vector<8x32xf32>
    %80 = tpu.matmul %78, %79, %cst_34 {dimension_numbers = #tpu.dot_dimension_numbers<[1], [0], [0], [1], [0, 0, 1, 1], [], []>} : vector<8x8xf32>, vector<8x32xf32>, vector<8x32xf32> -> vector<8x32xf32>
    %81 = arith.addf %61, %80 : vector<8x32xf32>
    %82 = vector.extract_strided_slice %59 {offsets = [0, 8], sizes = [8, 8], strides = [1, 1]} : vector<8x96xf32> to vector<8x8xf32>
    %83 = vector.extract_strided_slice %59 {offsets = [0, 40], sizes = [8, 8], strides = [1, 1]} : vector<8x96xf32> to vector<8x8xf32>
    %84 = vector.extract_strided_slice %59 {offsets = [0, 72], sizes = [8, 8], strides = [1, 1]} : vector<8x96xf32> to vector<8x8xf32>
    %cst_35 = arith.constant dense<0.000000e+00> : vector<8x8xf32>
    %85 = tpu.matmul %82, %83, %cst_35 {dimension_numbers = #tpu.dot_dimension_numbers<[1], [1], [0], [0], [0, 0, 1, 0], [], []>} : vector<8x8xf32>, vector<8x8xf32>, vector<8x8xf32> -> vector<8x8xf32>
    %cst_36 = arith.constant 0.353553385 : f32
    %86 = vector.broadcast %cst_36 : f32 to vector<8x8xf32>
    %87 = arith.mulf %85, %86 : vector<8x8xf32>
    %88 = arith.addf %87, %25 : vector<8x8xf32>
    %cst_37 = arith.constant dense<0xFF800000> : vector<8xf32>
    %89 = vector.multi_reduction <maximumf>, %88, %cst_37 [1] : vector<8x8xf32> to vector<8xf32>
    %90 = vector.shape_cast %89 : vector<8xf32> to vector<8x1xf32>
    %91 = vector.broadcast %90 : vector<8x1xf32> to vector<8x8xf32>
    %92 = arith.subf %88, %91 : vector<8x8xf32>
    %93 = math.exp %92 : vector<8x8xf32>
    %cst_38 = arith.constant dense<0.000000e+00> : vector<8xf32>
    %94 = vector.multi_reduction <add>, %93, %cst_38 [1] : vector<8x8xf32> to vector<8xf32>
    %95 = vector.shape_cast %94 : vector<8xf32> to vector<8x1xf32>
    %96 = vector.broadcast %95 : vector<8x1xf32> to vector<8x8xf32>
    %97 = arith.divf %93, %96 : vector<8x8xf32>
    %cst_39 = arith.constant dense<0.000000e+00> : vector<8x8xf32>
    %98 = tpu.matmul %97, %84, %cst_39 {dimension_numbers = #tpu.dot_dimension_numbers<[1], [0], [0], [1], [0, 0, 1, 1], [], []>} : vector<8x8xf32>, vector<8x8xf32>, vector<8x8xf32> -> vector<8x8xf32>
    %99 = vector.extract_strided_slice %34 {offsets = [8, 0], sizes = [8, 32], strides = [1, 1]} : vector<32x32xf32> to vector<8x32xf32>
    %cst_40 = arith.constant dense<0.000000e+00> : vector<8x32xf32>
    %100 = tpu.matmul %98, %99, %cst_40 {dimension_numbers = #tpu.dot_dimension_numbers<[1], [0], [0], [1], [0, 0, 1, 1], [], []>} : vector<8x8xf32>, vector<8x32xf32>, vector<8x32xf32> -> vector<8x32xf32>
    %101 = arith.addf %81, %100 : vector<8x32xf32>
    %102 = vector.extract_strided_slice %59 {offsets = [0, 16], sizes = [8, 8], strides = [1, 1]} : vector<8x96xf32> to vector<8x8xf32>
    %103 = vector.extract_strided_slice %59 {offsets = [0, 48], sizes = [8, 8], strides = [1, 1]} : vector<8x96xf32> to vector<8x8xf32>
    %104 = vector.extract_strided_slice %59 {offsets = [0, 80], sizes = [8, 8], strides = [1, 1]} : vector<8x96xf32> to vector<8x8xf32>
    %cst_41 = arith.constant dense<0.000000e+00> : vector<8x8xf32>
    %105 = tpu.matmul %102, %103, %cst_41 {dimension_numbers = #tpu.dot_dimension_numbers<[1], [1], [0], [0], [0, 0, 1, 0], [], []>} : vector<8x8xf32>, vector<8x8xf32>, vector<8x8xf32> -> vector<8x8xf32>
    %cst_42 = arith.constant 0.353553385 : f32
    %106 = vector.broadcast %cst_42 : f32 to vector<8x8xf32>
    %107 = arith.mulf %105, %106 : vector<8x8xf32>
    %108 = arith.addf %107, %25 : vector<8x8xf32>
    %cst_43 = arith.constant dense<0xFF800000> : vector<8xf32>
    %109 = vector.multi_reduction <maximumf>, %108, %cst_43 [1] : vector<8x8xf32> to vector<8xf32>
    %110 = vector.shape_cast %109 : vector<8xf32> to vector<8x1xf32>
    %111 = vector.broadcast %110 : vector<8x1xf32> to vector<8x8xf32>
    %112 = arith.subf %108, %111 : vector<8x8xf32>
    %113 = math.exp %112 : vector<8x8xf32>
    %cst_44 = arith.constant dense<0.000000e+00> : vector<8xf32>
    %114 = vector.multi_reduction <add>, %113, %cst_44 [1] : vector<8x8xf32> to vector<8xf32>
    %115 = vector.shape_cast %114 : vector<8xf32> to vector<8x1xf32>
    %116 = vector.broadcast %115 : vector<8x1xf32> to vector<8x8xf32>
    %117 = arith.divf %113, %116 : vector<8x8xf32>
    %cst_45 = arith.constant dense<0.000000e+00> : vector<8x8xf32>
    %118 = tpu.matmul %117, %104, %cst_45 {dimension_numbers = #tpu.dot_dimension_numbers<[1], [0], [0], [1], [0, 0, 1, 1], [], []>} : vector<8x8xf32>, vector<8x8xf32>, vector<8x8xf32> -> vector<8x8xf32>
    %119 = vector.extract_strided_slice %34 {offsets = [16, 0], sizes = [8, 32], strides = [1, 1]} : vector<32x32xf32> to vector<8x32xf32>
    %cst_46 = arith.constant dense<0.000000e+00> : vector<8x32xf32>
    %120 = tpu.matmul %118, %119, %cst_46 {dimension_numbers = #tpu.dot_dimension_numbers<[1], [0], [0], [1], [0, 0, 1, 1], [], []>} : vector<8x8xf32>, vector<8x32xf32>, vector<8x32xf32> -> vector<8x32xf32>
    %121 = arith.addf %101, %120 : vector<8x32xf32>
    %122 = vector.extract_strided_slice %59 {offsets = [0, 24], sizes = [8, 8], strides = [1, 1]} : vector<8x96xf32> to vector<8x8xf32>
    %123 = vector.extract_strided_slice %59 {offsets = [0, 56], sizes = [8, 8], strides = [1, 1]} : vector<8x96xf32> to vector<8x8xf32>
    %124 = vector.extract_strided_slice %59 {offsets = [0, 88], sizes = [8, 8], strides = [1, 1]} : vector<8x96xf32> to vector<8x8xf32>
    %cst_47 = arith.constant dense<0.000000e+00> : vector<8x8xf32>
    %125 = tpu.matmul %122, %123, %cst_47 {dimension_numbers = #tpu.dot_dimension_numbers<[1], [1], [0], [0], [0, 0, 1, 0], [], []>} : vector<8x8xf32>, vector<8x8xf32>, vector<8x8xf32> -> vector<8x8xf32>
    %cst_48 = arith.constant 0.353553385 : f32
    %126 = vector.broadcast %cst_48 : f32 to vector<8x8xf32>
    %127 = arith.mulf %125, %126 : vector<8x8xf32>
    %128 = arith.addf %127, %25 : vector<8x8xf32>
    %cst_49 = arith.constant dense<0xFF800000> : vector<8xf32>
    %129 = vector.multi_reduction <maximumf>, %128, %cst_49 [1] : vector<8x8xf32> to vector<8xf32>
    %130 = vector.shape_cast %129 : vector<8xf32> to vector<8x1xf32>
    %131 = vector.broadcast %130 : vector<8x1xf32> to vector<8x8xf32>
    %132 = arith.subf %128, %131 : vector<8x8xf32>
    %133 = math.exp %132 : vector<8x8xf32>
    %cst_50 = arith.constant dense<0.000000e+00> : vector<8xf32>
    %134 = vector.multi_reduction <add>, %133, %cst_50 [1] : vector<8x8xf32> to vector<8xf32>
    %135 = vector.shape_cast %134 : vector<8xf32> to vector<8x1xf32>
    %136 = vector.broadcast %135 : vector<8x1xf32> to vector<8x8xf32>
    %137 = arith.divf %133, %136 : vector<8x8xf32>
    %cst_51 = arith.constant dense<0.000000e+00> : vector<8x8xf32>
    %138 = tpu.matmul %137, %124, %cst_51 {dimension_numbers = #tpu.dot_dimension_numbers<[1], [0], [0], [1], [0, 0, 1, 1], [], []>} : vector<8x8xf32>, vector<8x8xf32>, vector<8x8xf32> -> vector<8x8xf32>
    %139 = vector.extract_strided_slice %34 {offsets = [24, 0], sizes = [8, 32], strides = [1, 1]} : vector<32x32xf32> to vector<8x32xf32>
    %cst_52 = arith.constant dense<0.000000e+00> : vector<8x32xf32>
    %140 = tpu.matmul %138, %139, %cst_52 {dimension_numbers = #tpu.dot_dimension_numbers<[1], [0], [0], [1], [0, 0, 1, 1], [], []>} : vector<8x8xf32>, vector<8x32xf32>, vector<8x32xf32> -> vector<8x32xf32>
    %141 = arith.addf %121, %140 : vector<8x32xf32>
    %cst_53 = arith.constant dense<0.000000e+00> : vector<8xf32>
    %142 = vector.multi_reduction <add>, %141, %cst_53 [1] : vector<8x32xf32> to vector<8xf32>
    %143 = vector.shape_cast %142 : vector<8xf32> to vector<8x1xf32>
    %cst_54 = arith.constant 3.200000e+01 : f32
    %144 = vector.broadcast %cst_54 : f32 to vector<8x1xf32>
    %145 = arith.divf %143, %144 : vector<8x1xf32>
    %146 = vector.broadcast %145 : vector<8x1xf32> to vector<8x32xf32>
    %147 = arith.subf %141, %146 : vector<8x32xf32>
    %148 = arith.mulf %147, %147 : vector<8x32xf32>
    %cst_55 = arith.constant dense<0.000000e+00> : vector<8xf32>
    %149 = vector.multi_reduction <add>, %148, %cst_55 [1] : vector<8x32xf32> to vector<8xf32>
    %150 = vector.shape_cast %149 : vector<8xf32> to vector<8x1xf32>
    %cst_56 = arith.constant 3.200000e+01 : f32
    %151 = vector.broadcast %cst_56 : f32 to vector<8x1xf32>
    %152 = arith.divf %150, %151 : vector<8x1xf32>
    %153 = vector.broadcast %145 : vector<8x1xf32> to vector<8x32xf32>
    %154 = arith.subf %141, %153 : vector<8x32xf32>
    %cst_57 = arith.constant 9.99999974E-6 : f32
    %155 = vector.broadcast %cst_57 : f32 to vector<8x1xf32>
    %156 = arith.addf %152, %155 : vector<8x1xf32>
    %157 = math.rsqrt %156 : vector<8x1xf32>
    %158 = vector.broadcast %157 : vector<8x1xf32> to vector<8x32xf32>
    %159 = arith.mulf %154, %158 : vector<8x32xf32>
    %160 = vector.broadcast %28 : vector<1x32xf32> to vector<8x32xf32>
    %161 = arith.mulf %159, %160 : vector<8x32xf32>
    %162 = vector.broadcast %29 : vector<1x32xf32> to vector<8x32xf32>
    %163 = arith.addf %161, %162 : vector<8x32xf32>
    %cst_58 = arith.constant dense<0.000000e+00> : vector<8x64xf32>
    %164 = tpu.matmul %163, %35, %cst_58 {dimension_numbers = #tpu.dot_dimension_numbers<[1], [0], [0], [1], [0, 0, 1, 1], [], []>} : vector<8x32xf32>, vector<32x64xf32>, vector<8x64xf32> -> vector<8x64xf32>
    %165 = vector.broadcast %31 : vector<1x64xf32> to vector<8x64xf32>
    %166 = arith.addf %164, %165 : vector<8x64xf32>
    %cst_59 = arith.constant 0.000000e+00 : f32
    %167 = vector.broadcast %cst_59 : f32 to vector<8x64xf32>
    %168 = arith.maximumf %166, %167 : vector<8x64xf32>
    %cst_60 = arith.constant dense<0.000000e+00> : vector<8x32xf32>
    %169 = tpu.matmul %168, %36, %cst_60 {dimension_numbers = #tpu.dot_dimension_numbers<[1], [0], [0], [1], [0, 0, 1, 1], [], []>} : vector<8x64xf32>, vector<64x32xf32>, vector<8x32xf32> -> vector<8x32xf32>
    %170 = arith.addf %141, %169 : vector<8x32xf32>
    %171 = vector.broadcast %32 : vector<1x32xf32> to vector<8x32xf32>
    %172 = arith.addf %170, %171 : vector<8x32xf32>
    %c48 = arith.constant 48 : index
    %c0_61 = arith.constant 0 : index
    %173 = vector.load %arg2[%c48, %c0_61] : memref<64x128xf32, #tpu.memory_space<vmem>>, vector<1x32xf32>
    %c49 = arith.constant 49 : index
    %c0_62 = arith.constant 0 : index
    %174 = vector.load %arg2[%c49, %c0_62] : memref<64x128xf32, #tpu.memory_space<vmem>>, vector<1x32xf32>
    %cst_63 = arith.constant dense<0.000000e+00> : vector<8xf32>
    %175 = vector.multi_reduction <add>, %172, %cst_63 [1] : vector<8x32xf32> to vector<8xf32>
    %176 = vector.shape_cast %175 : vector<8xf32> to vector<8x1xf32>
    %cst_64 = arith.constant 3.200000e+01 : f32
    %177 = vector.broadcast %cst_64 : f32 to vector<8x1xf32>
    %178 = arith.divf %176, %177 : vector<8x1xf32>
    %179 = vector.broadcast %178 : vector<8x1xf32> to vector<8x32xf32>
    %180 = arith.subf %172, %179 : vector<8x32xf32>
    %181 = arith.mulf %180, %180 : vector<8x32xf32>
    %cst_65 = arith.constant dense<0.000000e+00> : vector<8xf32>
    %182 = vector.multi_reduction <add>, %181, %cst_65 [1] : vector<8x32xf32> to vector<8xf32>
    %183 = vector.shape_cast %182 : vector<8xf32> to vector<8x1xf32>
    %cst_66 = arith.constant 3.200000e+01 : f32
    %184 = vector.broadcast %cst_66 : f32 to vector<8x1xf32>
    %185 = arith.divf %183, %184 : vector<8x1xf32>
    %186 = vector.broadcast %178 : vector<8x1xf32> to vector<8x32xf32>
    %187 = arith.subf %172, %186 : vector<8x32xf32>
    %cst_67 = arith.constant 9.99999974E-6 : f32
    %188 = vector.broadcast %cst_67 : f32 to vector<8x1xf32>
    %189 = arith.addf %185, %188 : vector<8x1xf32>
    %190 = math.rsqrt %189 : vector<8x1xf32>
    %191 = vector.broadcast %190 : vector<8x1xf32> to vector<8x32xf32>
    %192 = arith.mulf %187, %191 : vector<8x32xf32>
    %193 = vector.broadcast %173 : vector<1x32xf32> to vector<8x32xf32>
    %194 = arith.mulf %192, %193 : vector<8x32xf32>
    %195 = vector.broadcast %174 : vector<1x32xf32> to vector<8x32xf32>
    %196 = arith.addf %194, %195 : vector<8x32xf32>
    %197 = tpu.iota {dimensions = array<i32: 0>} : vector<32x8xi32>
    %198 = arith.sitofp %197 : vector<32x8xi32> to vector<32x8xf32>
    %199 = tpu.iota {dimensions = array<i32: 1>} : vector<32x8xi32>
    %200 = arith.sitofp %199 : vector<32x8xi32> to vector<32x8xf32>
    %cst_68 = arith.constant 5.000000e-01 : f32
    %201 = vector.broadcast %cst_68 : f32 to vector<32x8xf32>
    %202 = arith.addf %198, %201 : vector<32x8xf32>
    %cst_69 = arith.constant 1.600000e+01 : f32
    %203 = vector.broadcast %cst_69 : f32 to vector<32x8xf32>
    %204 = arith.divf %202, %203 : vector<32x8xf32>
    %205 = math.floor %204 : vector<32x8xf32>
    %cst_70 = arith.constant 1.600000e+01 : f32
    %206 = vector.broadcast %cst_70 : f32 to vector<32x8xf32>
    %207 = arith.mulf %206, %205 : vector<32x8xf32>
    %208 = arith.subf %198, %207 : vector<32x8xf32>
    %cst_71 = arith.constant 5.000000e-01 : f32
    %209 = vector.broadcast %cst_71 : f32 to vector<32x8xf32>
    %210 = arith.addf %208, %209 : vector<32x8xf32>
    %cst_72 = arith.constant 4.000000e+00 : f32
    %211 = vector.broadcast %cst_72 : f32 to vector<32x8xf32>
    %212 = arith.divf %210, %211 : vector<32x8xf32>
    %213 = math.floor %212 : vector<32x8xf32>
    %cst_73 = arith.constant 4.000000e+00 : f32
    %214 = vector.broadcast %cst_73 : f32 to vector<32x8xf32>
    %215 = arith.mulf %214, %213 : vector<32x8xf32>
    %216 = arith.subf %208, %215 : vector<32x8xf32>
    %cst_74 = arith.constant 4.000000e+00 : f32
    %217 = vector.broadcast %cst_74 : f32 to vector<32x8xf32>
    %218 = arith.mulf %216, %217 : vector<32x8xf32>
    %219 = arith.addf %218, %213 : vector<32x8xf32>
    %cst_75 = arith.constant 4.000000e+00 : f32
    %220 = vector.broadcast %cst_75 : f32 to vector<32x8xf32>
    %221 = arith.mulf %205, %220 : vector<32x8xf32>
    %cst_76 = arith.constant 5.000000e-01 : f32
    %222 = vector.broadcast %cst_76 : f32 to vector<32x8xf32>
    %223 = arith.addf %219, %222 : vector<32x8xf32>
    %cst_77 = arith.constant 4.000000e+00 : f32
    %224 = vector.broadcast %cst_77 : f32 to vector<32x8xf32>
    %225 = arith.divf %223, %224 : vector<32x8xf32>
    %226 = math.floor %225 : vector<32x8xf32>
    %227 = arith.addf %221, %226 : vector<32x8xf32>
    %cst_78 = arith.constant 5.000000e-01 : f32
    %228 = vector.broadcast %cst_78 : f32 to vector<32x8xf32>
    %229 = arith.addf %219, %228 : vector<32x8xf32>
    %cst_79 = arith.constant 4.000000e+00 : f32
    %230 = vector.broadcast %cst_79 : f32 to vector<32x8xf32>
    %231 = arith.divf %229, %230 : vector<32x8xf32>
    %232 = math.floor %231 : vector<32x8xf32>
    %cst_80 = arith.constant 4.000000e+00 : f32
    %233 = vector.broadcast %cst_80 : f32 to vector<32x8xf32>
    %234 = arith.mulf %233, %232 : vector<32x8xf32>
    %235 = arith.subf %219, %234 : vector<32x8xf32>
    %236 = arith.cmpf oeq, %227, %200 : vector<32x8xf32>
    %c8 = arith.constant 8 : index
    %c0_81 = arith.constant 0 : index
    %237 = vector.load %arg2[%c8, %c0_81] : memref<64x128xf32, #tpu.memory_space<vmem>>, vector<32x8xf32>
    %cst_82 = arith.constant 0.000000e+00 : f32
    %238 = vector.broadcast %cst_82 : f32 to vector<32x8xf32>
    %239 = arith.cmpf oeq, %235, %238 : vector<32x8xf32>
    %240 = arith.andi %236, %239 : vector<32x8xi1>
    %cst_83 = arith.constant 1.000000e+00 : f32
    %cst_84 = arith.constant 0.000000e+00 : f32
    %241 = vector.broadcast %cst_83 : f32 to vector<32x8xf32>
    %242 = vector.broadcast %cst_84 : f32 to vector<32x8xf32>
    %243 = arith.select %240, %241, %242 : vector<32x8xi1>, vector<32x8xf32>
    %244 = vector.extract_strided_slice %196 {offsets = [0, 0], sizes = [8, 8], strides = [1, 1]} : vector<8x32xf32> to vector<8x8xf32>
    %cst_85 = arith.constant dense<0.000000e+00> : vector<32x8xf32>
    %245 = tpu.matmul %243, %244, %cst_85 {dimension_numbers = #tpu.dot_dimension_numbers<[1], [0], [0], [1], [0, 0, 1, 1], [], []>} : vector<32x8xf32>, vector<8x8xf32>, vector<32x8xf32> -> vector<32x8xf32>
    %246 = arith.addf %237, %245 : vector<32x8xf32>
    %cst_86 = arith.constant 1.000000e+00 : f32
    %247 = vector.broadcast %cst_86 : f32 to vector<32x8xf32>
    %248 = arith.cmpf oeq, %235, %247 : vector<32x8xf32>
    %249 = arith.andi %236, %248 : vector<32x8xi1>
    %cst_87 = arith.constant 1.000000e+00 : f32
    %cst_88 = arith.constant 0.000000e+00 : f32
    %250 = vector.broadcast %cst_87 : f32 to vector<32x8xf32>
    %251 = vector.broadcast %cst_88 : f32 to vector<32x8xf32>
    %252 = arith.select %249, %250, %251 : vector<32x8xi1>, vector<32x8xf32>
    %253 = vector.extract_strided_slice %196 {offsets = [0, 8], sizes = [8, 8], strides = [1, 1]} : vector<8x32xf32> to vector<8x8xf32>
    %cst_89 = arith.constant dense<0.000000e+00> : vector<32x8xf32>
    %254 = tpu.matmul %252, %253, %cst_89 {dimension_numbers = #tpu.dot_dimension_numbers<[1], [0], [0], [1], [0, 0, 1, 1], [], []>} : vector<32x8xf32>, vector<8x8xf32>, vector<32x8xf32> -> vector<32x8xf32>
    %255 = arith.addf %246, %254 : vector<32x8xf32>
    %cst_90 = arith.constant 2.000000e+00 : f32
    %256 = vector.broadcast %cst_90 : f32 to vector<32x8xf32>
    %257 = arith.cmpf oeq, %235, %256 : vector<32x8xf32>
    %258 = arith.andi %236, %257 : vector<32x8xi1>
    %cst_91 = arith.constant 1.000000e+00 : f32
    %cst_92 = arith.constant 0.000000e+00 : f32
    %259 = vector.broadcast %cst_91 : f32 to vector<32x8xf32>
    %260 = vector.broadcast %cst_92 : f32 to vector<32x8xf32>
    %261 = arith.select %258, %259, %260 : vector<32x8xi1>, vector<32x8xf32>
    %262 = vector.extract_strided_slice %196 {offsets = [0, 16], sizes = [8, 8], strides = [1, 1]} : vector<8x32xf32> to vector<8x8xf32>
    %cst_93 = arith.constant dense<0.000000e+00> : vector<32x8xf32>
    %263 = tpu.matmul %261, %262, %cst_93 {dimension_numbers = #tpu.dot_dimension_numbers<[1], [0], [0], [1], [0, 0, 1, 1], [], []>} : vector<32x8xf32>, vector<8x8xf32>, vector<32x8xf32> -> vector<32x8xf32>
    %264 = arith.addf %255, %263 : vector<32x8xf32>
    %cst_94 = arith.constant 3.000000e+00 : f32
    %265 = vector.broadcast %cst_94 : f32 to vector<32x8xf32>
    %266 = arith.cmpf oeq, %235, %265 : vector<32x8xf32>
    %267 = arith.andi %236, %266 : vector<32x8xi1>
    %cst_95 = arith.constant 1.000000e+00 : f32
    %cst_96 = arith.constant 0.000000e+00 : f32
    %268 = vector.broadcast %cst_95 : f32 to vector<32x8xf32>
    %269 = vector.broadcast %cst_96 : f32 to vector<32x8xf32>
    %270 = arith.select %267, %268, %269 : vector<32x8xi1>, vector<32x8xf32>
    %271 = vector.extract_strided_slice %196 {offsets = [0, 24], sizes = [8, 8], strides = [1, 1]} : vector<8x32xf32> to vector<8x8xf32>
    %cst_97 = arith.constant dense<0.000000e+00> : vector<32x8xf32>
    %272 = tpu.matmul %270, %271, %cst_97 {dimension_numbers = #tpu.dot_dimension_numbers<[1], [0], [0], [1], [0, 0, 1, 1], [], []>} : vector<32x8xf32>, vector<8x8xf32>, vector<32x8xf32> -> vector<32x8xf32>
    %273 = arith.addf %264, %272 : vector<32x8xf32>
    %274 = tpu.iota {dimensions = array<i32: 0>} : vector<32x32xi32>
    %275 = arith.sitofp %274 : vector<32x32xi32> to vector<32x32xf32>
    %276 = tpu.iota {dimensions = array<i32: 1>} : vector<32x32xi32>
    %277 = arith.sitofp %276 : vector<32x32xi32> to vector<32x32xf32>
    %cst_98 = arith.constant 5.000000e-01 : f32
    %278 = vector.broadcast %cst_98 : f32 to vector<32x32xf32>
    %279 = arith.addf %275, %278 : vector<32x32xf32>
    %cst_99 = arith.constant 4.000000e+00 : f32
    %280 = vector.broadcast %cst_99 : f32 to vector<32x32xf32>
    %281 = arith.divf %279, %280 : vector<32x32xf32>
    %282 = math.floor %281 : vector<32x32xf32>
    %cst_100 = arith.constant 5.000000e-01 : f32
    %283 = vector.broadcast %cst_100 : f32 to vector<32x32xf32>
    %284 = arith.addf %277, %283 : vector<32x32xf32>
    %cst_101 = arith.constant 4.000000e+00 : f32
    %285 = vector.broadcast %cst_101 : f32 to vector<32x32xf32>
    %286 = arith.divf %284, %285 : vector<32x32xf32>
    %287 = math.floor %286 : vector<32x32xf32>
    %288 = arith.cmpf oeq, %282, %287 : vector<32x32xf32>
    %cst_102 = arith.constant 0.000000e+00 : f32
    %cst_103 = arith.constant -1.000000e+30 : f32
    %289 = vector.broadcast %cst_102 : f32 to vector<32x32xf32>
    %290 = vector.broadcast %cst_103 : f32 to vector<32x32xf32>
    %291 = arith.select %288, %289, %290 : vector<32x32xi1>, vector<32x32xf32>
    %c50 = arith.constant 50 : index
    %c0_104 = arith.constant 0 : index
    %292 = vector.load %arg2[%c50, %c0_104] : memref<64x128xf32, #tpu.memory_space<vmem>>, vector<1x8xf32>
    %c51 = arith.constant 51 : index
    %c0_105 = arith.constant 0 : index
    %293 = vector.load %arg2[%c51, %c0_105] : memref<64x128xf32, #tpu.memory_space<vmem>>, vector<1x8xf32>
    %c53 = arith.constant 53 : index
    %c0_106 = arith.constant 0 : index
    %294 = vector.load %arg2[%c53, %c0_106] : memref<64x128xf32, #tpu.memory_space<vmem>>, vector<1x8xf32>
    %c54 = arith.constant 54 : index
    %c0_107 = arith.constant 0 : index
    %295 = vector.load %arg2[%c54, %c0_107] : memref<64x128xf32, #tpu.memory_space<vmem>>, vector<1x8xf32>
    %c52 = arith.constant 52 : index
    %c0_108 = arith.constant 0 : index
    %296 = vector.load %arg2[%c52, %c0_108] : memref<64x128xf32, #tpu.memory_space<vmem>>, vector<1x8xf32>
    %c55 = arith.constant 55 : index
    %c0_109 = arith.constant 0 : index
    %297 = vector.load %arg2[%c55, %c0_109] : memref<64x128xf32, #tpu.memory_space<vmem>>, vector<1x64xf32>
    %c56 = arith.constant 56 : index
    %c0_110 = arith.constant 0 : index
    %298 = vector.load %arg2[%c56, %c0_110] : memref<64x128xf32, #tpu.memory_space<vmem>>, vector<1x8xf32>
    %c352 = arith.constant 352 : index
    %c0_111 = arith.constant 0 : index
    %299 = vector.load %arg3[%c352, %c0_111] : memref<672x128xf32, #tpu.memory_space<vmem>>, vector<8x96xf32>
    %c360 = arith.constant 360 : index
    %c0_112 = arith.constant 0 : index
    %300 = vector.load %arg3[%c360, %c0_112] : memref<672x128xf32, #tpu.memory_space<vmem>>, vector<32x8xf32>
    %c392 = arith.constant 392 : index
    %c0_113 = arith.constant 0 : index
    %301 = vector.load %arg3[%c392, %c0_113] : memref<672x128xf32, #tpu.memory_space<vmem>>, vector<8x64xf32>
    %c400 = arith.constant 400 : index
    %c0_114 = arith.constant 0 : index
    %302 = vector.load %arg3[%c400, %c0_114] : memref<672x128xf32, #tpu.memory_space<vmem>>, vector<64x8xf32>
    %cst_115 = arith.constant dense<0.000000e+00> : vector<32xf32>
    %303 = vector.multi_reduction <add>, %273, %cst_115 [1] : vector<32x8xf32> to vector<32xf32>
    %304 = vector.shape_cast %303 : vector<32xf32> to vector<32x1xf32>
    %cst_116 = arith.constant 8.000000e+00 : f32
    %305 = vector.broadcast %cst_116 : f32 to vector<32x1xf32>
    %306 = arith.divf %304, %305 : vector<32x1xf32>
    %307 = vector.broadcast %306 : vector<32x1xf32> to vector<32x8xf32>
    %308 = arith.subf %273, %307 : vector<32x8xf32>
    %309 = arith.mulf %308, %308 : vector<32x8xf32>
    %cst_117 = arith.constant dense<0.000000e+00> : vector<32xf32>
    %310 = vector.multi_reduction <add>, %309, %cst_117 [1] : vector<32x8xf32> to vector<32xf32>
    %311 = vector.shape_cast %310 : vector<32xf32> to vector<32x1xf32>
    %cst_118 = arith.constant 8.000000e+00 : f32
    %312 = vector.broadcast %cst_118 : f32 to vector<32x1xf32>
    %313 = arith.divf %311, %312 : vector<32x1xf32>
    %314 = vector.broadcast %306 : vector<32x1xf32> to vector<32x8xf32>
    %315 = arith.subf %273, %314 : vector<32x8xf32>
    %cst_119 = arith.constant 9.99999974E-6 : f32
    %316 = vector.broadcast %cst_119 : f32 to vector<32x1xf32>
    %317 = arith.addf %313, %316 : vector<32x1xf32>
    %318 = math.rsqrt %317 : vector<32x1xf32>
    %319 = vector.broadcast %318 : vector<32x1xf32> to vector<32x8xf32>
    %320 = arith.mulf %315, %319 : vector<32x8xf32>
    %321 = vector.broadcast %292 : vector<1x8xf32> to vector<32x8xf32>
    %322 = arith.mulf %320, %321 : vector<32x8xf32>
    %323 = vector.broadcast %293 : vector<1x8xf32> to vector<32x8xf32>
    %324 = arith.addf %322, %323 : vector<32x8xf32>
    %cst_120 = arith.constant dense<0.000000e+00> : vector<32x96xf32>
    %325 = tpu.matmul %324, %299, %cst_120 {dimension_numbers = #tpu.dot_dimension_numbers<[1], [0], [0], [1], [0, 0, 1, 1], [], []>} : vector<32x8xf32>, vector<8x96xf32>, vector<32x96xf32> -> vector<32x96xf32>
    %326 = vector.broadcast %296 : vector<1x8xf32> to vector<32x8xf32>
    %327 = arith.addf %273, %326 : vector<32x8xf32>
    %328 = vector.extract_strided_slice %325 {offsets = [0, 0], sizes = [32, 8], strides = [1, 1]} : vector<32x96xf32> to vector<32x8xf32>
    %329 = vector.extract_strided_slice %325 {offsets = [0, 32], sizes = [32, 8], strides = [1, 1]} : vector<32x96xf32> to vector<32x8xf32>
    %330 = vector.extract_strided_slice %325 {offsets = [0, 64], sizes = [32, 8], strides = [1, 1]} : vector<32x96xf32> to vector<32x8xf32>
    %cst_121 = arith.constant dense<0.000000e+00> : vector<32x32xf32>
    %331 = tpu.matmul %328, %329, %cst_121 {dimension_numbers = #tpu.dot_dimension_numbers<[1], [1], [0], [0], [0, 0, 1, 0], [], []>} : vector<32x8xf32>, vector<32x8xf32>, vector<32x32xf32> -> vector<32x32xf32>
    %cst_122 = arith.constant 0.353553385 : f32
    %332 = vector.broadcast %cst_122 : f32 to vector<32x32xf32>
    %333 = arith.mulf %331, %332 : vector<32x32xf32>
    %334 = arith.addf %333, %291 : vector<32x32xf32>
    %cst_123 = arith.constant dense<0xFF800000> : vector<32xf32>
    %335 = vector.multi_reduction <maximumf>, %334, %cst_123 [1] : vector<32x32xf32> to vector<32xf32>
    %336 = vector.shape_cast %335 : vector<32xf32> to vector<32x1xf32>
    %337 = vector.broadcast %336 : vector<32x1xf32> to vector<32x32xf32>
    %338 = arith.subf %334, %337 : vector<32x32xf32>
    %339 = math.exp %338 : vector<32x32xf32>
    %cst_124 = arith.constant dense<0.000000e+00> : vector<32xf32>
    %340 = vector.multi_reduction <add>, %339, %cst_124 [1] : vector<32x32xf32> to vector<32xf32>
    %341 = vector.shape_cast %340 : vector<32xf32> to vector<32x1xf32>
    %342 = vector.broadcast %341 : vector<32x1xf32> to vector<32x32xf32>
    %343 = arith.divf %339, %342 : vector<32x32xf32>
    %cst_125 = arith.constant dense<0.000000e+00> : vector<32x8xf32>
    %344 = tpu.matmul %343, %330, %cst_125 {dimension_numbers = #tpu.dot_dimension_numbers<[1], [0], [0], [1], [0, 0, 1, 1], [], []>} : vector<32x32xf32>, vector<32x8xf32>, vector<32x8xf32> -> vector<32x8xf32>
    %345 = vector.extract_strided_slice %300 {offsets = [0, 0], sizes = [8, 8], strides = [1, 1]} : vector<32x8xf32> to vector<8x8xf32>
    %cst_126 = arith.constant dense<0.000000e+00> : vector<32x8xf32>
    %346 = tpu.matmul %344, %345, %cst_126 {dimension_numbers = #tpu.dot_dimension_numbers<[1], [0], [0], [1], [0, 0, 1, 1], [], []>} : vector<32x8xf32>, vector<8x8xf32>, vector<32x8xf32> -> vector<32x8xf32>
    %347 = arith.addf %327, %346 : vector<32x8xf32>
    %348 = vector.extract_strided_slice %325 {offsets = [0, 8], sizes = [32, 8], strides = [1, 1]} : vector<32x96xf32> to vector<32x8xf32>
    %349 = vector.extract_strided_slice %325 {offsets = [0, 40], sizes = [32, 8], strides = [1, 1]} : vector<32x96xf32> to vector<32x8xf32>
    %350 = vector.extract_strided_slice %325 {offsets = [0, 72], sizes = [32, 8], strides = [1, 1]} : vector<32x96xf32> to vector<32x8xf32>
    %cst_127 = arith.constant dense<0.000000e+00> : vector<32x32xf32>
    %351 = tpu.matmul %348, %349, %cst_127 {dimension_numbers = #tpu.dot_dimension_numbers<[1], [1], [0], [0], [0, 0, 1, 0], [], []>} : vector<32x8xf32>, vector<32x8xf32>, vector<32x32xf32> -> vector<32x32xf32>
    %cst_128 = arith.constant 0.353553385 : f32
    %352 = vector.broadcast %cst_128 : f32 to vector<32x32xf32>
    %353 = arith.mulf %351, %352 : vector<32x32xf32>
    %354 = arith.addf %353, %291 : vector<32x32xf32>
    %cst_129 = arith.constant dense<0xFF800000> : vector<32xf32>
    %355 = vector.multi_reduction <maximumf>, %354, %cst_129 [1] : vector<32x32xf32> to vector<32xf32>
    %356 = vector.shape_cast %355 : vector<32xf32> to vector<32x1xf32>
    %357 = vector.broadcast %356 : vector<32x1xf32> to vector<32x32xf32>
    %358 = arith.subf %354, %357 : vector<32x32xf32>
    %359 = math.exp %358 : vector<32x32xf32>
    %cst_130 = arith.constant dense<0.000000e+00> : vector<32xf32>
    %360 = vector.multi_reduction <add>, %359, %cst_130 [1] : vector<32x32xf32> to vector<32xf32>
    %361 = vector.shape_cast %360 : vector<32xf32> to vector<32x1xf32>
    %362 = vector.broadcast %361 : vector<32x1xf32> to vector<32x32xf32>
    %363 = arith.divf %359, %362 : vector<32x32xf32>
    %cst_131 = arith.constant dense<0.000000e+00> : vector<32x8xf32>
    %364 = tpu.matmul %363, %350, %cst_131 {dimension_numbers = #tpu.dot_dimension_numbers<[1], [0], [0], [1], [0, 0, 1, 1], [], []>} : vector<32x32xf32>, vector<32x8xf32>, vector<32x8xf32> -> vector<32x8xf32>
    %365 = vector.extract_strided_slice %300 {offsets = [8, 0], sizes = [8, 8], strides = [1, 1]} : vector<32x8xf32> to vector<8x8xf32>
    %cst_132 = arith.constant dense<0.000000e+00> : vector<32x8xf32>
    %366 = tpu.matmul %364, %365, %cst_132 {dimension_numbers = #tpu.dot_dimension_numbers<[1], [0], [0], [1], [0, 0, 1, 1], [], []>} : vector<32x8xf32>, vector<8x8xf32>, vector<32x8xf32> -> vector<32x8xf32>
    %367 = arith.addf %347, %366 : vector<32x8xf32>
    %368 = vector.extract_strided_slice %325 {offsets = [0, 16], sizes = [32, 8], strides = [1, 1]} : vector<32x96xf32> to vector<32x8xf32>
    %369 = vector.extract_strided_slice %325 {offsets = [0, 48], sizes = [32, 8], strides = [1, 1]} : vector<32x96xf32> to vector<32x8xf32>
    %370 = vector.extract_strided_slice %325 {offsets = [0, 80], sizes = [32, 8], strides = [1, 1]} : vector<32x96xf32> to vector<32x8xf32>
    %cst_133 = arith.constant dense<0.000000e+00> : vector<32x32xf32>
    %371 = tpu.matmul %368, %369, %cst_133 {dimension_numbers = #tpu.dot_dimension_numbers<[1], [1], [0], [0], [0, 0, 1, 0], [], []>} : vector<32x8xf32>, vector<32x8xf32>, vector<32x32xf32> -> vector<32x32xf32>
    %cst_134 = arith.constant 0.353553385 : f32
    %372 = vector.broadcast %cst_134 : f32 to vector<32x32xf32>
    %373 = arith.mulf %371, %372 : vector<32x32xf32>
    %374 = arith.addf %373, %291 : vector<32x32xf32>
    %cst_135 = arith.constant dense<0xFF800000> : vector<32xf32>
    %375 = vector.multi_reduction <maximumf>, %374, %cst_135 [1] : vector<32x32xf32> to vector<32xf32>
    %376 = vector.shape_cast %375 : vector<32xf32> to vector<32x1xf32>
    %377 = vector.broadcast %376 : vector<32x1xf32> to vector<32x32xf32>
    %378 = arith.subf %374, %377 : vector<32x32xf32>
    %379 = math.exp %378 : vector<32x32xf32>
    %cst_136 = arith.constant dense<0.000000e+00> : vector<32xf32>
    %380 = vector.multi_reduction <add>, %379, %cst_136 [1] : vector<32x32xf32> to vector<32xf32>
    %381 = vector.shape_cast %380 : vector<32xf32> to vector<32x1xf32>
    %382 = vector.broadcast %381 : vector<32x1xf32> to vector<32x32xf32>
    %383 = arith.divf %379, %382 : vector<32x32xf32>
    %cst_137 = arith.constant dense<0.000000e+00> : vector<32x8xf32>
    %384 = tpu.matmul %383, %370, %cst_137 {dimension_numbers = #tpu.dot_dimension_numbers<[1], [0], [0], [1], [0, 0, 1, 1], [], []>} : vector<32x32xf32>, vector<32x8xf32>, vector<32x8xf32> -> vector<32x8xf32>
    %385 = vector.extract_strided_slice %300 {offsets = [16, 0], sizes = [8, 8], strides = [1, 1]} : vector<32x8xf32> to vector<8x8xf32>
    %cst_138 = arith.constant dense<0.000000e+00> : vector<32x8xf32>
    %386 = tpu.matmul %384, %385, %cst_138 {dimension_numbers = #tpu.dot_dimension_numbers<[1], [0], [0], [1], [0, 0, 1, 1], [], []>} : vector<32x8xf32>, vector<8x8xf32>, vector<32x8xf32> -> vector<32x8xf32>
    %387 = arith.addf %367, %386 : vector<32x8xf32>
    %388 = vector.extract_strided_slice %325 {offsets = [0, 24], sizes = [32, 8], strides = [1, 1]} : vector<32x96xf32> to vector<32x8xf32>
    %389 = vector.extract_strided_slice %325 {offsets = [0, 56], sizes = [32, 8], strides = [1, 1]} : vector<32x96xf32> to vector<32x8xf32>
    %390 = vector.extract_strided_slice %325 {offsets = [0, 88], sizes = [32, 8], strides = [1, 1]} : vector<32x96xf32> to vector<32x8xf32>
    %cst_139 = arith.constant dense<0.000000e+00> : vector<32x32xf32>
    %391 = tpu.matmul %388, %389, %cst_139 {dimension_numbers = #tpu.dot_dimension_numbers<[1], [1], [0], [0], [0, 0, 1, 0], [], []>} : vector<32x8xf32>, vector<32x8xf32>, vector<32x32xf32> -> vector<32x32xf32>
    %cst_140 = arith.constant 0.353553385 : f32
    %392 = vector.broadcast %cst_140 : f32 to vector<32x32xf32>
    %393 = arith.mulf %391, %392 : vector<32x32xf32>
    %394 = arith.addf %393, %291 : vector<32x32xf32>
    %cst_141 = arith.constant dense<0xFF800000> : vector<32xf32>
    %395 = vector.multi_reduction <maximumf>, %394, %cst_141 [1] : vector<32x32xf32> to vector<32xf32>
    %396 = vector.shape_cast %395 : vector<32xf32> to vector<32x1xf32>
    %397 = vector.broadcast %396 : vector<32x1xf32> to vector<32x32xf32>
    %398 = arith.subf %394, %397 : vector<32x32xf32>
    %399 = math.exp %398 : vector<32x32xf32>
    %cst_142 = arith.constant dense<0.000000e+00> : vector<32xf32>
    %400 = vector.multi_reduction <add>, %399, %cst_142 [1] : vector<32x32xf32> to vector<32xf32>
    %401 = vector.shape_cast %400 : vector<32xf32> to vector<32x1xf32>
    %402 = vector.broadcast %401 : vector<32x1xf32> to vector<32x32xf32>
    %403 = arith.divf %399, %402 : vector<32x32xf32>
    %cst_143 = arith.constant dense<0.000000e+00> : vector<32x8xf32>
    %404 = tpu.matmul %403, %390, %cst_143 {dimension_numbers = #tpu.dot_dimension_numbers<[1], [0], [0], [1], [0, 0, 1, 1], [], []>} : vector<32x32xf32>, vector<32x8xf32>, vector<32x8xf32> -> vector<32x8xf32>
    %405 = vector.extract_strided_slice %300 {offsets = [24, 0], sizes = [8, 8], strides = [1, 1]} : vector<32x8xf32> to vector<8x8xf32>
    %cst_144 = arith.constant dense<0.000000e+00> : vector<32x8xf32>
    %406 = tpu.matmul %404, %405, %cst_144 {dimension_numbers = #tpu.dot_dimension_numbers<[1], [0], [0], [1], [0, 0, 1, 1], [], []>} : vector<32x8xf32>, vector<8x8xf32>, vector<32x8xf32> -> vector<32x8xf32>
    %407 = arith.addf %387, %406 : vector<32x8xf32>
    %cst_145 = arith.constant dense<0.000000e+00> : vector<32xf32>
    %408 = vector.multi_reduction <add>, %407, %cst_145 [1] : vector<32x8xf32> to vector<32xf32>
    %409 = vector.shape_cast %408 : vector<32xf32> to vector<32x1xf32>
    %cst_146 = arith.constant 8.000000e+00 : f32
    %410 = vector.broadcast %cst_146 : f32 to vector<32x1xf32>
    %411 = arith.divf %409, %410 : vector<32x1xf32>
    %412 = vector.broadcast %411 : vector<32x1xf32> to vector<32x8xf32>
    %413 = arith.subf %407, %412 : vector<32x8xf32>
    %414 = arith.mulf %413, %413 : vector<32x8xf32>
    %cst_147 = arith.constant dense<0.000000e+00> : vector<32xf32>
    %415 = vector.multi_reduction <add>, %414, %cst_147 [1] : vector<32x8xf32> to vector<32xf32>
    %416 = vector.shape_cast %415 : vector<32xf32> to vector<32x1xf32>
    %cst_148 = arith.constant 8.000000e+00 : f32
    %417 = vector.broadcast %cst_148 : f32 to vector<32x1xf32>
    %418 = arith.divf %416, %417 : vector<32x1xf32>
    %419 = vector.broadcast %411 : vector<32x1xf32> to vector<32x8xf32>
    %420 = arith.subf %407, %419 : vector<32x8xf32>
    %cst_149 = arith.constant 9.99999974E-6 : f32
    %421 = vector.broadcast %cst_149 : f32 to vector<32x1xf32>
    %422 = arith.addf %418, %421 : vector<32x1xf32>
    %423 = math.rsqrt %422 : vector<32x1xf32>
    %424 = vector.broadcast %423 : vector<32x1xf32> to vector<32x8xf32>
    %425 = arith.mulf %420, %424 : vector<32x8xf32>
    %426 = vector.broadcast %294 : vector<1x8xf32> to vector<32x8xf32>
    %427 = arith.mulf %425, %426 : vector<32x8xf32>
    %428 = vector.broadcast %295 : vector<1x8xf32> to vector<32x8xf32>
    %429 = arith.addf %427, %428 : vector<32x8xf32>
    %cst_150 = arith.constant dense<0.000000e+00> : vector<32x64xf32>
    %430 = tpu.matmul %429, %301, %cst_150 {dimension_numbers = #tpu.dot_dimension_numbers<[1], [0], [0], [1], [0, 0, 1, 1], [], []>} : vector<32x8xf32>, vector<8x64xf32>, vector<32x64xf32> -> vector<32x64xf32>
    %431 = vector.broadcast %297 : vector<1x64xf32> to vector<32x64xf32>
    %432 = arith.addf %430, %431 : vector<32x64xf32>
    %cst_151 = arith.constant 0.000000e+00 : f32
    %433 = vector.broadcast %cst_151 : f32 to vector<32x64xf32>
    %434 = arith.maximumf %432, %433 : vector<32x64xf32>
    %cst_152 = arith.constant dense<0.000000e+00> : vector<32x8xf32>
    %435 = tpu.matmul %434, %302, %cst_152 {dimension_numbers = #tpu.dot_dimension_numbers<[1], [0], [0], [1], [0, 0, 1, 1], [], []>} : vector<32x64xf32>, vector<64x8xf32>, vector<32x8xf32> -> vector<32x8xf32>
    %436 = arith.addf %407, %435 : vector<32x8xf32>
    %437 = vector.broadcast %298 : vector<1x8xf32> to vector<32x8xf32>
    %438 = arith.addf %436, %437 : vector<32x8xf32>
    %c57 = arith.constant 57 : index
    %c0_153 = arith.constant 0 : index
    %439 = vector.load %arg2[%c57, %c0_153] : memref<64x128xf32, #tpu.memory_space<vmem>>, vector<1x8xf32>
    %c58 = arith.constant 58 : index
    %c0_154 = arith.constant 0 : index
    %440 = vector.load %arg2[%c58, %c0_154] : memref<64x128xf32, #tpu.memory_space<vmem>>, vector<1x8xf32>
    %cst_155 = arith.constant dense<0.000000e+00> : vector<32xf32>
    %441 = vector.multi_reduction <add>, %438, %cst_155 [1] : vector<32x8xf32> to vector<32xf32>
    %442 = vector.shape_cast %441 : vector<32xf32> to vector<32x1xf32>
    %cst_156 = arith.constant 8.000000e+00 : f32
    %443 = vector.broadcast %cst_156 : f32 to vector<32x1xf32>
    %444 = arith.divf %442, %443 : vector<32x1xf32>
    %445 = vector.broadcast %444 : vector<32x1xf32> to vector<32x8xf32>
    %446 = arith.subf %438, %445 : vector<32x8xf32>
    %447 = arith.mulf %446, %446 : vector<32x8xf32>
    %cst_157 = arith.constant dense<0.000000e+00> : vector<32xf32>
    %448 = vector.multi_reduction <add>, %447, %cst_157 [1] : vector<32x8xf32> to vector<32xf32>
    %449 = vector.shape_cast %448 : vector<32xf32> to vector<32x1xf32>
    %cst_158 = arith.constant 8.000000e+00 : f32
    %450 = vector.broadcast %cst_158 : f32 to vector<32x1xf32>
    %451 = arith.divf %449, %450 : vector<32x1xf32>
    %452 = vector.broadcast %444 : vector<32x1xf32> to vector<32x8xf32>
    %453 = arith.subf %438, %452 : vector<32x8xf32>
    %cst_159 = arith.constant 9.99999974E-6 : f32
    %454 = vector.broadcast %cst_159 : f32 to vector<32x1xf32>
    %455 = arith.addf %451, %454 : vector<32x1xf32>
    %456 = math.rsqrt %455 : vector<32x1xf32>
    %457 = vector.broadcast %456 : vector<32x1xf32> to vector<32x8xf32>
    %458 = arith.mulf %453, %457 : vector<32x8xf32>
    %459 = vector.broadcast %439 : vector<1x8xf32> to vector<32x8xf32>
    %460 = arith.mulf %458, %459 : vector<32x8xf32>
    %461 = vector.broadcast %440 : vector<1x8xf32> to vector<32x8xf32>
    %462 = arith.addf %460, %461 : vector<32x8xf32>
    %c464 = arith.constant 464 : index
    %c0_160 = arith.constant 0 : index
    %463 = vector.load %arg3[%c464, %c0_160] : memref<672x128xf32, #tpu.memory_space<vmem>>, vector<192x8xf32>
    %cst_161 = arith.constant dense<0.000000e+00> : vector<32x192xf32>
    %464 = tpu.matmul %462, %463, %cst_161 {dimension_numbers = #tpu.dot_dimension_numbers<[1], [1], [0], [0], [0, 0, 1, 0], [], []>} : vector<32x8xf32>, vector<192x8xf32>, vector<32x192xf32> -> vector<32x192xf32>
    %465 = tpu.iota {dimensions = array<i32: 0>} : vector<32x192xi32>
    %466 = arith.sitofp %465 : vector<32x192xi32> to vector<32x192xf32>
    %467 = tpu.iota {dimensions = array<i32: 1>} : vector<32x192xi32>
    %468 = arith.sitofp %467 : vector<32x192xi32> to vector<32x192xf32>
    %cst_162 = arith.constant 5.000000e-01 : f32
    %469 = vector.broadcast %cst_162 : f32 to vector<32x192xf32>
    %470 = arith.addf %466, %469 : vector<32x192xf32>
    %cst_163 = arith.constant 1.600000e+01 : f32
    %471 = vector.broadcast %cst_163 : f32 to vector<32x192xf32>
    %472 = arith.divf %470, %471 : vector<32x192xf32>
    %473 = math.floor %472 : vector<32x192xf32>
    %cst_164 = arith.constant 1.600000e+01 : f32
    %474 = vector.broadcast %cst_164 : f32 to vector<32x192xf32>
    %475 = arith.mulf %474, %473 : vector<32x192xf32>
    %476 = arith.subf %466, %475 : vector<32x192xf32>
    %cst_165 = arith.constant 5.000000e-01 : f32
    %477 = vector.broadcast %cst_165 : f32 to vector<32x192xf32>
    %478 = arith.addf %468, %477 : vector<32x192xf32>
    %cst_166 = arith.constant 1.200000e+01 : f32
    %479 = vector.broadcast %cst_166 : f32 to vector<32x192xf32>
    %480 = arith.divf %478, %479 : vector<32x192xf32>
    %481 = math.floor %480 : vector<32x192xf32>
    %482 = arith.cmpf oeq, %476, %481 : vector<32x192xf32>
    %cst_167 = arith.constant 0.000000e+00 : f32
    %483 = vector.broadcast %cst_167 : f32 to vector<32x192xf32>
    %484 = arith.select %482, %464, %483 : vector<32x192xi1>, vector<32x192xf32>
    %485 = tpu.iota {dimensions = array<i32: 0>} : vector<2x32xi32>
    %486 = arith.sitofp %485 : vector<2x32xi32> to vector<2x32xf32>
    %487 = tpu.iota {dimensions = array<i32: 1>} : vector<2x32xi32>
    %488 = arith.sitofp %487 : vector<2x32xi32> to vector<2x32xf32>
    %cst_168 = arith.constant 5.000000e-01 : f32
    %489 = vector.broadcast %cst_168 : f32 to vector<2x32xf32>
    %490 = arith.addf %488, %489 : vector<2x32xf32>
    %cst_169 = arith.constant 1.600000e+01 : f32
    %491 = vector.broadcast %cst_169 : f32 to vector<2x32xf32>
    %492 = arith.divf %490, %491 : vector<2x32xf32>
    %493 = math.floor %492 : vector<2x32xf32>
    %494 = arith.cmpf oeq, %493, %486 : vector<2x32xf32>
    %cst_170 = arith.constant 1.000000e+00 : f32
    %cst_171 = arith.constant 0.000000e+00 : f32
    %495 = vector.broadcast %cst_170 : f32 to vector<2x32xf32>
    %496 = vector.broadcast %cst_171 : f32 to vector<2x32xf32>
    %497 = arith.select %494, %495, %496 : vector<2x32xi1>, vector<2x32xf32>
    %cst_172 = arith.constant dense<0.000000e+00> : vector<2x192xf32>
    %498 = tpu.matmul %497, %484, %cst_172 {dimension_numbers = #tpu.dot_dimension_numbers<[1], [0], [0], [1], [0, 0, 1, 1], [], []>} : vector<2x32xf32>, vector<32x192xf32>, vector<2x192xf32> -> vector<2x192xf32>
    %cst_173 = arith.constant 0.000000e+00 : f32
    %499 = vector.broadcast %cst_173 : f32 to vector<2x12xf32>
    %500 = vector.extract_strided_slice %498 {offsets = [0, 0], sizes = [2, 12], strides = [1, 1]} : vector<2x192xf32> to vector<2x12xf32>
    %501 = arith.addf %499, %500 : vector<2x12xf32>
    %502 = vector.extract_strided_slice %498 {offsets = [0, 12], sizes = [2, 12], strides = [1, 1]} : vector<2x192xf32> to vector<2x12xf32>
    %503 = arith.addf %501, %502 : vector<2x12xf32>
    %504 = vector.extract_strided_slice %498 {offsets = [0, 24], sizes = [2, 12], strides = [1, 1]} : vector<2x192xf32> to vector<2x12xf32>
    %505 = arith.addf %503, %504 : vector<2x12xf32>
    %506 = vector.extract_strided_slice %498 {offsets = [0, 36], sizes = [2, 12], strides = [1, 1]} : vector<2x192xf32> to vector<2x12xf32>
    %507 = arith.addf %505, %506 : vector<2x12xf32>
    %508 = vector.extract_strided_slice %498 {offsets = [0, 48], sizes = [2, 12], strides = [1, 1]} : vector<2x192xf32> to vector<2x12xf32>
    %509 = arith.addf %507, %508 : vector<2x12xf32>
    %510 = vector.extract_strided_slice %498 {offsets = [0, 60], sizes = [2, 12], strides = [1, 1]} : vector<2x192xf32> to vector<2x12xf32>
    %511 = arith.addf %509, %510 : vector<2x12xf32>
    %512 = vector.extract_strided_slice %498 {offsets = [0, 72], sizes = [2, 12], strides = [1, 1]} : vector<2x192xf32> to vector<2x12xf32>
    %513 = arith.addf %511, %512 : vector<2x12xf32>
    %514 = vector.extract_strided_slice %498 {offsets = [0, 84], sizes = [2, 12], strides = [1, 1]} : vector<2x192xf32> to vector<2x12xf32>
    %515 = arith.addf %513, %514 : vector<2x12xf32>
    %516 = vector.extract_strided_slice %498 {offsets = [0, 96], sizes = [2, 12], strides = [1, 1]} : vector<2x192xf32> to vector<2x12xf32>
    %517 = arith.addf %515, %516 : vector<2x12xf32>
    %518 = vector.extract_strided_slice %498 {offsets = [0, 108], sizes = [2, 12], strides = [1, 1]} : vector<2x192xf32> to vector<2x12xf32>
    %519 = arith.addf %517, %518 : vector<2x12xf32>
    %520 = vector.extract_strided_slice %498 {offsets = [0, 120], sizes = [2, 12], strides = [1, 1]} : vector<2x192xf32> to vector<2x12xf32>
    %521 = arith.addf %519, %520 : vector<2x12xf32>
    %522 = vector.extract_strided_slice %498 {offsets = [0, 132], sizes = [2, 12], strides = [1, 1]} : vector<2x192xf32> to vector<2x12xf32>
    %523 = arith.addf %521, %522 : vector<2x12xf32>
    %524 = vector.extract_strided_slice %498 {offsets = [0, 144], sizes = [2, 12], strides = [1, 1]} : vector<2x192xf32> to vector<2x12xf32>
    %525 = arith.addf %523, %524 : vector<2x12xf32>
    %526 = vector.extract_strided_slice %498 {offsets = [0, 156], sizes = [2, 12], strides = [1, 1]} : vector<2x192xf32> to vector<2x12xf32>
    %527 = arith.addf %525, %526 : vector<2x12xf32>
    %528 = vector.extract_strided_slice %498 {offsets = [0, 168], sizes = [2, 12], strides = [1, 1]} : vector<2x192xf32> to vector<2x12xf32>
    %529 = arith.addf %527, %528 : vector<2x12xf32>
    %530 = vector.extract_strided_slice %498 {offsets = [0, 180], sizes = [2, 12], strides = [1, 1]} : vector<2x192xf32> to vector<2x12xf32>
    %531 = arith.addf %529, %530 : vector<2x12xf32>
    %c59 = arith.constant 59 : index
    %c0_174 = arith.constant 0 : index
    %532 = vector.load %arg2[%c59, %c0_174] : memref<64x128xf32, #tpu.memory_space<vmem>>, vector<1x12xf32>
    %533 = vector.broadcast %532 : vector<1x12xf32> to vector<2x12xf32>
    %534 = arith.addf %531, %533 : vector<2x12xf32>
    %cst_175 = arith.constant 5.000000e-01 : f32
    %535 = vector.broadcast %cst_175 : f32 to vector<2x12xf32>
    %536 = arith.mulf %535, %534 : vector<2x12xf32>
    %cst_176 = arith.constant 0.707106769 : f32
    %537 = vector.broadcast %cst_176 : f32 to vector<2x12xf32>
    %538 = arith.mulf %534, %537 : vector<2x12xf32>
    %539 = math.erf %538 : vector<2x12xf32>
    %cst_177 = arith.constant 1.000000e+00 : f32
    %540 = vector.broadcast %cst_177 : f32 to vector<2x12xf32>
    %541 = arith.addf %540, %539 : vector<2x12xf32>
    %542 = arith.mulf %536, %541 : vector<2x12xf32>
    %c656 = arith.constant 656 : index
    %c0_178 = arith.constant 0 : index
    %543 = vector.load %arg3[%c656, %c0_178] : memref<672x128xf32, #tpu.memory_space<vmem>>, vector<12x2xf32>
    %c60 = arith.constant 60 : index
    %c0_179 = arith.constant 0 : index
    %544 = vector.load %arg2[%c60, %c0_179] : memref<64x128xf32, #tpu.memory_space<vmem>>, vector<1x2xf32>
    %cst_180 = arith.constant dense<0.000000e+00> : vector<2x2xf32>
    %545 = tpu.matmul %542, %543, %cst_180 {dimension_numbers = #tpu.dot_dimension_numbers<[1], [0], [0], [1], [0, 0, 1, 1], [], []>} : vector<2x12xf32>, vector<12x2xf32>, vector<2x2xf32> -> vector<2x2xf32>
    %546 = vector.broadcast %544 : vector<1x2xf32> to vector<2x2xf32>
    %547 = arith.addf %545, %546 : vector<2x2xf32>
    %c0_181 = arith.constant 0 : index
    %c0_182 = arith.constant 0 : index
    %548 = vector.load %arg4[%c0_181, %c0_182] : memref<2x2xf32, #tpu.memory_space<vmem>>, vector<2x2xf32>
    tpu.vector_store %arg4[%c0_181, %c0_182], %547 {strides = array<i32>} : memref<2x2xf32, #tpu.memory_space<vmem>>, vector<2x2xf32>,
    return
  }
  func.func @transform_0(%arg0: i32) -> (i32, i32) {
    %c0_i32 = arith.constant 0 : i32
    %c0_i32_0 = arith.constant 0 : i32
    %c0_i32_1 = arith.constant 0 : i32
    return %c0_i32, %c0_i32_0 : i32, i32
  }
  func.func @transform_1(%arg0: i32) -> (i32, i32) {
    %c0_i32 = arith.constant 0 : i32
    %c0_i32_0 = arith.constant 0 : i32
    %c0_i32_1 = arith.constant 0 : i32
    return %c0_i32, %c0_i32_0 : i32, i32
  }
  func.func @transform_2(%arg0: i32) -> (i32, i32) {
    %c0_i32 = arith.constant 0 : i32
    %c0_i32_0 = arith.constant 0 : i32
    %c0_i32_1 = arith.constant 0 : i32
    return %c0_i32, %c0_i32_0 : i32, i32
  }
  func.func @transform_3(%arg0: i32) -> (i32, i32) {
    %c0_i32 = arith.constant 0 : i32
    %c0_i32_0 = arith.constant 0 : i32
    %c0_i32_1 = arith.constant 0 : i32
    return %c0_i32, %c0_i32_0 : i32, i32
  }
}

</mosaic_0001>

<llo_original>
// kernel: tsvit_forward.1
$region0: #{tsvit_forward.1}
  #allocation0 [shape = 'u32[]', space=smem, size = 0x4, offset = 0x4, fixed_abs, tag = 'smem constant byte address 0x4 - core index']
  #allocation1 [shape = 'u32[144,128]{1,0:T(1,128)}', space=vmem, size = 0x12000, scoped, tag = 'internal scratch']
  %s0 = inlined_call_operand.vmem [shape: f32[8,192], index: 0, kind: input, shape index: {}]
  %s1 = inlined_call_operand.vmem [shape: f32[64,128], index: 1, kind: input, shape index: {}]
  %s2 = inlined_call_operand.vmem [shape: f32[672,128], index: 2, kind: input, shape index: {}]
  %s3 = inlined_call_operand.hbm [shape: f32[2,2], index: 3, kind: output, shape index: {}]
  %s4 = sld [smem:[#allocation0]]
  $region22: #{tsvit_forward.1} parent=0
    _
  %s6 = ssub.s32 1, %s4
  %s7 = scalar_select 0, %s6, %s4
  $region1: #{tsvit_forward.1} parent=0
    #allocation2 [shape = 'u8[1024]{0}', space=vmem, size = 0x400, scoped, tag = 'output window, operand 0, single buffered']
    #allocation3 [shape = 's32[1]{0}', space=sflag, size = 0x4, scoped, tag = 'scoped memory for tsvit_forward.1']
    %8 = vsyncpa [#allocation3], 0
    // Predicated region
    $region2: #{tsvit_forward.1} parent=1 // pred_check
      _
    $region3: #{tsvit_forward.1} parent=1 // pred_check_branch
      %10 = sbr.rel (0) target = $region5
    $region4: #{tsvit_forward.1} parent=1 // pred_region
      _
    $region5: #{tsvit_forward.1} parent=1 // pred_fallthru
      _
    // Predicated region
    $region6: #{tsvit_forward.1} parent=1 // pred_check
      _
    $region7: #{tsvit_forward.1} parent=1 // pred_check_branch
      %12 = sbr.rel (0) target = $region9
    $region8: #{tsvit_forward.1} parent=1 // pred_region
      _
    $region9: #{tsvit_forward.1} parent=1 // pred_fallthru
      _
    // Predicated region
    $region10: #{tsvit_forward.1} parent=1 // pred_check
      _
    $region11: #{tsvit_forward.1} parent=1 // pred_check_branch
      %14 = sbr.rel (0) target = $region13
    $region12: #{tsvit_forward.1} parent=1 // pred_region
      _
    $region13: #{tsvit_forward.1} parent=1 // pred_fallthru
      _
    %v15 = vld [vmem:[%s2] sm:$0xff]
    %v16 = vld [vmem:[%s2 + $0x8] sm:$0xff]
    %v17 = vld [vmem:[%s2 + $0x10] sm:$0xff]
    %v18 = vld [vmem:[%s2 + $0x18] sm:$0xff]
    %v19 = vld [vmem:[%s2 + $0x20] sm:$0xff]
    %v20 = vld [vmem:[%s2 + $0x28] sm:$0xff]
    %v21 = vld [vmem:[%s2 + $0x30] sm:$0xff]
    %v22 = vld [vmem:[%s2 + $0x38] sm:$0xff]
    %v23 = vld [vmem:[%s2 + $0x40] sm:$0xff]
    %v24 = vld [vmem:[%s2 + $0x48] sm:$0xff]
    %v25 = vld [vmem:[%s2 + $0x50] sm:$0xff]
    %v26 = vld [vmem:[%s2 + $0x58] sm:$0xff]
    %v27 = vld [vmem:[%s2 + $0x60] sm:$0xff]
    %v28 = vld [vmem:[%s2 + $0x68] sm:$0xff]
    %v29 = vld [vmem:[%s2 + $0x70] sm:$0xff]
    %v30 = vld [vmem:[%s2 + $0x78] sm:$0xff]
    %v31 = vld [vmem:[%s2 + $0x80] sm:$0xff]
    %v32 = vld [vmem:[%s2 + $0x88] sm:$0xff]
    %v33 = vld [vmem:[%s2 + $0x90] sm:$0xff]
    %v34 = vld [vmem:[%s2 + $0x98] sm:$0xff]
    %v35 = vld [vmem:[%s2 + $0xa0] sm:$0xff]
    %v36 = vld [vmem:[%s2 + $0xa8] sm:$0xff]
    %v37 = vld [vmem:[%s2 + $0xb0] sm:$0xff]
    %v38 = vld [vmem:[%s2 + $0xb8] sm:$0xff]
    %v39 = vld [vmem:[%s1 + $0x28] sm:$0x1]
    %v40 = vld [vmem:[%s1] sm:$0xff]
    %v41 = vld [vmem:[%s0] sm:$0xff]
    %v42 = vld [vmem:[%s0 + $0x8] sm:$0xff]
    %v43 = vlaneseq
    %v44 = vshrl.u32 %v43, 7
    %v45 = vsub.s32 0, %v44
    %v46 = vrot.slane %v39, %v45
    %vm47 = vcmask 523264
    %v49 = vsel %vm47, %v42, 0
    %51 = vmatprep.subr.mxu0 0.0
    %52 = vmatpush1.msra.mxu0 %v15
    %53 = vmatprep.subr.mxu0 0.0
    %54 = vmatpush1.msra.mxu0 %v16
    %55 = vmatprep.subr.mxu0 0.0
    %56 = vmatpush1.msra.mxu0 %v17
    %57 = vmatprep.subr.mxu0 0.0
    %58 = vmatpush1.msra.mxu0 %v18
    %59 = vmatprep.subr.mxu0 0.0
    %60 = vmatpush1.msra.mxu0 %v19
    %61 = vmatprep.subr.mxu0 0.0
    %62 = vmatpush1.msra.mxu0 %v20
    %63 = vmatprep.subr.mxu0 0.0
    %64 = vmatpush1.msra.mxu0 %v21
    %65 = vmatprep.subr.mxu0 0.0
    %66 = vmatpush1.msra.mxu0 %v22
    %67 = vmatprep.subr.mxu0 0.0
    %68 = vmatpush1.msra.mxu0 %v23
    %69 = vmatprep.subr.mxu0 0.0
    %70 = vmatpush1.msra.mxu0 %v24
    %71 = vmatprep.subr.mxu0 0.0
    %72 = vmatpush1.msra.mxu0 %v25
    %73 = vmatprep.subr.mxu0 0.0
    %74 = vmatpush1.msra.mxu0 %v26
    %75 = vmatprep.subr.mxu0 0.0
    %76 = vmatpush1.msra.mxu0 %v27
    %77 = vmatprep.subr.mxu0 0.0
    %78 = vmatpush1.msra.mxu0 %v28
    %79 = vmatprep.subr.mxu0 0.0
    %80 = vmatpush1.msra.mxu0 %v29
    %81 = vmatprep.subr.mxu0 0.0
    %82 = vmatpush1.msra.mxu0 %v30
    %83 = vmatprep.subr.mxu0 0.0
    %84 = vmatpush1.msra.mxu0 %v31
    %85 = vmatprep.subr.mxu0 0.0
    %86 = vmatpush1.msra.mxu0 %v32
    %87 = vmatprep.subr.mxu0 0.0
    %88 = vmatpush1.msra.mxu0 %v33
    %89 = vmatprep.subr.mxu0 0.0
    %90 = vmatpush1.msra.mxu0 %v34
    %91 = vmatprep.subr.mxu0 0.0
    %92 = vmatpush1.msra.mxu0 %v35
    %93 = vmatprep.subr.mxu0 0.0
    %94 = vmatpush1.msra.mxu0 %v36
    %95 = vmatprep.subr.mxu0 0.0
    %96 = vmatpush1.msra.mxu0 %v37
    %97 = vmatprep.subr.mxu0 0.0
    %98 = vmatpush1.msra.mxu0 %v38
    %99 = vmatprep.subr.mxu0 0.0
    %100 = vmatpush1.msra.mxu0 0.0
    %101 = vmatprep.subr.mxu0 0.0
    %102 = vmatpush1.msra.mxu0 0.0
    %103 = vmatprep.subr.mxu0 0.0
    %104 = vmatpush1.msra.mxu0 0.0
    %105 = vmatprep.subr.mxu0 0.0
    %106 = vmatpush1.msra.mxu0 0.0
    %107 = vmatprep.subr.mxu0 0.0
    %108 = vmatpush1.msra.mxu0 0.0
    %109 = vmatprep.subr.mxu0 0.0
    %110 = vmatpush1.msra.mxu0 0.0
    %111 = vmatprep.subr.mxu0 0.0
    %112 = vmatpush1.msra.mxu0 0.0
    %113 = vmatprep.subr.mxu0 0.0
    %114 = vmatpush1.msra.mxu0 0.0
    %115 = vmatprep.mubr.f32.mxu0 %v49
    %116 = vmatmul.mubr.f32.gmra.mrb[0].mxu0 %v41
    %v117 = vpop.f32.mrb[0].mxu0
    %v118 = vadd.f32 %v46, %v117
    %v119 = vpop.f32.mrb[0].mxu0
    %120 = vdwg.mxu0
    %v121 = vadd.f32 %v118, %v40
    %v122 = vlaneseq
    %v123 = vshrl.u32 %v122, 7
    %v124 = vcvt.s32.f32 %v123
    %v125 = vlaneseq
    %v126 = vand.u32 %v125, 127
    %v127 = vcvt.s32.f32 %v126
    %v128 = vadd.f32 %v124, 0.5
    %v129 = vrcp.pop 4.0
    %v130 = vmul.f32 %v128, %v129
    %v131 = vfloor.f32 %v130
    %v132 = vadd.f32 %v127, 0.5
    %v133 = vmul.f32 %v132, %v129
    %v134 = vfloor.f32 %v133
    %vm135 = vcmp.eq.f32.partialorder %v131, %v134
    %v136 = vsel %vm135, 0.0, -1e+30
    %v137 = vld [vmem:[%s1 + $0x29] sm:$0x1]
    %v138 = vld [vmem:[%s1 + $0x2a] sm:$0x1]
    %v139 = vld [vmem:[%s1 + $0x2c] sm:$0x1]
    %v140 = vld [vmem:[%s1 + $0x2d] sm:$0x1]
    %v141 = vld [vmem:[%s1 + $0x2b] sm:$0x1]
    %v142 = vld [vmem:[%s1 + $0x2e] sm:$0x1]
    %v143 = vld [vmem:[%s1 + $0x2f] sm:$0x1]
    %v144 = vld [vmem:[%s2 + $0xc0] sm:$0xff]
    %v145 = vld [vmem:[%s2 + $0xc8] sm:$0xff]
    %v146 = vld [vmem:[%s2 + $0xd0] sm:$0xff]
    %v147 = vld [vmem:[%s2 + $0xd8] sm:$0xff]
    %v148 = vld [vmem:[%s2 + $0xe0] sm:$0xff]
    %v149 = vld [vmem:[%s2 + $0xe8] sm:$0xff]
    %v150 = vld [vmem:[%s2 + $0xf0] sm:$0xff]
    %v151 = vld [vmem:[%s2 + $0xf8] sm:$0xff]
    %v152 = vld [vmem:[%s2 + $0x100] sm:$0xff]
    %v153 = vld [vmem:[%s2 + $0x108] sm:$0xff]
    %v154 = vld [vmem:[%s2 + $0x110] sm:$0xff]
    %v155 = vld [vmem:[%s2 + $0x118] sm:$0xff]
    %v156 = vld [vmem:[%s2 + $0x120] sm:$0xff]
    %v157 = vld [vmem:[%s2 + $0x128] sm:$0xff]
    %v158 = vld [vmem:[%s2 + $0x130] sm:$0xff]
    %v159 = vld [vmem:[%s2 + $0x138] sm:$0xff]
    %v160 = vld [vmem:[%s2 + $0x140] sm:$0xff]
    %v161 = vld [vmem:[%s2 + $0x148] sm:$0xff]
    %v162 = vld [vmem:[%s2 + $0x150] sm:$0xff]
    %v163 = vld [vmem:[%s2 + $0x158] sm:$0xff]
    %vm164 = vcmask 261120
    %v165 = vsel %vm164, %v121, 0.0
    %166 = vadd.xlane.f32.xlu0 %v165
    %v167 = vpop.xlane.xlu0 %166
    %v168 = vrcp.pop 32.0
    %v169 = vmul.f32 %v167, %v168
    %v170 = vsub.f32 %v121, %v169
    %v171 = vmul.f32 %v170, %v170
    %v172 = vsel %vm164, %v171, 0.0
    %173 = vadd.xlane.f32.xlu0 %v172
    %v174 = vpop.xlane.xlu0 %173
    %v175 = vmul.f32 %v174, %v168
    %v176 = vadd.f32 %v175, 1e-05
    %v177 = vrsqrt.pop %v176
    %v178 = vmul.f32 %v170, %v177
    %v179 = vlaneseq
    %v180 = vshrl.u32 %v179, 7
    %v181 = vsub.s32 0, %v180
    %v182 = vrot.slane %v137, %v181
    %v183 = vmul.f32 %v178, %v182
    %v184 = vlaneseq
    %v185 = vshrl.u32 %v184, 7
    %v186 = vsub.s32 0, %v185
    %v187 = vrot.slane %v138, %v186
    %v188 = vadd.f32 %v183, %v187
    %v190 = vsel %vm164, %v188, 0
    %192 = vmatprep.subr.mxu0 0.0
    %193 = vmatpush1.msra.mxu0 %v144
    %194 = vmatprep.subr.mxu0 0.0
    %195 = vmatpush1.msra.mxu0 %v145
    %196 = vmatprep.subr.mxu0 0.0
    %197 = vmatpush1.msra.mxu0 %v146
    %198 = vmatprep.subr.mxu0 0.0
    %199 = vmatpush1.msra.mxu0 %v147
    %200 = vmatprep.subr.mxu0 0.0
    %201 = vmatpush1.msra.mxu0 0.0
    %202 = vmatprep.subr.mxu0 0.0
    %203 = vmatpush1.msra.mxu0 0.0
    %204 = vmatprep.subr.mxu0 0.0
    %205 = vmatpush1.msra.mxu0 0.0
    %206 = vmatprep.subr.mxu0 0.0
    %207 = vmatpush1.msra.mxu0 0.0
    %208 = vmatprep.subr.mxu0 0.0
    %209 = vmatpush1.msra.mxu0 0.0
    %210 = vmatprep.subr.mxu0 0.0
    %211 = vmatpush1.msra.mxu0 0.0
    %212 = vmatprep.subr.mxu0 0.0
    %213 = vmatpush1.msra.mxu0 0.0
    %214 = vmatprep.subr.mxu0 0.0
    %215 = vmatpush1.msra.mxu0 0.0
    %216 = vmatprep.subr.mxu0 0.0
    %217 = vmatpush1.msra.mxu0 0.0
    %218 = vmatprep.subr.mxu0 0.0
    %219 = vmatpush1.msra.mxu0 0.0
    %220 = vmatprep.subr.mxu0 0.0
    %221 = vmatpush1.msra.mxu0 0.0
    %222 = vmatprep.subr.mxu0 0.0
    %223 = vmatpush1.msra.mxu0 0.0
    %224 = vmatprep.subr.mxu0 0.0
    %225 = vmatpush1.msra.mxu0 0.0
    %226 = vmatprep.subr.mxu0 0.0
    %227 = vmatpush1.msra.mxu0 0.0
    %228 = vmatprep.subr.mxu0 0.0
    %229 = vmatpush1.msra.mxu0 0.0
    %230 = vmatprep.subr.mxu0 0.0
    %231 = vmatpush1.msra.mxu0 0.0
    %232 = vmatprep.subr.mxu0 0.0
    %233 = vmatpush1.msra.mxu0 0.0
    %234 = vmatprep.subr.mxu0 0.0
    %235 = vmatpush1.msra.mxu0 0.0
    %236 = vmatprep.subr.mxu0 0.0
    %237 = vmatpush1.msra.mxu0 0.0
    %238 = vmatprep.subr.mxu0 0.0
    %239 = vmatpush1.msra.mxu0 0.0
    %240 = vmatprep.subr.mxu0 0.0
    %241 = vmatpush1.msra.mxu0 0.0
    %242 = vmatprep.subr.mxu0 0.0
    %243 = vmatpush1.msra.mxu0 0.0
    %244 = vmatprep.subr.mxu0 0.0
    %245 = vmatpush1.msra.mxu0 0.0
    %246 = vmatprep.subr.mxu0 0.0
    %247 = vmatpush1.msra.mxu0 0.0
    %248 = vmatprep.subr.mxu0 0.0
    %249 = vmatpush1.msra.mxu0 0.0
    %250 = vmatprep.subr.mxu0 0.0
    %251 = vmatpush1.msra.mxu0 0.0
    %252 = vmatprep.subr.mxu0 0.0
    %253 = vmatpush1.msra.mxu0 0.0
    %254 = vmatprep.subr.mxu0 0.0
    %255 = vmatpush1.msra.mxu0 0.0
    %256 = vmatprep.mubr.f32.mxu0 0.0
    %257 = vmatmul.mubr.f32.gmra.mrb[0].mxu0 %v190
    %v258 = vpop.f32.mrb[0].mxu0
    %v259 = vadd.f32 0.0, %v258
    %v260 = vpop.f32.mrb[0].mxu0
    %261 = vdwg.mxu0
    %v262 = vlaneseq
    %v263 = vshrl.u32 %v262, 7
    %v264 = vsub.s32 0, %v263
    %v265 = vrot.slane %v141, %v264
    %v266 = vadd.f32 %v121, %v265
    %268 = vrot.lane.b32.xlu0 %v259, 96
    %v269 = vpop.permute.xlu0 %268
    %vm270 = vcmask 64512
    %v271 = vsel %vm270, %v259, 0
    %v273 = vsel %vm270, %v269, 0
    %275 = vmatprep.subr.mxu0 0.0
    %276 = vmatpush1.xpose.msra.mxu0 %v273
    %277 = vmatprep.subr.mxu0 0.0
    %278 = vmatpush1.xpose.msra.mxu0 0.0
    %279 = vmatprep.subr.mxu0 0.0
    %280 = vmatpush1.xpose.msra.mxu0 0.0
    %281 = vmatprep.subr.mxu0 0.0
    %282 = vmatpush1.xpose.msra.mxu0 0.0
    %283 = vmatprep.subr.mxu0 0.0
    %284 = vmatpush1.xpose.msra.mxu0 0.0
    %285 = vmatprep.subr.mxu0 0.0
    %286 = vmatpush1.xpose.msra.mxu0 0.0
    %287 = vmatprep.subr.mxu0 0.0
    %288 = vmatpush1.xpose.msra.mxu0 0.0
    %289 = vmatprep.subr.mxu0 0.0
    %290 = vmatpush1.xpose.msra.mxu0 0.0
    %291 = vmatprep.subr.mxu0 0.0
    %292 = vmatpush1.xpose.msra.mxu0 0.0
    %293 = vmatprep.subr.mxu0 0.0
    %294 = vmatpush1.xpose.msra.mxu0 0.0
    %295 = vmatprep.subr.mxu0 0.0
    %296 = vmatpush1.xpose.msra.mxu0 0.0
    %297 = vmatprep.subr.mxu0 0.0
    %298 = vmatpush1.xpose.msra.mxu0 0.0
    %299 = vmatprep.subr.mxu0 0.0
    %300 = vmatpush1.xpose.msra.mxu0 0.0
    %301 = vmatprep.subr.mxu0 0.0
    %302 = vmatpush1.xpose.msra.mxu0 0.0
    %303 = vmatprep.subr.mxu0 0.0
    %304 = vmatpush1.xpose.msra.mxu0 0.0
    %305 = vmatprep.subr.mxu0 0.0
    %306 = vmatpush1.xpose.msra.mxu0 0.0
    %307 = vmatprep.subr.mxu0 0.0
    %308 = vmatpush1.xpose.msra.mxu0 0.0
    %309 = vmatprep.subr.mxu0 0.0
    %310 = vmatpush1.xpose.msra.mxu0 0.0
    %311 = vmatprep.subr.mxu0 0.0
    %312 = vmatpush1.xpose.msra.mxu0 0.0
    %313 = vmatprep.subr.mxu0 0.0
    %314 = vmatpush1.xpose.msra.mxu0 0.0
    %315 = vmatprep.subr.mxu0 0.0
    %316 = vmatpush1.xpose.msra.mxu0 0.0
    %317 = vmatprep.subr.mxu0 0.0
    %318 = vmatpush1.xpose.msra.mxu0 0.0
    %319 = vmatprep.subr.mxu0 0.0
    %320 = vmatpush1.xpose.msra.mxu0 0.0
    %321 = vmatprep.subr.mxu0 0.0
    %322 = vmatpush1.xpose.msra.mxu0 0.0
    %323 = vmatprep.subr.mxu0 0.0
    %324 = vmatpush1.xpose.msra.mxu0 0.0
    %325 = vmatprep.subr.mxu0 0.0
    %326 = vmatpush1.xpose.msra.mxu0 0.0
    %327 = vmatprep.subr.mxu0 0.0
    %328 = vmatpush1.xpose.msra.mxu0 0.0
    %329 = vmatprep.subr.mxu0 0.0
    %330 = vmatpush1.xpose.msra.mxu0 0.0
    %331 = vmatprep.subr.mxu0 0.0
    %332 = vmatpush1.xpose.msra.mxu0 0.0
    %333 = vmatprep.subr.mxu0 0.0
    %334 = vmatpush1.xpose.msra.mxu0 0.0
    %335 = vmatprep.subr.mxu0 0.0
    %336 = vmatpush1.xpose.msra.mxu0 0.0
    %337 = vmatprep.subr.mxu0 0.0
    %338 = vmatpush1.xpose.msra.mxu0 0.0
    %339 = vmatprep.mubr.f32.mxu0 0.0
    %340 = vmatmul.mubr.f32.gmra.mrb[0].mxu0 %v271
    %v341 = vpop.f32.mrb[0].mxu0
    %v342 = vadd.f32 0.0, %v341
    %v343 = vpop.f32.mrb[0].mxu0
    %344 = vdwg.mxu0
    %v345 = vmul.f32 %v342, 0.35355338
    %v346 = vadd.f32 %v345, %v136
    %v347 = vsel %vm270, %v346, -inf
    %348 = vmax.xlane.f32.xlu0 %v347
    %v349 = vpop.xlane.xlu0 %348
    %v350 = vsub.f32 %v346, %v349
    %v351 = vmul.f32 %v350, 1.442695
    %v352 = vpow.pop %v351
    %v353 = vsel %vm270, %v352, 0.0
    %354 = vadd.xlane.f32.xlu0 %v353
    %v355 = vpop.xlane.xlu0 %354
    %v356 = vrcp.pop %v355
    %v357 = vmul.f32 %v352, %v356
    %358 = vrot.lane.b32.xlu0 %v259, 64
    %v359 = vpop.permute.xlu0 %358
    %v362 = vsel %vm270, %v357, 0
    %364 = vmatprep.subr.mxu0 0.0
    %365 = vmatpush1.msra.mxu0 %v359
    %366 = vmatprep.subr.mxu0 0.0
    %367 = vmatpush1.msra.mxu0 0.0
    %368 = vmatprep.subr.mxu0 0.0
    %369 = vmatpush1.msra.mxu0 0.0
    %370 = vmatprep.subr.mxu0 0.0
    %371 = vmatpush1.msra.mxu0 0.0
    %372 = vmatprep.subr.mxu0 0.0
    %373 = vmatpush1.msra.mxu0 0.0
    %374 = vmatprep.subr.mxu0 0.0
    %375 = vmatpush1.msra.mxu0 0.0
    %376 = vmatprep.subr.mxu0 0.0
    %377 = vmatpush1.msra.mxu0 0.0
    %378 = vmatprep.subr.mxu0 0.0
    %379 = vmatpush1.msra.mxu0 0.0
    %380 = vmatprep.subr.mxu0 0.0
    %381 = vmatpush1.msra.mxu0 0.0
    %382 = vmatprep.subr.mxu0 0.0
    %383 = vmatpush1.msra.mxu0 0.0
    %384 = vmatprep.subr.mxu0 0.0
    %385 = vmatpush1.msra.mxu0 0.0
    %386 = vmatprep.subr.mxu0 0.0
    %387 = vmatpush1.msra.mxu0 0.0
    %388 = vmatprep.subr.mxu0 0.0
    %389 = vmatpush1.msra.mxu0 0.0
    %390 = vmatprep.subr.mxu0 0.0
    %391 = vmatpush1.msra.mxu0 0.0
    %392 = vmatprep.subr.mxu0 0.0
    %393 = vmatpush1.msra.mxu0 0.0
    %394 = vmatprep.subr.mxu0 0.0
    %395 = vmatpush1.msra.mxu0 0.0
    %396 = vmatprep.subr.mxu0 0.0
    %397 = vmatpush1.msra.mxu0 0.0
    %398 = vmatprep.subr.mxu0 0.0
    %399 = vmatpush1.msra.mxu0 0.0
    %400 = vmatprep.subr.mxu0 0.0
    %401 = vmatpush1.msra.mxu0 0.0
    %402 = vmatprep.subr.mxu0 0.0
    %403 = vmatpush1.msra.mxu0 0.0
    %404 = vmatprep.subr.mxu0 0.0
    %405 = vmatpush1.msra.mxu0 0.0
    %406 = vmatprep.subr.mxu0 0.0
    %407 = vmatpush1.msra.mxu0 0.0
    %408 = vmatprep.subr.mxu0 0.0
    %409 = vmatpush1.msra.mxu0 0.0
    %410 = vmatprep.subr.mxu0 0.0
    %411 = vmatpush1.msra.mxu0 0.0
    %412 = vmatprep.subr.mxu0 0.0
    %413 = vmatpush1.msra.mxu0 0.0
    %414 = vmatprep.subr.mxu0 0.0
    %415 = vmatpush1.msra.mxu0 0.0
    %416 = vmatprep.subr.mxu0 0.0
    %417 = vmatpush1.msra.mxu0 0.0
    %418 = vmatprep.subr.mxu0 0.0
    %419 = vmatpush1.msra.mxu0 0.0
    %420 = vmatprep.subr.mxu0 0.0
    %421 = vmatpush1.msra.mxu0 0.0
    %422 = vmatprep.subr.mxu0 0.0
    %423 = vmatpush1.msra.mxu0 0.0
    %424 = vmatprep.subr.mxu0 0.0
    %425 = vmatpush1.msra.mxu0 0.0
    %426 = vmatprep.subr.mxu0 0.0
    %427 = vmatpush1.msra.mxu0 0.0
    %428 = vmatprep.mubr.f32.mxu0 0.0
    %429 = vmatmul.mubr.f32.gmra.mrb[0].mxu0 %v362
    %v430 = vpop.f32.mrb[0].mxu0
    %v431 = vadd.f32 0.0, %v430
    %v432 = vpop.f32.mrb[0].mxu0
    %433 = vdwg.mxu0
    %v435 = vsel %vm270, %v431, 0
    %437 = vmatprep.subr.mxu0 0.0
    %438 = vmatpush1.msra.mxu0 %v148
    %439 = vmatprep.subr.mxu0 0.0
    %440 = vmatpush1.msra.mxu0 0.0
    %441 = vmatprep.subr.mxu0 0.0
    %442 = vmatpush1.msra.mxu0 0.0
    %443 = vmatprep.subr.mxu0 0.0
    %444 = vmatpush1.msra.mxu0 0.0
    %445 = vmatprep.subr.mxu0 0.0
    %446 = vmatpush1.msra.mxu0 0.0
    %447 = vmatprep.subr.mxu0 0.0
    %448 = vmatpush1.msra.mxu0 0.0
    %449 = vmatprep.subr.mxu0 0.0
    %450 = vmatpush1.msra.mxu0 0.0
    %451 = vmatprep.subr.mxu0 0.0
    %452 = vmatpush1.msra.mxu0 0.0
    %453 = vmatprep.subr.mxu0 0.0
    %454 = vmatpush1.msra.mxu0 0.0
    %455 = vmatprep.subr.mxu0 0.0
    %456 = vmatpush1.msra.mxu0 0.0
    %457 = vmatprep.subr.mxu0 0.0
    %458 = vmatpush1.msra.mxu0 0.0
    %459 = vmatprep.subr.mxu0 0.0
    %460 = vmatpush1.msra.mxu0 0.0
    %461 = vmatprep.subr.mxu0 0.0
    %462 = vmatpush1.msra.mxu0 0.0
    %463 = vmatprep.subr.mxu0 0.0
    %464 = vmatpush1.msra.mxu0 0.0
    %465 = vmatprep.subr.mxu0 0.0
    %466 = vmatpush1.msra.mxu0 0.0
    %467 = vmatprep.subr.mxu0 0.0
    %468 = vmatpush1.msra.mxu0 0.0
    %469 = vmatprep.subr.mxu0 0.0
    %470 = vmatpush1.msra.mxu0 0.0
    %471 = vmatprep.subr.mxu0 0.0
    %472 = vmatpush1.msra.mxu0 0.0
    %473 = vmatprep.subr.mxu0 0.0
    %474 = vmatpush1.msra.mxu0 0.0
    %475 = vmatprep.subr.mxu0 0.0
    %476 = vmatpush1.msra.mxu0 0.0
    %477 = vmatprep.subr.mxu0 0.0
    %478 = vmatpush1.msra.mxu0 0.0
    %479 = vmatprep.subr.mxu0 0.0
    %480 = vmatpush1.msra.mxu0 0.0
    %481 = vmatprep.subr.mxu0 0.0
    %482 = vmatpush1.msra.mxu0 0.0
    %483 = vmatprep.subr.mxu0 0.0
    %484 = vmatpush1.msra.mxu0 0.0
    %485 = vmatprep.subr.mxu0 0.0
    %486 = vmatpush1.msra.mxu0 0.0
    %487 = vmatprep.subr.mxu0 0.0
    %488 = vmatpush1.msra.mxu0 0.0
    %489 = vmatprep.subr.mxu0 0.0
    %490 = vmatpush1.msra.mxu0 0.0
    %491 = vmatprep.subr.mxu0 0.0
    %492 = vmatpush1.msra.mxu0 0.0
    %493 = vmatprep.subr.mxu0 0.0
    %494 = vmatpush1.msra.mxu0 0.0
    %495 = vmatprep.subr.mxu0 0.0
    %496 = vmatpush1.msra.mxu0 0.0
    %497 = vmatprep.subr.mxu0 0.0
    %498 = vmatpush1.msra.mxu0 0.0
    %499 = vmatprep.subr.mxu0 0.0
    %500 = vmatpush1.msra.mxu0 0.0
    %501 = vmatprep.mubr.f32.mxu0 0.0
    %502 = vmatmul.mubr.f32.gmra.mrb[0].mxu0 %v435
    %v503 = vpop.f32.mrb[0].mxu0
    %v504 = vadd.f32 0.0, %v503
    %v505 = vpop.f32.mrb[0].mxu0
    %506 = vdwg.mxu0
    %v507 = vadd.f32 %v266, %v504
    %508 = vrot.lane.b32.xlu0 %v259, 120
    %v509 = vpop.permute.xlu0 %508
    %510 = vrot.lane.b32.xlu0 %v259, 88
    %v511 = vpop.permute.xlu0 %510
    %v512 = vsel %vm270, %v509, 0
    %v514 = vsel %vm270, %v511, 0
    %516 = vmatprep.subr.mxu0 0.0
    %517 = vmatpush1.xpose.msra.mxu0 %v514
    %518 = vmatprep.subr.mxu0 0.0
    %519 = vmatpush1.xpose.msra.mxu0 0.0
    %520 = vmatprep.subr.mxu0 0.0
    %521 = vmatpush1.xpose.msra.mxu0 0.0
    %522 = vmatprep.subr.mxu0 0.0
    %523 = vmatpush1.xpose.msra.mxu0 0.0
    %524 = vmatprep.subr.mxu0 0.0
    %525 = vmatpush1.xpose.msra.mxu0 0.0
    %526 = vmatprep.subr.mxu0 0.0
    %527 = vmatpush1.xpose.msra.mxu0 0.0
    %528 = vmatprep.subr.mxu0 0.0
    %529 = vmatpush1.xpose.msra.mxu0 0.0
    %530 = vmatprep.subr.mxu0 0.0
    %531 = vmatpush1.xpose.msra.mxu0 0.0
    %532 = vmatprep.subr.mxu0 0.0
    %533 = vmatpush1.xpose.msra.mxu0 0.0
    %534 = vmatprep.subr.mxu0 0.0
    %535 = vmatpush1.xpose.msra.mxu0 0.0
    %536 = vmatprep.subr.mxu0 0.0
    %537 = vmatpush1.xpose.msra.mxu0 0.0
    %538 = vmatprep.subr.mxu0 0.0
    %539 = vmatpush1.xpose.msra.mxu0 0.0
    %540 = vmatprep.subr.mxu0 0.0
    %541 = vmatpush1.xpose.msra.mxu0 0.0
    %542 = vmatprep.subr.mxu0 0.0
    %543 = vmatpush1.xpose.msra.mxu0 0.0
    %544 = vmatprep.subr.mxu0 0.0
    %545 = vmatpush1.xpose.msra.mxu0 0.0
    %546 = vmatprep.subr.mxu0 0.0
    %547 = vmatpush1.xpose.msra.mxu0 0.0
    %548 = vmatprep.subr.mxu0 0.0
    %549 = vmatpush1.xpose.msra.mxu0 0.0
    %550 = vmatprep.subr.mxu0 0.0
    %551 = vmatpush1.xpose.msra.mxu0 0.0
    %552 = vmatprep.subr.mxu0 0.0
    %553 = vmatpush1.xpose.msra.mxu0 0.0
    %554 = vmatprep.subr.mxu0 0.0
    %555 = vmatpush1.xpose.msra.mxu0 0.0
    %556 = vmatprep.subr.mxu0 0.0
    %557 = vmatpush1.xpose.msra.mxu0 0.0
    %558 = vmatprep.subr.mxu0 0.0
    %559 = vmatpush1.xpose.msra.mxu0 0.0
    %560 = vmatprep.subr.mxu0 0.0
    %561 = vmatpush1.xpose.msra.mxu0 0.0
    %562 = vmatprep.subr.mxu0 0.0
    %563 = vmatpush1.xpose.msra.mxu0 0.0
    %564 = vmatprep.subr.mxu0 0.0
    %565 = vmatpush1.xpose.msra.mxu0 0.0
    %566 = vmatprep.subr.mxu0 0.0
    %567 = vmatpush1.xpose.msra.mxu0 0.0
    %568 = vmatprep.subr.mxu0 0.0
    %569 = vmatpush1.xpose.msra.mxu0 0.0
    %570 = vmatprep.subr.mxu0 0.0
    %571 = vmatpush1.xpose.msra.mxu0 0.0
    %572 = vmatprep.subr.mxu0 0.0
    %573 = vmatpush1.xpose.msra.mxu0 0.0
    %574 = vmatprep.subr.mxu0 0.0
    %575 = vmatpush1.xpose.msra.mxu0 0.0
    %576 = vmatprep.subr.mxu0 0.0
    %577 = vmatpush1.xpose.msra.mxu0 0.0
    %578 = vmatprep.subr.mxu0 0.0
    %579 = vmatpush1.xpose.msra.mxu0 0.0
    %580 = vmatprep.mubr.f32.mxu0 0.0
    %581 = vmatmul.mubr.f32.gmra.mrb[0].mxu0 %v512
    %v582 = vpop.f32.mrb[0].mxu0
    %v583 = vadd.f32 0.0, %v582
    %v584 = vpop.f32.mrb[0].mxu0
    %585 = vdwg.mxu0
    %v586 = vmul.f32 %v583, 0.35355338
    %v587 = vadd.f32 %v586, %v136
    %v588 = vsel %vm270, %v587, -inf
    %589 = vmax.xlane.f32.xlu0 %v588
    %v590 = vpop.xlane.xlu0 %589
    %v591 = vsub.f32 %v587, %v590
    %v592 = vmul.f32 %v591, 1.442695
    %v593 = vpow.pop %v592
    %v594 = vsel %vm270, %v593, 0.0
    %595 = vadd.xlane.f32.xlu0 %v594
    %v596 = vpop.xlane.xlu0 %595
    %v597 = vrcp.pop %v596
    %v598 = vmul.f32 %v593, %v597
    %599 = vrot.lane.b32.xlu0 %v259, 56
    %v600 = vpop.permute.xlu0 %599
    %v603 = vsel %vm270, %v598, 0
    %605 = vmatprep.subr.mxu0 0.0
    %606 = vmatpush1.msra.mxu0 %v600
    %607 = vmatprep.subr.mxu0 0.0
    %608 = vmatpush1.msra.mxu0 0.0
    %609 = vmatprep.subr.mxu0 0.0
    %610 = vmatpush1.msra.mxu0 0.0
    %611 = vmatprep.subr.mxu0 0.0
    %612 = vmatpush1.msra.mxu0 0.0
    %613 = vmatprep.subr.mxu0 0.0
    %614 = vmatpush1.msra.mxu0 0.0
    %615 = vmatprep.subr.mxu0 0.0
    %616 = vmatpush1.msra.mxu0 0.0
    %617 = vmatprep.subr.mxu0 0.0
    %618 = vmatpush1.msra.mxu0 0.0
    %619 = vmatprep.subr.mxu0 0.0
    %620 = vmatpush1.msra.mxu0 0.0
    %621 = vmatprep.subr.mxu0 0.0
    %622 = vmatpush1.msra.mxu0 0.0
    %623 = vmatprep.subr.mxu0 0.0
    %624 = vmatpush1.msra.mxu0 0.0
    %625 = vmatprep.subr.mxu0 0.0
    %626 = vmatpush1.msra.mxu0 0.0
    %627 = vmatprep.subr.mxu0 0.0
    %628 = vmatpush1.msra.mxu0 0.0
    %629 = vmatprep.subr.mxu0 0.0
    %630 = vmatpush1.msra.mxu0 0.0
    %631 = vmatprep.subr.mxu0 0.0
    %632 = vmatpush1.msra.mxu0 0.0
    %633 = vmatprep.subr.mxu0 0.0
    %634 = vmatpush1.msra.mxu0 0.0
    %635 = vmatprep.subr.mxu0 0.0
    %636 = vmatpush1.msra.mxu0 0.0
    %637 = vmatprep.subr.mxu0 0.0
    %638 = vmatpush1.msra.mxu0 0.0
    %639 = vmatprep.subr.mxu0 0.0
    %640 = vmatpush1.msra.mxu0 0.0
    %641 = vmatprep.subr.mxu0 0.0
    %642 = vmatpush1.msra.mxu0 0.0
    %643 = vmatprep.subr.mxu0 0.0
    %644 = vmatpush1.msra.mxu0 0.0
    %645 = vmatprep.subr.mxu0 0.0
    %646 = vmatpush1.msra.mxu0 0.0
    %647 = vmatprep.subr.mxu0 0.0
    %648 = vmatpush1.msra.mxu0 0.0
    %649 = vmatprep.subr.mxu0 0.0
    %650 = vmatpush1.msra.mxu0 0.0
    %651 = vmatprep.subr.mxu0 0.0
    %652 = vmatpush1.msra.mxu0 0.0
    %653 = vmatprep.subr.mxu0 0.0
    %654 = vmatpush1.msra.mxu0 0.0
    %655 = vmatprep.subr.mxu0 0.0
    %656 = vmatpush1.msra.mxu0 0.0
    %657 = vmatprep.subr.mxu0 0.0
    %658 = vmatpush1.msra.mxu0 0.0
    %659 = vmatprep.subr.mxu0 0.0
    %660 = vmatpush1.msra.mxu0 0.0
    %661 = vmatprep.subr.mxu0 0.0
    %662 = vmatpush1.msra.mxu0 0.0
    %663 = vmatprep.subr.mxu0 0.0
    %664 = vmatpush1.msra.mxu0 0.0
    %665 = vmatprep.subr.mxu0 0.0
    %666 = vmatpush1.msra.mxu0 0.0
    %667 = vmatprep.subr.mxu0 0.0
    %668 = vmatpush1.msra.mxu0 0.0
    %669 = vmatprep.mubr.f32.mxu0 0.0
    %670 = vmatmul.mubr.f32.gmra.mrb[0].mxu0 %v603
    %v671 = vpop.f32.mrb[0].mxu0
    %v672 = vadd.f32 0.0, %v671
    %v673 = vpop.f32.mrb[0].mxu0
    %674 = vdwg.mxu0
    %v676 = vsel %vm270, %v672, 0
    %678 = vmatprep.subr.mxu0 0.0
    %679 = vmatpush1.msra.mxu0 %v149
    %680 = vmatprep.subr.mxu0 0.0
    %681 = vmatpush1.msra.mxu0 0.0
    %682 = vmatprep.subr.mxu0 0.0
    %683 = vmatpush1.msra.mxu0 0.0
    %684 = vmatprep.subr.mxu0 0.0
    %685 = vmatpush1.msra.mxu0 0.0
    %686 = vmatprep.subr.mxu0 0.0
    %687 = vmatpush1.msra.mxu0 0.0
    %688 = vmatprep.subr.mxu0 0.0
    %689 = vmatpush1.msra.mxu0 0.0
    %690 = vmatprep.subr.mxu0 0.0
    %691 = vmatpush1.msra.mxu0 0.0
    %692 = vmatprep.subr.mxu0 0.0
    %693 = vmatpush1.msra.mxu0 0.0
    %694 = vmatprep.subr.mxu0 0.0
    %695 = vmatpush1.msra.mxu0 0.0
    %696 = vmatprep.subr.mxu0 0.0
    %697 = vmatpush1.msra.mxu0 0.0
    %698 = vmatprep.subr.mxu0 0.0
    %699 = vmatpush1.msra.mxu0 0.0
    %700 = vmatprep.subr.mxu0 0.0
    %701 = vmatpush1.msra.mxu0 0.0
    %702 = vmatprep.subr.mxu0 0.0
    %703 = vmatpush1.msra.mxu0 0.0
    %704 = vmatprep.subr.mxu0 0.0
    %705 = vmatpush1.msra.mxu0 0.0
    %706 = vmatprep.subr.mxu0 0.0
    %707 = vmatpush1.msra.mxu0 0.0
    %708 = vmatprep.subr.mxu0 0.0
    %709 = vmatpush1.msra.mxu0 0.0
    %710 = vmatprep.subr.mxu0 0.0
    %711 = vmatpush1.msra.mxu0 0.0
    %712 = vmatprep.subr.mxu0 0.0
    %713 = vmatpush1.msra.mxu0 0.0
    %714 = vmatprep.subr.mxu0 0.0
    %715 = vmatpush1.msra.mxu0 0.0
    %716 = vmatprep.subr.mxu0 0.0
    %717 = vmatpush1.msra.mxu0 0.0
    %718 = vmatprep.subr.mxu0 0.0
    %719 = vmatpush1.msra.mxu0 0.0
    %720 = vmatprep.subr.mxu0 0.0
    %721 = vmatpush1.msra.mxu0 0.0
    %722 = vmatprep.subr.mxu0 0.0
    %723 = vmatpush1.msra.mxu0 0.0
    %724 = vmatprep.subr.mxu0 0.0
    %725 = vmatpush1.msra.mxu0 0.0
    %726 = vmatprep.subr.mxu0 0.0
    %727 = vmatpush1.msra.mxu0 0.0
    %728 = vmatprep.subr.mxu0 0.0
    %729 = vmatpush1.msra.mxu0 0.0
    %730 = vmatprep.subr.mxu0 0.0
    %731 = vmatpush1.msra.mxu0 0.0
    %732 = vmatprep.subr.mxu0 0.0
    %733 = vmatpush1.msra.mxu0 0.0
    %734 = vmatprep.subr.mxu0 0.0
    %735 = vmatpush1.msra.mxu0 0.0
    %736 = vmatprep.subr.mxu0 0.0
    %737 = vmatpush1.msra.mxu0 0.0
    %738 = vmatprep.subr.mxu0 0.0
    %739 = vmatpush1.msra.mxu0 0.0
    %740 = vmatprep.subr.mxu0 0.0
    %741 = vmatpush1.msra.mxu0 0.0
    %742 = vmatprep.mubr.f32.mxu0 0.0
    %743 = vmatmul.mubr.f32.gmra.mrb[0].mxu0 %v676
    %v744 = vpop.f32.mrb[0].mxu0
    %v745 = vadd.f32 0.0, %v744
    %v746 = vpop.f32.mrb[0].mxu0
    %747 = vdwg.mxu0
    %v748 = vadd.f32 %v507, %v745
    %749 = vrot.lane.b32.xlu0 %v259, 112
    %v750 = vpop.permute.xlu0 %749
    %751 = vrot.lane.b32.xlu0 %v259, 80
    %v752 = vpop.permute.xlu0 %751
    %v753 = vsel %vm270, %v750, 0
    %v755 = vsel %vm270, %v752, 0
    %757 = vmatprep.subr.mxu0 0.0
    %758 = vmatpush1.xpose.msra.mxu0 %v755
    %759 = vmatprep.subr.mxu0 0.0
    %760 = vmatpush1.xpose.msra.mxu0 0.0
    %761 = vmatprep.subr.mxu0 0.0
    %762 = vmatpush1.xpose.msra.mxu0 0.0
    %763 = vmatprep.subr.mxu0 0.0
    %764 = vmatpush1.xpose.msra.mxu0 0.0
    %765 = vmatprep.subr.mxu0 0.0
    %766 = vmatpush1.xpose.msra.mxu0 0.0
    %767 = vmatprep.subr.mxu0 0.0
    %768 = vmatpush1.xpose.msra.mxu0 0.0
    %769 = vmatprep.subr.mxu0 0.0
    %770 = vmatpush1.xpose.msra.mxu0 0.0
    %771 = vmatprep.subr.mxu0 0.0
    %772 = vmatpush1.xpose.msra.mxu0 0.0
    %773 = vmatprep.subr.mxu0 0.0
    %774 = vmatpush1.xpose.msra.mxu0 0.0
    %775 = vmatprep.subr.mxu0 0.0
    %776 = vmatpush1.xpose.msra.mxu0 0.0
    %777 = vmatprep.subr.mxu0 0.0
    %778 = vmatpush1.xpose.msra.mxu0 0.0
    %779 = vmatprep.subr.mxu0 0.0
    %780 = vmatpush1.xpose.msra.mxu0 0.0
    %781 = vmatprep.subr.mxu0 0.0
    %782 = vmatpush1.xpose.msra.mxu0 0.0
    %783 = vmatprep.subr.mxu0 0.0
    %784 = vmatpush1.xpose.msra.mxu0 0.0
    %785 = vmatprep.subr.mxu0 0.0
    %786 = vmatpush1.xpose.msra.mxu0 0.0
    %787 = vmatprep.subr.mxu0 0.0
    %788 = vmatpush1.xpose.msra.mxu0 0.0
    %789 = vmatprep.subr.mxu0 0.0
    %790 = vmatpush1.xpose.msra.mxu0 0.0
    %791 = vmatprep.subr.mxu0 0.0
    %792 = vmatpush1.xpose.msra.mxu0 0.0
    %793 = vmatprep.subr.mxu0 0.0
    %794 = vmatpush1.xpose.msra.mxu0 0.0
    %795 = vmatprep.subr.mxu0 0.0
    %796 = vmatpush1.xpose.msra.mxu0 0.0
    %797 = vmatprep.subr.mxu0 0.0
    %798 = vmatpush1.xpose.msra.mxu0 0.0
    %799 = vmatprep.subr.mxu0 0.0
    %800 = vmatpush1.xpose.msra.mxu0 0.0
    %801 = vmatprep.subr.mxu0 0.0
    %802 = vmatpush1.xpose.msra.mxu0 0.0
    %803 = vmatprep.subr.mxu0 0.0
    %804 = vmatpush1.xpose.msra.mxu0 0.0
    %805 = vmatprep.subr.mxu0 0.0
    %806 = vmatpush1.xpose.msra.mxu0 0.0
    %807 = vmatprep.subr.mxu0 0.0
    %808 = vmatpush1.xpose.msra.mxu0 0.0
    %809 = vmatprep.subr.mxu0 0.0
    %810 = vmatpush1.xpose.msra.mxu0 0.0
    %811 = vmatprep.subr.mxu0 0.0
    %812 = vmatpush1.xpose.msra.mxu0 0.0
    %813 = vmatprep.subr.mxu0 0.0
    %814 = vmatpush1.xpose.msra.mxu0 0.0
    %815 = vmatprep.subr.mxu0 0.0
    %816 = vmatpush1.xpose.msra.mxu0 0.0
    %817 = vmatprep.subr.mxu0 0.0
    %818 = vmatpush1.xpose.msra.mxu0 0.0
    %819 = vmatprep.subr.mxu0 0.0
    %820 = vmatpush1.xpose.msra.mxu0 0.0
    %821 = vmatprep.mubr.f32.mxu0 0.0
    %822 = vmatmul.mubr.f32.gmra.mrb[0].mxu0 %v753
    %v823 = vpop.f32.mrb[0].mxu0
    %v824 = vadd.f32 0.0, %v823
    %v825 = vpop.f32.mrb[0].mxu0
    %826 = vdwg.mxu0
    %v827 = vmul.f32 %v824, 0.35355338
    %v828 = vadd.f32 %v827, %v136
    %v829 = vsel %vm270, %v828, -inf
    %830 = vmax.xlane.f32.xlu0 %v829
    %v831 = vpop.xlane.xlu0 %830
    %v832 = vsub.f32 %v828, %v831
    %v833 = vmul.f32 %v832, 1.442695
    %v834 = vpow.pop %v833
    %v835 = vsel %vm270, %v834, 0.0
    %836 = vadd.xlane.f32.xlu0 %v835
    %v837 = vpop.xlane.xlu0 %836
    %v838 = vrcp.pop %v837
    %v839 = vmul.f32 %v834, %v838
    %840 = vrot.lane.b32.xlu0 %v259, 48
    %v841 = vpop.permute.xlu0 %840
    %v844 = vsel %vm270, %v839, 0
    %846 = vmatprep.subr.mxu0 0.0
    %847 = vmatpush1.msra.mxu0 %v841
    %848 = vmatprep.subr.mxu0 0.0
    %849 = vmatpush1.msra.mxu0 0.0
    %850 = vmatprep.subr.mxu0 0.0
    %851 = vmatpush1.msra.mxu0 0.0
    %852 = vmatprep.subr.mxu0 0.0
    %853 = vmatpush1.msra.mxu0 0.0
    %854 = vmatprep.subr.mxu0 0.0
    %855 = vmatpush1.msra.mxu0 0.0
    %856 = vmatprep.subr.mxu0 0.0
    %857 = vmatpush1.msra.mxu0 0.0
    %858 = vmatprep.subr.mxu0 0.0
    %859 = vmatpush1.msra.mxu0 0.0
    %860 = vmatprep.subr.mxu0 0.0
    %861 = vmatpush1.msra.mxu0 0.0
    %862 = vmatprep.subr.mxu0 0.0
    %863 = vmatpush1.msra.mxu0 0.0
    %864 = vmatprep.subr.mxu0 0.0
    %865 = vmatpush1.msra.mxu0 0.0
    %866 = vmatprep.subr.mxu0 0.0
    %867 = vmatpush1.msra.mxu0 0.0
    %868 = vmatprep.subr.mxu0 0.0
    %869 = vmatpush1.msra.mxu0 0.0
    %870 = vmatprep.subr.mxu0 0.0
    %871 = vmatpush1.msra.mxu0 0.0
    %872 = vmatprep.subr.mxu0 0.0
    %873 = vmatpush1.msra.mxu0 0.0
    %874 = vmatprep.subr.mxu0 0.0
    %875 = vmatpush1.msra.mxu0 0.0
    %876 = vmatprep.subr.mxu0 0.0
    %877 = vmatpush1.msra.mxu0 0.0
    %878 = vmatprep.subr.mxu0 0.0
    %879 = vmatpush1.msra.mxu0 0.0
    %880 = vmatprep.subr.mxu0 0.0
    %881 = vmatpush1.msra.mxu0 0.0
    %882 = vmatprep.subr.mxu0 0.0
    %883 = vmatpush1.msra.mxu0 0.0
    %884 = vmatprep.subr.mxu0 0.0
    %885 = vmatpush1.msra.mxu0 0.0
    %886 = vmatprep.subr.mxu0 0.0
    %887 = vmatpush1.msra.mxu0 0.0
    %888 = vmatprep.subr.mxu0 0.0
    %889 = vmatpush1.msra.mxu0 0.0
    %890 = vmatprep.subr.mxu0 0.0
    %891 = vmatpush1.msra.mxu0 0.0
    %892 = vmatprep.subr.mxu0 0.0
    %893 = vmatpush1.msra.mxu0 0.0
    %894 = vmatprep.subr.mxu0 0.0
    %895 = vmatpush1.msra.mxu0 0.0
    %896 = vmatprep.subr.mxu0 0.0
    %897 = vmatpush1.msra.mxu0 0.0
    %898 = vmatprep.subr.mxu0 0.0
    %899 = vmatpush1.msra.mxu0 0.0
    %900 = vmatprep.subr.mxu0 0.0
    %901 = vmatpush1.msra.mxu0 0.0
    %902 = vmatprep.subr.mxu0 0.0
    %903 = vmatpush1.msra.mxu0 0.0
    %904 = vmatprep.subr.mxu0 0.0
    %905 = vmatpush1.msra.mxu0 0.0
    %906 = vmatprep.subr.mxu0 0.0
    %907 = vmatpush1.msra.mxu0 0.0
    %908 = vmatprep.subr.mxu0 0.0
    %909 = vmatpush1.msra.mxu0 0.0
    %910 = vmatprep.mubr.f32.mxu0 0.0
    %911 = vmatmul.mubr.f32.gmra.mrb[0].mxu0 %v844
    %v912 = vpop.f32.mrb[0].mxu0
    %v913 = vadd.f32 0.0, %v912
    %v914 = vpop.f32.mrb[0].mxu0
    %915 = vdwg.mxu0
    %v917 = vsel %vm270, %v913, 0
    %919 = vmatprep.subr.mxu0 0.0
    %920 = vmatpush1.msra.mxu0 %v150
    %921 = vmatprep.subr.mxu0 0.0
    %922 = vmatpush1.msra.mxu0 0.0
    %923 = vmatprep.subr.mxu0 0.0
    %924 = vmatpush1.msra.mxu0 0.0
    %925 = vmatprep.subr.mxu0 0.0
    %926 = vmatpush1.msra.mxu0 0.0
    %927 = vmatprep.subr.mxu0 0.0
    %928 = vmatpush1.msra.mxu0 0.0
    %929 = vmatprep.subr.mxu0 0.0
    %930 = vmatpush1.msra.mxu0 0.0
    %931 = vmatprep.subr.mxu0 0.0
    %932 = vmatpush1.msra.mxu0 0.0
    %933 = vmatprep.subr.mxu0 0.0
    %934 = vmatpush1.msra.mxu0 0.0
    %935 = vmatprep.subr.mxu0 0.0
    %936 = vmatpush1.msra.mxu0 0.0
    %937 = vmatprep.subr.mxu0 0.0
    %938 = vmatpush1.msra.mxu0 0.0
    %939 = vmatprep.subr.mxu0 0.0
    %940 = vmatpush1.msra.mxu0 0.0
    %941 = vmatprep.subr.mxu0 0.0
    %942 = vmatpush1.msra.mxu0 0.0
    %943 = vmatprep.subr.mxu0 0.0
    %944 = vmatpush1.msra.mxu0 0.0
    %945 = vmatprep.subr.mxu0 0.0
    %946 = vmatpush1.msra.mxu0 0.0
    %947 = vmatprep.subr.mxu0 0.0
    %948 = vmatpush1.msra.mxu0 0.0
    %949 = vmatprep.subr.mxu0 0.0
    %950 = vmatpush1.msra.mxu0 0.0
    %951 = vmatprep.subr.mxu0 0.0
    %952 = vmatpush1.msra.mxu0 0.0
    %953 = vmatprep.subr.mxu0 0.0
    %954 = vmatpush1.msra.mxu0 0.0
    %955 = vmatprep.subr.mxu0 0.0
    %956 = vmatpush1.msra.mxu0 0.0
    %957 = vmatprep.subr.mxu0 0.0
    %958 = vmatpush1.msra.mxu0 0.0
    %959 = vmatprep.subr.mxu0 0.0
    %960 = vmatpush1.msra.mxu0 0.0
    %961 = vmatprep.subr.mxu0 0.0
    %962 = vmatpush1.msra.mxu0 0.0
    %963 = vmatprep.subr.mxu0 0.0
    %964 = vmatpush1.msra.mxu0 0.0
    %965 = vmatprep.subr.mxu0 0.0
    %966 = vmatpush1.msra.mxu0 0.0
    %967 = vmatprep.subr.mxu0 0.0
    %968 = vmatpush1.msra.mxu0 0.0
    %969 = vmatprep.subr.mxu0 0.0
    %970 = vmatpush1.msra.mxu0 0.0
    %971 = vmatprep.subr.mxu0 0.0
    %972 = vmatpush1.msra.mxu0 0.0
    %973 = vmatprep.subr.mxu0 0.0
    %974 = vmatpush1.msra.mxu0 0.0
    %975 = vmatprep.subr.mxu0 0.0
    %976 = vmatpush1.msra.mxu0 0.0
    %977 = vmatprep.subr.mxu0 0.0
    %978 = vmatpush1.msra.mxu0 0.0
    %979 = vmatprep.subr.mxu0 0.0
    %980 = vmatpush1.msra.mxu0 0.0
    %981 = vmatprep.subr.mxu0 0.0
    %982 = vmatpush1.msra.mxu0 0.0
    %983 = vmatprep.mubr.f32.mxu0 0.0
    %984 = vmatmul.mubr.f32.gmra.mrb[0].mxu0 %v917
    %v985 = vpop.f32.mrb[0].mxu0
    %v986 = vadd.f32 0.0, %v985
    %v987 = vpop.f32.mrb[0].mxu0
    %988 = vdwg.mxu0
    %v989 = vadd.f32 %v748, %v986
    %990 = vrot.lane.b32.xlu0 %v259, 104
    %v991 = vpop.permute.xlu0 %990
    %992 = vrot.lane.b32.xlu0 %v259, 72
    %v993 = vpop.permute.xlu0 %992
    %v994 = vsel %vm270, %v991, 0
    %v996 = vsel %vm270, %v993, 0
    %998 = vmatprep.subr.mxu0 0.0
    %999 = vmatpush1.xpose.msra.mxu0 %v996
    %1000 = vmatprep.subr.mxu0 0.0
    %1001 = vmatpush1.xpose.msra.mxu0 0.0
    %1002 = vmatprep.subr.mxu0 0.0
    %1003 = vmatpush1.xpose.msra.mxu0 0.0
    %1004 = vmatprep.subr.mxu0 0.0
    %1005 = vmatpush1.xpose.msra.mxu0 0.0
    %1006 = vmatprep.subr.mxu0 0.0
    %1007 = vmatpush1.xpose.msra.mxu0 0.0
    %1008 = vmatprep.subr.mxu0 0.0
    %1009 = vmatpush1.xpose.msra.mxu0 0.0
    %1010 = vmatprep.subr.mxu0 0.0
    %1011 = vmatpush1.xpose.msra.mxu0 0.0
    %1012 = vmatprep.subr.mxu0 0.0
    %1013 = vmatpush1.xpose.msra.mxu0 0.0
    %1014 = vmatprep.subr.mxu0 0.0
    %1015 = vmatpush1.xpose.msra.mxu0 0.0
    %1016 = vmatprep.subr.mxu0 0.0
    %1017 = vmatpush1.xpose.msra.mxu0 0.0
    %1018 = vmatprep.subr.mxu0 0.0
    %1019 = vmatpush1.xpose.msra.mxu0 0.0
    %1020 = vmatprep.subr.mxu0 0.0
    %1021 = vmatpush1.xpose.msra.mxu0 0.0
    %1022 = vmatprep.subr.mxu0 0.0
    %1023 = vmatpush1.xpose.msra.mxu0 0.0
    %1024 = vmatprep.subr.mxu0 0.0
    %1025 = vmatpush1.xpose.msra.mxu0 0.0
    %1026 = vmatprep.subr.mxu0 0.0
    %1027 = vmatpush1.xpose.msra.mxu0 0.0
    %1028 = vmatprep.subr.mxu0 0.0
    %1029 = vmatpush1.xpose.msra.mxu0 0.0
    %1030 = vmatprep.subr.mxu0 0.0
    %1031 = vmatpush1.xpose.msra.mxu0 0.0
    %1032 = vmatprep.subr.mxu0 0.0
    %1033 = vmatpush1.xpose.msra.mxu0 0.0
    %1034 = vmatprep.subr.mxu0 0.0
    %1035 = vmatpush1.xpose.msra.mxu0 0.0
    %1036 = vmatprep.subr.mxu0 0.0
    %1037 = vmatpush1.xpose.msra.mxu0 0.0
    %1038 = vmatprep.subr.mxu0 0.0
    %1039 = vmatpush1.xpose.msra.mxu0 0.0
    %1040 = vmatprep.subr.mxu0 0.0
    %1041 = vmatpush1.xpose.msra.mxu0 0.0
    %1042 = vmatprep.subr.mxu0 0.0
    %1043 = vmatpush1.xpose.msra.mxu0 0.0
    %1044 = vmatprep.subr.mxu0 0.0
    %1045 = vmatpush1.xpose.msra.mxu0 0.0
    %1046 = vmatprep.subr.mxu0 0.0
    %1047 = vmatpush1.xpose.msra.mxu0 0.0
    %1048 = vmatprep.subr.mxu0 0.0
    %1049 = vmatpush1.xpose.msra.mxu0 0.0
    %1050 = vmatprep.subr.mxu0 0.0
    %1051 = vmatpush1.xpose.msra.mxu0 0.0
    %1052 = vmatprep.subr.mxu0 0.0
    %1053 = vmatpush1.xpose.msra.mxu0 0.0
    %1054 = vmatprep.subr.mxu0 0.0
    %1055 = vmatpush1.xpose.msra.mxu0 0.0
    %1056 = vmatprep.subr.mxu0 0.0
    %1057 = vmatpush1.xpose.msra.mxu0 0.0
    %1058 = vmatprep.subr.mxu0 0.0
    %1059 = vmatpush1.xpose.msra.mxu0 0.0
    %1060 = vmatprep.subr.mxu0 0.0
    %1061 = vmatpush1.xpose.msra.mxu0 0.0
    %1062 = vmatprep.mubr.f32.mxu0 0.0
    %1063 = vmatmul.mubr.f32.gmra.mrb[0].mxu0 %v994
    %v1064 = vpop.f32.mrb[0].mxu0
    %v1065 = vadd.f32 0.0, %v1064
    %v1066 = vpop.f32.mrb[0].mxu0
    %1067 = vdwg.mxu0
    %v1068 = vmul.f32 %v1065, 0.35355338
    %v1069 = vadd.f32 %v1068, %v136
    %v1070 = vsel %vm270, %v1069, -inf
    %1071 = vmax.xlane.f32.xlu0 %v1070
    %v1072 = vpop.xlane.xlu0 %1071
    %v1073 = vsub.f32 %v1069, %v1072
    %v1074 = vmul.f32 %v1073, 1.442695
    %v1075 = vpow.pop %v1074
    %v1076 = vsel %vm270, %v1075, 0.0
    %1077 = vadd.xlane.f32.xlu0 %v1076
    %v1078 = vpop.xlane.xlu0 %1077
    %v1079 = vrcp.pop %v1078
    %v1080 = vmul.f32 %v1075, %v1079
    %1081 = vrot.lane.b32.xlu0 %v259, 40
    %v1082 = vpop.permute.xlu0 %1081
    %v1085 = vsel %vm270, %v1080, 0
    %1087 = vmatprep.subr.mxu0 0.0
    %1088 = vmatpush1.msra.mxu0 %v1082
    %1089 = vmatprep.subr.mxu0 0.0
    %1090 = vmatpush1.msra.mxu0 0.0
    %1091 = vmatprep.subr.mxu0 0.0
    %1092 = vmatpush1.msra.mxu0 0.0
    %1093 = vmatprep.subr.mxu0 0.0
    %1094 = vmatpush1.msra.mxu0 0.0
    %1095 = vmatprep.subr.mxu0 0.0
    %1096 = vmatpush1.msra.mxu0 0.0
    %1097 = vmatprep.subr.mxu0 0.0
    %1098 = vmatpush1.msra.mxu0 0.0
    %1099 = vmatprep.subr.mxu0 0.0
    %1100 = vmatpush1.msra.mxu0 0.0
    %1101 = vmatprep.subr.mxu0 0.0
    %1102 = vmatpush1.msra.mxu0 0.0
    %1103 = vmatprep.subr.mxu0 0.0
    %1104 = vmatpush1.msra.mxu0 0.0
    %1105 = vmatprep.subr.mxu0 0.0
    %1106 = vmatpush1.msra.mxu0 0.0
    %1107 = vmatprep.subr.mxu0 0.0
    %1108 = vmatpush1.msra.mxu0 0.0
    %1109 = vmatprep.subr.mxu0 0.0
    %1110 = vmatpush1.msra.mxu0 0.0
    %1111 = vmatprep.subr.mxu0 0.0
    %1112 = vmatpush1.msra.mxu0 0.0
    %1113 = vmatprep.subr.mxu0 0.0
    %1114 = vmatpush1.msra.mxu0 0.0
    %1115 = vmatprep.subr.mxu0 0.0
    %1116 = vmatpush1.msra.mxu0 0.0
    %1117 = vmatprep.subr.mxu0 0.0
    %1118 = vmatpush1.msra.mxu0 0.0
    %1119 = vmatprep.subr.mxu0 0.0
    %1120 = vmatpush1.msra.mxu0 0.0
    %1121 = vmatprep.subr.mxu0 0.0
    %1122 = vmatpush1.msra.mxu0 0.0
    %1123 = vmatprep.subr.mxu0 0.0
    %1124 = vmatpush1.msra.mxu0 0.0
    %1125 = vmatprep.subr.mxu0 0.0
    %1126 = vmatpush1.msra.mxu0 0.0
    %1127 = vmatprep.subr.mxu0 0.0
    %1128 = vmatpush1.msra.mxu0 0.0
    %1129 = vmatprep.subr.mxu0 0.0
    %1130 = vmatpush1.msra.mxu0 0.0
    %1131 = vmatprep.subr.mxu0 0.0
    %1132 = vmatpush1.msra.mxu0 0.0
    %1133 = vmatprep.subr.mxu0 0.0
    %1134 = vmatpush1.msra.mxu0 0.0
    %1135 = vmatprep.subr.mxu0 0.0
    %1136 = vmatpush1.msra.mxu0 0.0
    %1137 = vmatprep.subr.mxu0 0.0
    %1138 = vmatpush1.msra.mxu0 0.0
    %1139 = vmatprep.subr.mxu0 0.0
    %1140 = vmatpush1.msra.mxu0 0.0
    %1141 = vmatprep.subr.mxu0 0.0
    %1142 = vmatpush1.msra.mxu0 0.0
    %1143 = vmatprep.subr.mxu0 0.0
    %1144 = vmatpush1.msra.mxu0 0.0
    %1145 = vmatprep.subr.mxu0 0.0
    %1146 = vmatpush1.msra.mxu0 0.0
    %1147 = vmatprep.subr.mxu0 0.0
    %1148 = vmatpush1.msra.mxu0 0.0
    %1149 = vmatprep.subr.mxu0 0.0
    %1150 = vmatpush1.msra.mxu0 0.0
    %1151 = vmatprep.mubr.f32.mxu0 0.0
    %1152 = vmatmul.mubr.f32.gmra.mrb[0].mxu0 %v1085
    %v1153 = vpop.f32.mrb[0].mxu0
    %v1154 = vadd.f32 0.0, %v1153
    %v1155 = vpop.f32.mrb[0].mxu0
    %1156 = vdwg.mxu0
    %v1158 = vsel %vm270, %v1154, 0
    %1160 = vmatprep.subr.mxu0 0.0
    %1161 = vmatpush1.msra.mxu0 %v151
    %1162 = vmatprep.subr.mxu0 0.0
    %1163 = vmatpush1.msra.mxu0 0.0
    %1164 = vmatprep.subr.mxu0 0.0
    %1165 = vmatpush1.msra.mxu0 0.0
    %1166 = vmatprep.subr.mxu0 0.0
    %1167 = vmatpush1.msra.mxu0 0.0
    %1168 = vmatprep.subr.mxu0 0.0
    %1169 = vmatpush1.msra.mxu0 0.0
    %1170 = vmatprep.subr.mxu0 0.0
    %1171 = vmatpush1.msra.mxu0 0.0
    %1172 = vmatprep.subr.mxu0 0.0
    %1173 = vmatpush1.msra.mxu0 0.0
    %1174 = vmatprep.subr.mxu0 0.0
    %1175 = vmatpush1.msra.mxu0 0.0
    %1176 = vmatprep.subr.mxu0 0.0
    %1177 = vmatpush1.msra.mxu0 0.0
    %1178 = vmatprep.subr.mxu0 0.0
    %1179 = vmatpush1.msra.mxu0 0.0
    %1180 = vmatprep.subr.mxu0 0.0
    %1181 = vmatpush1.msra.mxu0 0.0
    %1182 = vmatprep.subr.mxu0 0.0
    %1183 = vmatpush1.msra.mxu0 0.0
    %1184 = vmatprep.subr.mxu0 0.0
    %1185 = vmatpush1.msra.mxu0 0.0
    %1186 = vmatprep.subr.mxu0 0.0
    %1187 = vmatpush1.msra.mxu0 0.0
    %1188 = vmatprep.subr.mxu0 0.0
    %1189 = vmatpush1.msra.mxu0 0.0
    %1190 = vmatprep.subr.mxu0 0.0
    %1191 = vmatpush1.msra.mxu0 0.0
    %1192 = vmatprep.subr.mxu0 0.0
    %1193 = vmatpush1.msra.mxu0 0.0
    %1194 = vmatprep.subr.mxu0 0.0
    %1195 = vmatpush1.msra.mxu0 0.0
    %1196 = vmatprep.subr.mxu0 0.0
    %1197 = vmatpush1.msra.mxu0 0.0
    %1198 = vmatprep.subr.mxu0 0.0
    %1199 = vmatpush1.msra.mxu0 0.0
    %1200 = vmatprep.subr.mxu0 0.0
    %1201 = vmatpush1.msra.mxu0 0.0
    %1202 = vmatprep.subr.mxu0 0.0
    %1203 = vmatpush1.msra.mxu0 0.0
    %1204 = vmatprep.subr.mxu0 0.0
    %1205 = vmatpush1.msra.mxu0 0.0
    %1206 = vmatprep.subr.mxu0 0.0
    %1207 = vmatpush1.msra.mxu0 0.0
    %1208 = vmatprep.subr.mxu0 0.0
    %1209 = vmatpush1.msra.mxu0 0.0
    %1210 = vmatprep.subr.mxu0 0.0
    %1211 = vmatpush1.msra.mxu0 0.0
    %1212 = vmatprep.subr.mxu0 0.0
    %1213 = vmatpush1.msra.mxu0 0.0
    %1214 = vmatprep.subr.mxu0 0.0
    %1215 = vmatpush1.msra.mxu0 0.0
    %1216 = vmatprep.subr.mxu0 0.0
    %1217 = vmatpush1.msra.mxu0 0.0
    %1218 = vmatprep.subr.mxu0 0.0
    %1219 = vmatpush1.msra.mxu0 0.0
    %1220 = vmatprep.subr.mxu0 0.0
    %1221 = vmatpush1.msra.mxu0 0.0
    %1222 = vmatprep.subr.mxu0 0.0
    %1223 = vmatpush1.msra.mxu0 0.0
    %1224 = vmatprep.mubr.f32.mxu0 0.0
    %1225 = vmatmul.mubr.f32.gmra.mrb[0].mxu0 %v1158
    %v1226 = vpop.f32.mrb[0].mxu0
    %v1227 = vadd.f32 0.0, %v1226
    %v1228 = vpop.f32.mrb[0].mxu0
    %1229 = vdwg.mxu0
    %v1230 = vadd.f32 %v989, %v1227
    %v1231 = vsel %vm164, %v1230, 0.0
    %1232 = vadd.xlane.f32.xlu0 %v1231
    %v1233 = vpop.xlane.xlu0 %1232
    %v1234 = vmul.f32 %v1233, %v168
    %v1235 = vsub.f32 %v1230, %v1234
    %v1236 = vmul.f32 %v1235, %v1235
    %v1237 = vsel %vm164, %v1236, 0.0
    %1238 = vadd.xlane.f32.xlu0 %v1237
    %v1239 = vpop.xlane.xlu0 %1238
    %v1240 = vmul.f32 %v1239, %v168
    %v1241 = vadd.f32 %v1240, 1e-05
    %v1242 = vrsqrt.pop %v1241
    %v1243 = vmul.f32 %v1235, %v1242
    %v1244 = vlaneseq
    %v1245 = vshrl.u32 %v1244, 7
    %v1246 = vsub.s32 0, %v1245
    %v1247 = vrot.slane %v139, %v1246
    %v1248 = vmul.f32 %v1243, %v1247
    %v1249 = vlaneseq
    %v1250 = vshrl.u32 %v1249, 7
    %v1251 = vsub.s32 0, %v1250
    %v1252 = vrot.slane %v140, %v1251
    %v1253 = vadd.f32 %v1248, %v1252
    %v1254 = vlaneseq
    %v1255 = vshrl.u32 %v1254, 7
    %v1256 = vsub.s32 0, %v1255
    %v1257 = vrot.slane %v142, %v1256
    %v1259 = vsel %vm164, %v1253, 0
    %1261 = vmatprep.subr.mxu0 0.0
    %1262 = vmatpush1.msra.mxu0 %v152
    %1263 = vmatprep.subr.mxu0 0.0
    %1264 = vmatpush1.msra.mxu0 %v153
    %1265 = vmatprep.subr.mxu0 0.0
    %1266 = vmatpush1.msra.mxu0 %v154
    %1267 = vmatprep.subr.mxu0 0.0
    %1268 = vmatpush1.msra.mxu0 %v155
    %1269 = vmatprep.subr.mxu0 0.0
    %1270 = vmatpush1.msra.mxu0 0.0
    %1271 = vmatprep.subr.mxu0 0.0
    %1272 = vmatpush1.msra.mxu0 0.0
    %1273 = vmatprep.subr.mxu0 0.0
    %1274 = vmatpush1.msra.mxu0 0.0
    %1275 = vmatprep.subr.mxu0 0.0
    %1276 = vmatpush1.msra.mxu0 0.0
    %1277 = vmatprep.subr.mxu0 0.0
    %1278 = vmatpush1.msra.mxu0 0.0
    %1279 = vmatprep.subr.mxu0 0.0
    %1280 = vmatpush1.msra.mxu0 0.0
    %1281 = vmatprep.subr.mxu0 0.0
    %1282 = vmatpush1.msra.mxu0 0.0
    %1283 = vmatprep.subr.mxu0 0.0
    %1284 = vmatpush1.msra.mxu0 0.0
    %1285 = vmatprep.subr.mxu0 0.0
    %1286 = vmatpush1.msra.mxu0 0.0
    %1287 = vmatprep.subr.mxu0 0.0
    %1288 = vmatpush1.msra.mxu0 0.0
    %1289 = vmatprep.subr.mxu0 0.0
    %1290 = vmatpush1.msra.mxu0 0.0
    %1291 = vmatprep.subr.mxu0 0.0
    %1292 = vmatpush1.msra.mxu0 0.0
    %1293 = vmatprep.subr.mxu0 0.0
    %1294 = vmatpush1.msra.mxu0 0.0
    %1295 = vmatprep.subr.mxu0 0.0
    %1296 = vmatpush1.msra.mxu0 0.0
    %1297 = vmatprep.subr.mxu0 0.0
    %1298 = vmatpush1.msra.mxu0 0.0
    %1299 = vmatprep.subr.mxu0 0.0
    %1300 = vmatpush1.msra.mxu0 0.0
    %1301 = vmatprep.subr.mxu0 0.0
    %1302 = vmatpush1.msra.mxu0 0.0
    %1303 = vmatprep.subr.mxu0 0.0
    %1304 = vmatpush1.msra.mxu0 0.0
    %1305 = vmatprep.subr.mxu0 0.0
    %1306 = vmatpush1.msra.mxu0 0.0
    %1307 = vmatprep.subr.mxu0 0.0
    %1308 = vmatpush1.msra.mxu0 0.0
    %1309 = vmatprep.subr.mxu0 0.0
    %1310 = vmatpush1.msra.mxu0 0.0
    %1311 = vmatprep.subr.mxu0 0.0
    %1312 = vmatpush1.msra.mxu0 0.0
    %1313 = vmatprep.subr.mxu0 0.0
    %1314 = vmatpush1.msra.mxu0 0.0
    %1315 = vmatprep.subr.mxu0 0.0
    %1316 = vmatpush1.msra.mxu0 0.0
    %1317 = vmatprep.subr.mxu0 0.0
    %1318 = vmatpush1.msra.mxu0 0.0
    %1319 = vmatprep.subr.mxu0 0.0
    %1320 = vmatpush1.msra.mxu0 0.0
    %1321 = vmatprep.subr.mxu0 0.0
    %1322 = vmatpush1.msra.mxu0 0.0
    %1323 = vmatprep.subr.mxu0 0.0
    %1324 = vmatpush1.msra.mxu0 0.0
    %1325 = vmatprep.mubr.f32.mxu0 0.0
    %1326 = vmatmul.mubr.f32.gmra.mrb[0].mxu0 %v1259
    %v1327 = vpop.f32.mrb[0].mxu0
    %v1328 = vadd.f32 %v1257, %v1327
    %v1329 = vpop.f32.mrb[0].mxu0
    %1330 = vdwg.mxu0
    %v1331 = vmax.f32 %v1328, 0.0
    %v1333 = vsel %vm47, %v1331, 0
    %1335 = vmatprep.subr.mxu0 0.0
    %1336 = vmatpush1.msra.mxu0 %v156
    %1337 = vmatprep.subr.mxu0 0.0
    %1338 = vmatpush1.msra.mxu0 %v157
    %1339 = vmatprep.subr.mxu0 0.0
    %1340 = vmatpush1.msra.mxu0 %v158
    %1341 = vmatprep.subr.mxu0 0.0
    %1342 = vmatpush1.msra.mxu0 %v159
    %1343 = vmatprep.subr.mxu0 0.0
    %1344 = vmatpush1.msra.mxu0 %v160
    %1345 = vmatprep.subr.mxu0 0.0
    %1346 = vmatpush1.msra.mxu0 %v161
    %1347 = vmatprep.subr.mxu0 0.0
    %1348 = vmatpush1.msra.mxu0 %v162
    %1349 = vmatprep.subr.mxu0 0.0
    %1350 = vmatpush1.msra.mxu0 %v163
    %1351 = vmatprep.subr.mxu0 0.0
    %1352 = vmatpush1.msra.mxu0 0.0
    %1353 = vmatprep.subr.mxu0 0.0
    %1354 = vmatpush1.msra.mxu0 0.0
    %1355 = vmatprep.subr.mxu0 0.0
    %1356 = vmatpush1.msra.mxu0 0.0
    %1357 = vmatprep.subr.mxu0 0.0
    %1358 = vmatpush1.msra.mxu0 0.0
    %1359 = vmatprep.subr.mxu0 0.0
    %1360 = vmatpush1.msra.mxu0 0.0
    %1361 = vmatprep.subr.mxu0 0.0
    %1362 = vmatpush1.msra.mxu0 0.0
    %1363 = vmatprep.subr.mxu0 0.0
    %1364 = vmatpush1.msra.mxu0 0.0
    %1365 = vmatprep.subr.mxu0 0.0
    %1366 = vmatpush1.msra.mxu0 0.0
    %1367 = vmatprep.subr.mxu0 0.0
    %1368 = vmatpush1.msra.mxu0 0.0
    %1369 = vmatprep.subr.mxu0 0.0
    %1370 = vmatpush1.msra.mxu0 0.0
    %1371 = vmatprep.subr.mxu0 0.0
    %1372 = vmatpush1.msra.mxu0 0.0
    %1373 = vmatprep.subr.mxu0 0.0
    %1374 = vmatpush1.msra.mxu0 0.0
    %1375 = vmatprep.subr.mxu0 0.0
    %1376 = vmatpush1.msra.mxu0 0.0
    %1377 = vmatprep.subr.mxu0 0.0
    %1378 = vmatpush1.msra.mxu0 0.0
    %1379 = vmatprep.subr.mxu0 0.0
    %1380 = vmatpush1.msra.mxu0 0.0
    %1381 = vmatprep.subr.mxu0 0.0
    %1382 = vmatpush1.msra.mxu0 0.0
    %1383 = vmatprep.subr.mxu0 0.0
    %1384 = vmatpush1.msra.mxu0 0.0
    %1385 = vmatprep.subr.mxu0 0.0
    %1386 = vmatpush1.msra.mxu0 0.0
    %1387 = vmatprep.subr.mxu0 0.0
    %1388 = vmatpush1.msra.mxu0 0.0
    %1389 = vmatprep.subr.mxu0 0.0
    %1390 = vmatpush1.msra.mxu0 0.0
    %1391 = vmatprep.subr.mxu0 0.0
    %1392 = vmatpush1.msra.mxu0 0.0
    %1393 = vmatprep.subr.mxu0 0.0
    %1394 = vmatpush1.msra.mxu0 0.0
    %1395 = vmatprep.subr.mxu0 0.0
    %1396 = vmatpush1.msra.mxu0 0.0
    %1397 = vmatprep.subr.mxu0 0.0
    %1398 = vmatpush1.msra.mxu0 0.0
    %1399 = vmatprep.mubr.f32.mxu0 0.0
    %1400 = vmatmul.mubr.f32.gmra.mrb[0].mxu0 %v1333
    %v1401 = vpop.f32.mrb[0].mxu0
    %v1402 = vadd.f32 0.0, %v1401
    %v1403 = vpop.f32.mrb[0].mxu0
    %1404 = vdwg.mxu0
    %v1405 = vadd.f32 %v1230, %v1402
    %v1406 = vlaneseq
    %v1407 = vshrl.u32 %v1406, 7
    %v1408 = vsub.s32 0, %v1407
    %v1409 = vrot.slane %v143, %v1408
    %v1410 = vadd.f32 %v1405, %v1409
    %v1411 = vld [vmem:[%s1 + $0x30] sm:$0x1]
    %v1412 = vld [vmem:[%s1 + $0x31] sm:$0x1]
    %v1413 = vsel %vm164, %v1410, 0.0
    %1414 = vadd.xlane.f32.xlu0 %v1413
    %v1415 = vpop.xlane.xlu0 %1414
    %v1416 = vmul.f32 %v1415, %v168
    %v1417 = vsub.f32 %v1410, %v1416
    %v1418 = vmul.f32 %v1417, %v1417
    %v1419 = vsel %vm164, %v1418, 0.0
    %1420 = vadd.xlane.f32.xlu0 %v1419
    %v1421 = vpop.xlane.xlu0 %1420
    %v1422 = vmul.f32 %v1421, %v168
    %v1423 = vadd.f32 %v1422, 1e-05
    %v1424 = vrsqrt.pop %v1423
    %v1425 = vmul.f32 %v1417, %v1424
    %v1426 = vlaneseq
    %v1427 = vshrl.u32 %v1426, 7
    %v1428 = vsub.s32 0, %v1427
    %v1429 = vrot.slane %v1411, %v1428
    %v1430 = vmul.f32 %v1425, %v1429
    %v1431 = vlaneseq
    %v1432 = vshrl.u32 %v1431, 7
    %v1433 = vsub.s32 0, %v1432
    %v1434 = vrot.slane %v1412, %v1433
    %v1435 = vadd.f32 %v1430, %v1434
    %v1436 = vadd.s32 %v123, 8
    %v1437 = vadd.s32 %v123, 16
    %v1438 = vadd.s32 %v123, 24
    %v1439 = vcvt.s32.f32 %v1436
    %v1440 = vcvt.s32.f32 %v1437
    %v1441 = vcvt.s32.f32 %v1438
    %v1442 = vadd.f32 %v1439, 0.5
    %v1443 = vadd.f32 %v1440, 0.5
    %v1444 = vadd.f32 %v1441, 0.5
    %v1445 = vrcp.pop 16.0
    %v1446 = vmul.f32 %v128, %v1445
    %v1447 = vmul.f32 %v1442, %v1445
    %v1448 = vmul.f32 %v1443, %v1445
    %v1449 = vmul.f32 %v1444, %v1445
    %v1450 = vfloor.f32 %v1446
    %v1451 = vfloor.f32 %v1447
    %v1452 = vfloor.f32 %v1448
    %v1453 = vfloor.f32 %v1449
    %v1454 = vmul.f32 %v1450, 16.0
    %v1455 = vmul.f32 %v1451, 16.0
    %v1456 = vmul.f32 %v1452, 16.0
    %v1457 = vmul.f32 %v1453, 16.0
    %v1458 = vsub.f32 %v124, %v1454
    %v1459 = vsub.f32 %v1439, %v1455
    %v1460 = vsub.f32 %v1440, %v1456
    %v1461 = vsub.f32 %v1441, %v1457
    %v1462 = vadd.f32 %v1458, 0.5
    %v1463 = vadd.f32 %v1459, 0.5
    %v1464 = vadd.f32 %v1460, 0.5
    %v1465 = vadd.f32 %v1461, 0.5
    %v1466 = vmul.f32 %v1462, %v129
    %v1467 = vmul.f32 %v1463, %v129
    %v1468 = vmul.f32 %v1464, %v129
    %v1469 = vmul.f32 %v1465, %v129
    %v1470 = vfloor.f32 %v1466
    %v1471 = vfloor.f32 %v1467
    %v1472 = vfloor.f32 %v1468
    %v1473 = vfloor.f32 %v1469
    %v1474 = vmul.f32 %v1470, 4.0
    %v1475 = vmul.f32 %v1471, 4.0
    %v1476 = vmul.f32 %v1472, 4.0
    %v1477 = vmul.f32 %v1473, 4.0
    %v1478 = vsub.f32 %v1458, %v1474
    %v1479 = vsub.f32 %v1459, %v1475
    %v1480 = vsub.f32 %v1460, %v1476
    %v1481 = vsub.f32 %v1461, %v1477
    %v1482 = vmul.f32 %v1478, 4.0
    %v1483 = vmul.f32 %v1479, 4.0
    %v1484 = vmul.f32 %v1480, 4.0
    %v1485 = vmul.f32 %v1481, 4.0
    %v1486 = vadd.f32 %v1482, %v1470
    %v1487 = vadd.f32 %v1483, %v1471
    %v1488 = vadd.f32 %v1484, %v1472
    %v1489 = vadd.f32 %v1485, %v1473
    %v1490 = vmul.f32 %v1450, 4.0
    %v1491 = vmul.f32 %v1451, 4.0
    %v1492 = vmul.f32 %v1452, 4.0
    %v1493 = vmul.f32 %v1453, 4.0
    %v1494 = vadd.f32 %v1486, 0.5
    %v1495 = vadd.f32 %v1487, 0.5
    %v1496 = vadd.f32 %v1488, 0.5
    %v1497 = vadd.f32 %v1489, 0.5
    %v1498 = vmul.f32 %v1494, %v129
    %v1499 = vmul.f32 %v1495, %v129
    %v1500 = vmul.f32 %v1496, %v129
    %v1501 = vmul.f32 %v1497, %v129
    %v1502 = vfloor.f32 %v1498
    %v1503 = vfloor.f32 %v1499
    %v1504 = vfloor.f32 %v1500
    %v1505 = vfloor.f32 %v1501
    %v1506 = vadd.f32 %v1490, %v1502
    %v1507 = vadd.f32 %v1491, %v1503
    %v1508 = vadd.f32 %v1492, %v1504
    %v1509 = vadd.f32 %v1493, %v1505
    %v1510 = vmul.f32 %v1502, 4.0
    %v1511 = vmul.f32 %v1503, 4.0
    %v1512 = vmul.f32 %v1504, 4.0
    %v1513 = vmul.f32 %v1505, 4.0
    %v1514 = vsub.f32 %v1486, %v1510
    %v1515 = vsub.f32 %v1487, %v1511
    %v1516 = vsub.f32 %v1488, %v1512
    %v1517 = vsub.f32 %v1489, %v1513
    %vm1518 = vcmp.eq.f32.partialorder %v1506, %v127
    %vm1519 = vcmp.eq.f32.partialorder %v1507, %v127
    %vm1520 = vcmp.eq.f32.partialorder %v1508, %v127
    %vm1521 = vcmp.eq.f32.partialorder %v1509, %v127
    %v1522 = vld [vmem:[%s1 + $0x8] sm:$0xff]
    %v1523 = vld [vmem:[%s1 + $0x10] sm:$0xff]
    %v1524 = vld [vmem:[%s1 + $0x18] sm:$0xff]
    %v1525 = vld [vmem:[%s1 + $0x20] sm:$0xff]
    %vm1526 = vcmp.eq.f32.partialorder %v1514, 0.0
    %vm1527 = vcmp.eq.f32.partialorder %v1515, 0.0
    %vm1528 = vcmp.eq.f32.partialorder %v1516, 0.0
    %vm1529 = vcmp.eq.f32.partialorder %v1517, 0.0
    %vm1530 = vmand %vm1518, %vm1526
    %vm1531 = vmand %vm1519, %vm1527
    %vm1532 = vmand %vm1520, %vm1528
    %vm1533 = vmand %vm1521, %vm1529
    %v1534 = vsel %vm1530, 1.0, 0.0
    %v1535 = vsel %vm1531, 1.0, 0.0
    %v1536 = vsel %vm1532, 1.0, 0.0
    %v1537 = vsel %vm1533, 1.0, 0.0
    %v1539 = vsel %vm270, %v1534, 0
    %v1542 = vsel %vm270, %v1535, 0
    %v1545 = vsel %vm270, %v1536, 0
    %v1548 = vsel %vm270, %v1537, 0
    %1550 = vmatprep.subr.mxu0 0.0
    %1551 = vmatpush1.msra.mxu0 %v1435
    %1552 = vmatprep.subr.mxu0 0.0
    %1553 = vmatpush1.msra.mxu0 0.0
    %1554 = vmatprep.subr.mxu0 0.0
    %1555 = vmatpush1.msra.mxu0 0.0
    %1556 = vmatprep.subr.mxu0 0.0
    %1557 = vmatpush1.msra.mxu0 0.0
    %1558 = vmatprep.subr.mxu0 0.0
    %1559 = vmatpush1.msra.mxu0 0.0
    %1560 = vmatprep.subr.mxu0 0.0
    %1561 = vmatpush1.msra.mxu0 0.0
    %1562 = vmatprep.subr.mxu0 0.0
    %1563 = vmatpush1.msra.mxu0 0.0
    %1564 = vmatprep.subr.mxu0 0.0
    %1565 = vmatpush1.msra.mxu0 0.0
    %1566 = vmatprep.subr.mxu0 0.0
    %1567 = vmatpush1.msra.mxu0 0.0
    %1568 = vmatprep.subr.mxu0 0.0
    %1569 = vmatpush1.msra.mxu0 0.0
    %1570 = vmatprep.subr.mxu0 0.0
    %1571 = vmatpush1.msra.mxu0 0.0
    %1572 = vmatprep.subr.mxu0 0.0
    %1573 = vmatpush1.msra.mxu0 0.0
    %1574 = vmatprep.subr.mxu0 0.0
    %1575 = vmatpush1.msra.mxu0 0.0
    %1576 = vmatprep.subr.mxu0 0.0
    %1577 = vmatpush1.msra.mxu0 0.0
    %1578 = vmatprep.subr.mxu0 0.0
    %1579 = vmatpush1.msra.mxu0 0.0
    %1580 = vmatprep.subr.mxu0 0.0
    %1581 = vmatpush1.msra.mxu0 0.0
    %1582 = vmatprep.subr.mxu0 0.0
    %1583 = vmatpush1.msra.mxu0 0.0
    %1584 = vmatprep.subr.mxu0 0.0
    %1585 = vmatpush1.msra.mxu0 0.0
    %1586 = vmatprep.subr.mxu0 0.0
    %1587 = vmatpush1.msra.mxu0 0.0
    %1588 = vmatprep.subr.mxu0 0.0
    %1589 = vmatpush1.msra.mxu0 0.0
    %1590 = vmatprep.subr.mxu0 0.0
    %1591 = vmatpush1.msra.mxu0 0.0
    %1592 = vmatprep.subr.mxu0 0.0
    %1593 = vmatpush1.msra.mxu0 0.0
    %1594 = vmatprep.subr.mxu0 0.0
    %1595 = vmatpush1.msra.mxu0 0.0
    %1596 = vmatprep.subr.mxu0 0.0
    %1597 = vmatpush1.msra.mxu0 0.0
    %1598 = vmatprep.subr.mxu0 0.0
    %1599 = vmatpush1.msra.mxu0 0.0
    %1600 = vmatprep.subr.mxu0 0.0
    %1601 = vmatpush1.msra.mxu0 0.0
    %1602 = vmatprep.subr.mxu0 0.0
    %1603 = vmatpush1.msra.mxu0 0.0
    %1604 = vmatprep.subr.mxu0 0.0
    %1605 = vmatpush1.msra.mxu0 0.0
    %1606 = vmatprep.subr.mxu0 0.0
    %1607 = vmatpush1.msra.mxu0 0.0
    %1608 = vmatprep.subr.mxu0 0.0
    %1609 = vmatpush1.msra.mxu0 0.0
    %1610 = vmatprep.subr.mxu0 0.0
    %1611 = vmatpush1.msra.mxu0 0.0
    %1612 = vmatprep.subr.mxu0 0.0
    %1613 = vmatpush1.msra.mxu0 0.0
    %1614 = vmatprep.mubr.f32.mxu0 0.0
    %1615 = vmatmul.mubr.f32.gmra.mrb[0].mxu0 %v1539
    %v1616 = vpop.f32.mrb[0].mxu0
    %v1617 = vadd.f32 0.0, %v1616
    %v1618 = vpop.f32.mrb[0].mxu0
    %1619 = vmatprep.mubr.f32.mxu0 0.0
    %1620 = vmatmul.mubr.f32.gmra.mrb[0].mxu0 %v1542
    %v1621 = vpop.f32.mrb[0].mxu0
    %v1622 = vadd.f32 0.0, %v1621
    %v1623 = vpop.f32.mrb[0].mxu0
    %1624 = vmatprep.mubr.f32.mxu0 0.0
    %1625 = vmatmul.mubr.f32.gmra.mrb[0].mxu0 %v1545
    %v1626 = vpop.f32.mrb[0].mxu0
    %v1627 = vadd.f32 0.0, %v1626
    %v1628 = vpop.f32.mrb[0].mxu0
    %1629 = vmatprep.mubr.f32.mxu0 0.0
    %1630 = vmatmul.mubr.f32.gmra.mrb[0].mxu0 %v1548
    %v1631 = vpop.f32.mrb[0].mxu0
    %v1632 = vadd.f32 0.0, %v1631
    %v1633 = vpop.f32.mrb[0].mxu0
    %1634 = vdwg.mxu0
    %v1635 = vadd.f32 %v1522, %v1617
    %v1636 = vadd.f32 %v1523, %v1622
    %v1637 = vadd.f32 %v1524, %v1627
    %v1638 = vadd.f32 %v1525, %v1632
    %vm1639 = vcmp.eq.f32.partialorder %v1514, 1.0
    %vm1640 = vcmp.eq.f32.partialorder %v1515, 1.0
    %vm1641 = vcmp.eq.f32.partialorder %v1516, 1.0
    %vm1642 = vcmp.eq.f32.partialorder %v1517, 1.0
    %vm1643 = vmand %vm1518, %vm1639
    %vm1644 = vmand %vm1519, %vm1640
    %vm1645 = vmand %vm1520, %vm1641
    %vm1646 = vmand %vm1521, %vm1642
    %v1647 = vsel %vm1643, 1.0, 0.0
    %v1648 = vsel %vm1644, 1.0, 0.0
    %v1649 = vsel %vm1645, 1.0, 0.0
    %v1650 = vsel %vm1646, 1.0, 0.0
    %1652 = vrot.lane.b32.xlu0 %v1435, 120
    %v1653 = vpop.permute.xlu0 %1652
    %v1656 = vsel %vm270, %v1647, 0
    %v1659 = vsel %vm270, %v1648, 0
    %v1662 = vsel %vm270, %v1649, 0
    %v1665 = vsel %vm270, %v1650, 0
    %1667 = vmatprep.subr.mxu0 0.0
    %1668 = vmatpush1.msra.mxu0 %v1653
    %1669 = vmatprep.subr.mxu0 0.0
    %1670 = vmatpush1.msra.mxu0 0.0
    %1671 = vmatprep.subr.mxu0 0.0
    %1672 = vmatpush1.msra.mxu0 0.0
    %1673 = vmatprep.subr.mxu0 0.0
    %1674 = vmatpush1.msra.mxu0 0.0
    %1675 = vmatprep.subr.mxu0 0.0
    %1676 = vmatpush1.msra.mxu0 0.0
    %1677 = vmatprep.subr.mxu0 0.0
    %1678 = vmatpush1.msra.mxu0 0.0
    %1679 = vmatprep.subr.mxu0 0.0
    %1680 = vmatpush1.msra.mxu0 0.0
    %1681 = vmatprep.subr.mxu0 0.0
    %1682 = vmatpush1.msra.mxu0 0.0
    %1683 = vmatprep.subr.mxu0 0.0
    %1684 = vmatpush1.msra.mxu0 0.0
    %1685 = vmatprep.subr.mxu0 0.0
    %1686 = vmatpush1.msra.mxu0 0.0
    %1687 = vmatprep.subr.mxu0 0.0
    %1688 = vmatpush1.msra.mxu0 0.0
    %1689 = vmatprep.subr.mxu0 0.0
    %1690 = vmatpush1.msra.mxu0 0.0
    %1691 = vmatprep.subr.mxu0 0.0
    %1692 = vmatpush1.msra.mxu0 0.0
    %1693 = vmatprep.subr.mxu0 0.0
    %1694 = vmatpush1.msra.mxu0 0.0
    %1695 = vmatprep.subr.mxu0 0.0
    %1696 = vmatpush1.msra.mxu0 0.0
    %1697 = vmatprep.subr.mxu0 0.0
    %1698 = vmatpush1.msra.mxu0 0.0
    %1699 = vmatprep.subr.mxu0 0.0
    %1700 = vmatpush1.msra.mxu0 0.0
    %1701 = vmatprep.subr.mxu0 0.0
    %1702 = vmatpush1.msra.mxu0 0.0
    %1703 = vmatprep.subr.mxu0 0.0
    %1704 = vmatpush1.msra.mxu0 0.0
    %1705 = vmatprep.subr.mxu0 0.0
    %1706 = vmatpush1.msra.mxu0 0.0
    %1707 = vmatprep.subr.mxu0 0.0
    %1708 = vmatpush1.msra.mxu0 0.0
    %1709 = vmatprep.subr.mxu0 0.0
    %1710 = vmatpush1.msra.mxu0 0.0
    %1711 = vmatprep.subr.mxu0 0.0
    %1712 = vmatpush1.msra.mxu0 0.0
    %1713 = vmatprep.subr.mxu0 0.0
    %1714 = vmatpush1.msra.mxu0 0.0
    %1715 = vmatprep.subr.mxu0 0.0
    %1716 = vmatpush1.msra.mxu0 0.0
    %1717 = vmatprep.subr.mxu0 0.0
    %1718 = vmatpush1.msra.mxu0 0.0
    %1719 = vmatprep.subr.mxu0 0.0
    %1720 = vmatpush1.msra.mxu0 0.0
    %1721 = vmatprep.subr.mxu0 0.0
    %1722 = vmatpush1.msra.mxu0 0.0
    %1723 = vmatprep.subr.mxu0 0.0
    %1724 = vmatpush1.msra.mxu0 0.0
    %1725 = vmatprep.subr.mxu0 0.0
    %1726 = vmatpush1.msra.mxu0 0.0
    %1727 = vmatprep.subr.mxu0 0.0
    %1728 = vmatpush1.msra.mxu0 0.0
    %1729 = vmatprep.subr.mxu0 0.0
    %1730 = vmatpush1.msra.mxu0 0.0
    %1731 = vmatprep.mubr.f32.mxu0 0.0
    %1732 = vmatmul.mubr.f32.gmra.mrb[0].mxu0 %v1656
    %v1733 = vpop.f32.mrb[0].mxu0
    %v1734 = vadd.f32 0.0, %v1733
    %v1735 = vpop.f32.mrb[0].mxu0
    %1736 = vmatprep.mubr.f32.mxu0 0.0
    %1737 = vmatmul.mubr.f32.gmra.mrb[0].mxu0 %v1659
    %v1738 = vpop.f32.mrb[0].mxu0
    %v1739 = vadd.f32 0.0, %v1738
    %v1740 = vpop.f32.mrb[0].mxu0
    %1741 = vmatprep.mubr.f32.mxu0 0.0
    %1742 = vmatmul.mubr.f32.gmra.mrb[0].mxu0 %v1662
    %v1743 = vpop.f32.mrb[0].mxu0
    %v1744 = vadd.f32 0.0, %v1743
    %v1745 = vpop.f32.mrb[0].mxu0
    %1746 = vmatprep.mubr.f32.mxu0 0.0
    %1747 = vmatmul.mubr.f32.gmra.mrb[0].mxu0 %v1665
    %v1748 = vpop.f32.mrb[0].mxu0
    %v1749 = vadd.f32 0.0, %v1748
    %v1750 = vpop.f32.mrb[0].mxu0
    %1751 = vdwg.mxu0
    %v1752 = vadd.f32 %v1635, %v1734
    %v1753 = vadd.f32 %v1636, %v1739
    %v1754 = vadd.f32 %v1637, %v1744
    %v1755 = vadd.f32 %v1638, %v1749
    %vm1756 = vcmp.eq.f32.partialorder %v1514, 2.0
    %vm1757 = vcmp.eq.f32.partialorder %v1515, 2.0
    %vm1758 = vcmp.eq.f32.partialorder %v1516, 2.0
    %vm1759 = vcmp.eq.f32.partialorder %v1517, 2.0
    %vm1760 = vmand %vm1518, %vm1756
    %vm1761 = vmand %vm1519, %vm1757
    %vm1762 = vmand %vm1520, %vm1758
    %vm1763 = vmand %vm1521, %vm1759
    %v1764 = vsel %vm1760, 1.0, 0.0
    %v1765 = vsel %vm1761, 1.0, 0.0
    %v1766 = vsel %vm1762, 1.0, 0.0
    %v1767 = vsel %vm1763, 1.0, 0.0
    %1768 = vrot.lane.b32.xlu0 %v1435, 112
    %v1769 = vpop.permute.xlu0 %1768
    %v1772 = vsel %vm270, %v1764, 0
    %v1775 = vsel %vm270, %v1765, 0
    %v1778 = vsel %vm270, %v1766, 0
    %v1781 = vsel %vm270, %v1767, 0
    %1783 = vmatprep.subr.mxu0 0.0
    %1784 = vmatpush1.msra.mxu0 %v1769
    %1785 = vmatprep.subr.mxu0 0.0
    %1786 = vmatpush1.msra.mxu0 0.0
    %1787 = vmatprep.subr.mxu0 0.0
    %1788 = vmatpush1.msra.mxu0 0.0
    %1789 = vmatprep.subr.mxu0 0.0
    %1790 = vmatpush1.msra.mxu0 0.0
    %1791 = vmatprep.subr.mxu0 0.0
    %1792 = vmatpush1.msra.mxu0 0.0
    %1793 = vmatprep.subr.mxu0 0.0
    %1794 = vmatpush1.msra.mxu0 0.0
    %1795 = vmatprep.subr.mxu0 0.0
    %1796 = vmatpush1.msra.mxu0 0.0
    %1797 = vmatprep.subr.mxu0 0.0
    %1798 = vmatpush1.msra.mxu0 0.0
    %1799 = vmatprep.subr.mxu0 0.0
    %1800 = vmatpush1.msra.mxu0 0.0
    %1801 = vmatprep.subr.mxu0 0.0
    %1802 = vmatpush1.msra.mxu0 0.0
    %1803 = vmatprep.subr.mxu0 0.0
    %1804 = vmatpush1.msra.mxu0 0.0
    %1805 = vmatprep.subr.mxu0 0.0
    %1806 = vmatpush1.msra.mxu0 0.0
    %1807 = vmatprep.subr.mxu0 0.0
    %1808 = vmatpush1.msra.mxu0 0.0
    %1809 = vmatprep.subr.mxu0 0.0
    %1810 = vmatpush1.msra.mxu0 0.0
    %1811 = vmatprep.subr.mxu0 0.0
    %1812 = vmatpush1.msra.mxu0 0.0
    %1813 = vmatprep.subr.mxu0 0.0
    %1814 = vmatpush1.msra.mxu0 0.0
    %1815 = vmatprep.subr.mxu0 0.0
    %1816 = vmatpush1.msra.mxu0 0.0
    %1817 = vmatprep.subr.mxu0 0.0
    %1818 = vmatpush1.msra.mxu0 0.0
    %1819 = vmatprep.subr.mxu0 0.0
    %1820 = vmatpush1.msra.mxu0 0.0
    %1821 = vmatprep.subr.mxu0 0.0
    %1822 = vmatpush1.msra.mxu0 0.0
    %1823 = vmatprep.subr.mxu0 0.0
    %1824 = vmatpush1.msra.mxu0 0.0
    %1825 = vmatprep.subr.mxu0 0.0
    %1826 = vmatpush1.msra.mxu0 0.0
    %1827 = vmatprep.subr.mxu0 0.0
    %1828 = vmatpush1.msra.mxu0 0.0
    %1829 = vmatprep.subr.mxu0 0.0
    %1830 = vmatpush1.msra.mxu0 0.0
    %1831 = vmatprep.subr.mxu0 0.0
    %1832 = vmatpush1.msra.mxu0 0.0
    %1833 = vmatprep.subr.mxu0 0.0
    %1834 = vmatpush1.msra.mxu0 0.0
    %1835 = vmatprep.subr.mxu0 0.0
    %1836 = vmatpush1.msra.mxu0 0.0
    %1837 = vmatprep.subr.mxu0 0.0
    %1838 = vmatpush1.msra.mxu0 0.0
    %1839 = vmatprep.subr.mxu0 0.0
    %1840 = vmatpush1.msra.mxu0 0.0
    %1841 = vmatprep.subr.mxu0 0.0
    %1842 = vmatpush1.msra.mxu0 0.0
    %1843 = vmatprep.subr.mxu0 0.0
    %1844 = vmatpush1.msra.mxu0 0.0
    %1845 = vmatprep.subr.mxu0 0.0
    %1846 = vmatpush1.msra.mxu0 0.0
    %1847 = vmatprep.mubr.f32.mxu0 0.0
    %1848 = vmatmul.mubr.f32.gmra.mrb[0].mxu0 %v1772
    %v1849 = vpop.f32.mrb[0].mxu0
    %v1850 = vadd.f32 0.0, %v1849
    %v1851 = vpop.f32.mrb[0].mxu0
    %1852 = vmatprep.mubr.f32.mxu0 0.0
    %1853 = vmatmul.mubr.f32.gmra.mrb[0].mxu0 %v1775
    %v1854 = vpop.f32.mrb[0].mxu0
    %v1855 = vadd.f32 0.0, %v1854
    %v1856 = vpop.f32.mrb[0].mxu0
    %1857 = vmatprep.mubr.f32.mxu0 0.0
    %1858 = vmatmul.mubr.f32.gmra.mrb[0].mxu0 %v1778
    %v1859 = vpop.f32.mrb[0].mxu0
    %v1860 = vadd.f32 0.0, %v1859
    %v1861 = vpop.f32.mrb[0].mxu0
    %1862 = vmatprep.mubr.f32.mxu0 0.0
    %1863 = vmatmul.mubr.f32.gmra.mrb[0].mxu0 %v1781
    %v1864 = vpop.f32.mrb[0].mxu0
    %v1865 = vadd.f32 0.0, %v1864
    %v1866 = vpop.f32.mrb[0].mxu0
    %1867 = vdwg.mxu0
    %v1868 = vadd.f32 %v1752, %v1850
    %v1869 = vadd.f32 %v1753, %v1855
    %v1870 = vadd.f32 %v1754, %v1860
    %v1871 = vadd.f32 %v1755, %v1865
    %vm1872 = vcmp.eq.f32.partialorder %v1514, 3.0
    %vm1873 = vcmp.eq.f32.partialorder %v1515, 3.0
    %vm1874 = vcmp.eq.f32.partialorder %v1516, 3.0
    %vm1875 = vcmp.eq.f32.partialorder %v1517, 3.0
    %vm1876 = vmand %vm1518, %vm1872
    %vm1877 = vmand %vm1519, %vm1873
    %vm1878 = vmand %vm1520, %vm1874
    %vm1879 = vmand %vm1521, %vm1875
    %v1880 = vsel %vm1876, 1.0, 0.0
    %v1881 = vsel %vm1877, 1.0, 0.0
    %v1882 = vsel %vm1878, 1.0, 0.0
    %v1883 = vsel %vm1879, 1.0, 0.0
    %1884 = vrot.lane.b32.xlu0 %v1435, 104
    %v1885 = vpop.permute.xlu0 %1884
    %v1888 = vsel %vm270, %v1880, 0
    %v1891 = vsel %vm270, %v1881, 0
    %v1894 = vsel %vm270, %v1882, 0
    %v1897 = vsel %vm270, %v1883, 0
    %1899 = vmatprep.subr.mxu0 0.0
    %1900 = vmatpush1.msra.mxu0 %v1885
    %1901 = vmatprep.subr.mxu0 0.0
    %1902 = vmatpush1.msra.mxu0 0.0
    %1903 = vmatprep.subr.mxu0 0.0
    %1904 = vmatpush1.msra.mxu0 0.0
    %1905 = vmatprep.subr.mxu0 0.0
    %1906 = vmatpush1.msra.mxu0 0.0
    %1907 = vmatprep.subr.mxu0 0.0
    %1908 = vmatpush1.msra.mxu0 0.0
    %1909 = vmatprep.subr.mxu0 0.0
    %1910 = vmatpush1.msra.mxu0 0.0
    %1911 = vmatprep.subr.mxu0 0.0
    %1912 = vmatpush1.msra.mxu0 0.0
    %1913 = vmatprep.subr.mxu0 0.0
    %1914 = vmatpush1.msra.mxu0 0.0
    %1915 = vmatprep.subr.mxu0 0.0
    %1916 = vmatpush1.msra.mxu0 0.0
    %1917 = vmatprep.subr.mxu0 0.0
    %1918 = vmatpush1.msra.mxu0 0.0
    %1919 = vmatprep.subr.mxu0 0.0
    %1920 = vmatpush1.msra.mxu0 0.0
    %1921 = vmatprep.subr.mxu0 0.0
    %1922 = vmatpush1.msra.mxu0 0.0
    %1923 = vmatprep.subr.mxu0 0.0
    %1924 = vmatpush1.msra.mxu0 0.0
    %1925 = vmatprep.subr.mxu0 0.0
    %1926 = vmatpush1.msra.mxu0 0.0
    %1927 = vmatprep.subr.mxu0 0.0
    %1928 = vmatpush1.msra.mxu0 0.0
    %1929 = vmatprep.subr.mxu0 0.0
    %1930 = vmatpush1.msra.mxu0 0.0
    %1931 = vmatprep.subr.mxu0 0.0
    %1932 = vmatpush1.msra.mxu0 0.0
    %1933 = vmatprep.subr.mxu0 0.0
    %1934 = vmatpush1.msra.mxu0 0.0
    %1935 = vmatprep.subr.mxu0 0.0
    %1936 = vmatpush1.msra.mxu0 0.0
    %1937 = vmatprep.subr.mxu0 0.0
    %1938 = vmatpush1.msra.mxu0 0.0
    %1939 = vmatprep.subr.mxu0 0.0
    %1940 = vmatpush1.msra.mxu0 0.0
    %1941 = vmatprep.subr.mxu0 0.0
    %1942 = vmatpush1.msra.mxu0 0.0
    %1943 = vmatprep.subr.mxu0 0.0
    %1944 = vmatpush1.msra.mxu0 0.0
    %1945 = vmatprep.subr.mxu0 0.0
    %1946 = vmatpush1.msra.mxu0 0.0
    %1947 = vmatprep.subr.mxu0 0.0
    %1948 = vmatpush1.msra.mxu0 0.0
    %1949 = vmatprep.subr.mxu0 0.0
    %1950 = vmatpush1.msra.mxu0 0.0
    %1951 = vmatprep.subr.mxu0 0.0
    %1952 = vmatpush1.msra.mxu0 0.0
    %1953 = vmatprep.subr.mxu0 0.0
    %1954 = vmatpush1.msra.mxu0 0.0
    %1955 = vmatprep.subr.mxu0 0.0
    %1956 = vmatpush1.msra.mxu0 0.0
    %1957 = vmatprep.subr.mxu0 0.0
    %1958 = vmatpush1.msra.mxu0 0.0
    %1959 = vmatprep.subr.mxu0 0.0
    %1960 = vmatpush1.msra.mxu0 0.0
    %1961 = vmatprep.subr.mxu0 0.0
    %1962 = vmatpush1.msra.mxu0 0.0
    %1963 = vmatprep.mubr.f32.mxu0 0.0
    %1964 = vmatmul.mubr.f32.gmra.mrb[0].mxu0 %v1888
    %v1965 = vpop.f32.mrb[0].mxu0
    %v1966 = vadd.f32 0.0, %v1965
    %v1967 = vpop.f32.mrb[0].mxu0
    %1968 = vmatprep.mubr.f32.mxu0 0.0
    %1969 = vmatmul.mubr.f32.gmra.mrb[0].mxu0 %v1891
    %v1970 = vpop.f32.mrb[0].mxu0
    %v1971 = vadd.f32 0.0, %v1970
    %v1972 = vpop.f32.mrb[0].mxu0
    %1973 = vmatprep.mubr.f32.mxu0 0.0
    %1974 = vmatmul.mubr.f32.gmra.mrb[0].mxu0 %v1894
    %v1975 = vpop.f32.mrb[0].mxu0
    %v1976 = vadd.f32 0.0, %v1975
    %v1977 = vpop.f32.mrb[0].mxu0
    %1978 = vmatprep.mubr.f32.mxu0 0.0
    %1979 = vmatmul.mubr.f32.gmra.mrb[0].mxu0 %v1897
    %v1980 = vpop.f32.mrb[0].mxu0
    %v1981 = vadd.f32 0.0, %v1980
    %v1982 = vpop.f32.mrb[0].mxu0
    %1983 = vdwg.mxu0
    %v1984 = vadd.f32 %v1868, %v1966
    %v1985 = vadd.f32 %v1869, %v1971
    %v1986 = vadd.f32 %v1870, %v1976
    %v1987 = vadd.f32 %v1871, %v1981
    %v1988 = vmul.f32 %v1442, %v129
    %v1989 = vmul.f32 %v1443, %v129
    %v1990 = vmul.f32 %v1444, %v129
    %v1991 = vfloor.f32 %v1988
    %v1992 = vfloor.f32 %v1989
    %v1993 = vfloor.f32 %v1990
    %vm1994 = vcmp.eq.f32.partialorder %v1991, %v134
    %vm1995 = vcmp.eq.f32.partialorder %v1992, %v134
    %vm1996 = vcmp.eq.f32.partialorder %v1993, %v134
    %v1997 = vsel %vm1994, 0.0, -1e+30
    %v1998 = vsel %vm1995, 0.0, -1e+30
    %v1999 = vsel %vm1996, 0.0, -1e+30
    %v2000 = vld [vmem:[%s1 + $0x32] sm:$0x1]
    %v2001 = vld [vmem:[%s1 + $0x33] sm:$0x1]
    %v2002 = vld [vmem:[%s1 + $0x35] sm:$0x1]
    %v2003 = vld [vmem:[%s1 + $0x36] sm:$0x1]
    %v2004 = vld [vmem:[%s1 + $0x34] sm:$0x1]
    %v2005 = vld [vmem:[%s1 + $0x37] sm:$0x1]
    %v2006 = vld [vmem:[%s1 + $0x38] sm:$0x1]
    %v2007 = vld [vmem:[%s2 + $0x160] sm:$0xff]
    %v2008 = vld [vmem:[%s2 + $0x168] sm:$0xff]
    %v2009 = vld [vmem:[%s2 + $0x170] sm:$0xff]
    %v2010 = vld [vmem:[%s2 + $0x178] sm:$0xff]
    %v2011 = vld [vmem:[%s2 + $0x180] sm:$0xff]
    %v2012 = vld [vmem:[%s2 + $0x188] sm:$0xff]
    %v2013 = vld [vmem:[%s2 + $0x190] sm:$0xff]
    %v2014 = vld [vmem:[%s2 + $0x198] sm:$0xff]
    %v2015 = vld [vmem:[%s2 + $0x1a0] sm:$0xff]
    %v2016 = vld [vmem:[%s2 + $0x1a8] sm:$0xff]
    %v2017 = vld [vmem:[%s2 + $0x1b0] sm:$0xff]
    %v2018 = vld [vmem:[%s2 + $0x1b8] sm:$0xff]
    %v2019 = vld [vmem:[%s2 + $0x1c0] sm:$0xff]
    %v2020 = vld [vmem:[%s2 + $0x1c8] sm:$0xff]
    %v2021 = vsel %vm270, %v1984, 0.0
    %2022 = vadd.xlane.f32.xlu0 %v2021
    %v2023 = vpop.xlane.xlu0 %2022
    %v2024 = vsel %vm270, %v1985, 0.0
    %2025 = vadd.xlane.f32.xlu0 %v2024
    %v2026 = vpop.xlane.xlu0 %2025
    %v2027 = vsel %vm270, %v1986, 0.0
    %2028 = vadd.xlane.f32.xlu0 %v2027
    %v2029 = vpop.xlane.xlu0 %2028
    %v2030 = vsel %vm270, %v1987, 0.0
    %2031 = vadd.xlane.f32.xlu0 %v2030
    %v2032 = vpop.xlane.xlu0 %2031
    %v2033 = vrcp.pop 8.0
    %v2034 = vmul.f32 %v2023, %v2033
    %v2035 = vmul.f32 %v2026, %v2033
    %v2036 = vmul.f32 %v2029, %v2033
    %v2037 = vmul.f32 %v2032, %v2033
    %v2038 = vsub.f32 %v1984, %v2034
    %v2039 = vsub.f32 %v1985, %v2035
    %v2040 = vsub.f32 %v1986, %v2036
    %v2041 = vsub.f32 %v1987, %v2037
    %v2042 = vmul.f32 %v2038, %v2038
    %v2043 = vmul.f32 %v2039, %v2039
    %v2044 = vmul.f32 %v2040, %v2040
    %v2045 = vmul.f32 %v2041, %v2041
    %v2046 = vsel %vm270, %v2042, 0.0
    %2047 = vadd.xlane.f32.xlu0 %v2046
    %v2048 = vpop.xlane.xlu0 %2047
    %v2049 = vsel %vm270, %v2043, 0.0
    %2050 = vadd.xlane.f32.xlu0 %v2049
    %v2051 = vpop.xlane.xlu0 %2050
    %v2052 = vsel %vm270, %v2044, 0.0
    %2053 = vadd.xlane.f32.xlu0 %v2052
    %v2054 = vpop.xlane.xlu0 %2053
    %v2055 = vsel %vm270, %v2045, 0.0
    %2056 = vadd.xlane.f32.xlu0 %v2055
    %v2057 = vpop.xlane.xlu0 %2056
    %v2058 = vmul.f32 %v2048, %v2033
    %v2059 = vmul.f32 %v2051, %v2033
    %v2060 = vmul.f32 %v2054, %v2033
    %v2061 = vmul.f32 %v2057, %v2033
    %v2062 = vadd.f32 %v2058, 1e-05
    %v2063 = vadd.f32 %v2059, 1e-05
    %v2064 = vadd.f32 %v2060, 1e-05
    %v2065 = vadd.f32 %v2061, 1e-05
    %v2066 = vrsqrt.pop %v2062
    %v2067 = vrsqrt.pop %v2063
    %v2068 = vrsqrt.pop %v2064
    %v2069 = vrsqrt.pop %v2065
    %v2070 = vmul.f32 %v2038, %v2066
    %v2071 = vmul.f32 %v2039, %v2067
    %v2072 = vmul.f32 %v2040, %v2068
    %v2073 = vmul.f32 %v2041, %v2069
    %v2074 = vlaneseq
    %v2075 = vshrl.u32 %v2074, 7
    %v2076 = vsub.s32 0, %v2075
    %v2077 = vrot.slane %v2000, %v2076
    %v2078 = vmul.f32 %v2070, %v2077
    %v2079 = vmul.f32 %v2071, %v2077
    %v2080 = vmul.f32 %v2072, %v2077
    %v2081 = vmul.f32 %v2073, %v2077
    %v2082 = vlaneseq
    %v2083 = vshrl.u32 %v2082, 7
    %v2084 = vsub.s32 0, %v2083
    %v2085 = vrot.slane %v2001, %v2084
    %v2086 = vadd.f32 %v2078, %v2085
    %v2087 = vadd.f32 %v2079, %v2085
    %v2088 = vadd.f32 %v2080, %v2085
    %v2089 = vadd.f32 %v2081, %v2085
    %v2091 = vsel %vm270, %v2086, 0
    %v2094 = vsel %vm270, %v2087, 0
    %v2097 = vsel %vm270, %v2088, 0
    %v2100 = vsel %vm270, %v2089, 0
    %2102 = vmatprep.subr.mxu0 0.0
    %2103 = vmatpush1.msra.mxu0 %v2007
    %2104 = vmatprep.subr.mxu0 0.0
    %2105 = vmatpush1.msra.mxu0 0.0
    %2106 = vmatprep.subr.mxu0 0.0
    %2107 = vmatpush1.msra.mxu0 0.0
    %2108 = vmatprep.subr.mxu0 0.0
    %2109 = vmatpush1.msra.mxu0 0.0
    %2110 = vmatprep.subr.mxu0 0.0
    %2111 = vmatpush1.msra.mxu0 0.0
    %2112 = vmatprep.subr.mxu0 0.0
    %2113 = vmatpush1.msra.mxu0 0.0
    %2114 = vmatprep.subr.mxu0 0.0
    %2115 = vmatpush1.msra.mxu0 0.0
    %2116 = vmatprep.subr.mxu0 0.0
    %2117 = vmatpush1.msra.mxu0 0.0
    %2118 = vmatprep.subr.mxu0 0.0
    %2119 = vmatpush1.msra.mxu0 0.0
    %2120 = vmatprep.subr.mxu0 0.0
    %2121 = vmatpush1.msra.mxu0 0.0
    %2122 = vmatprep.subr.mxu0 0.0
    %2123 = vmatpush1.msra.mxu0 0.0
    %2124 = vmatprep.subr.mxu0 0.0
    %2125 = vmatpush1.msra.mxu0 0.0
    %2126 = vmatprep.subr.mxu0 0.0
    %2127 = vmatpush1.msra.mxu0 0.0
    %2128 = vmatprep.subr.mxu0 0.0
    %2129 = vmatpush1.msra.mxu0 0.0
    %2130 = vmatprep.subr.mxu0 0.0
    %2131 = vmatpush1.msra.mxu0 0.0
    %2132 = vmatprep.subr.mxu0 0.0
    %2133 = vmatpush1.msra.mxu0 0.0
    %2134 = vmatprep.subr.mxu0 0.0
    %2135 = vmatpush1.msra.mxu0 0.0
    %2136 = vmatprep.subr.mxu0 0.0
    %2137 = vmatpush1.msra.mxu0 0.0
    %2138 = vmatprep.subr.mxu0 0.0
    %2139 = vmatpush1.msra.mxu0 0.0
    %2140 = vmatprep.subr.mxu0 0.0
    %2141 = vmatpush1.msra.mxu0 0.0
    %2142 = vmatprep.subr.mxu0 0.0
    %2143 = vmatpush1.msra.mxu0 0.0
    %2144 = vmatprep.subr.mxu0 0.0
    %2145 = vmatpush1.msra.mxu0 0.0
    %2146 = vmatprep.subr.mxu0 0.0
    %2147 = vmatpush1.msra.mxu0 0.0
    %2148 = vmatprep.subr.mxu0 0.0
    %2149 = vmatpush1.msra.mxu0 0.0
    %2150 = vmatprep.subr.mxu0 0.0
    %2151 = vmatpush1.msra.mxu0 0.0
    %2152 = vmatprep.subr.mxu0 0.0
    %2153 = vmatpush1.msra.mxu0 0.0
    %2154 = vmatprep.subr.mxu0 0.0
    %2155 = vmatpush1.msra.mxu0 0.0
    %2156 = vmatprep.subr.mxu0 0.0
    %2157 = vmatpush1.msra.mxu0 0.0
    %2158 = vmatprep.subr.mxu0 0.0
    %2159 = vmatpush1.msra.mxu0 0.0
    %2160 = vmatprep.subr.mxu0 0.0
    %2161 = vmatpush1.msra.mxu0 0.0
    %2162 = vmatprep.subr.mxu0 0.0
    %2163 = vmatpush1.msra.mxu0 0.0
    %2164 = vmatprep.subr.mxu0 0.0
    %2165 = vmatpush1.msra.mxu0 0.0
    %2166 = vmatprep.mubr.f32.mxu0 0.0
    %2167 = vmatmul.mubr.f32.gmra.mrb[0].mxu0 %v2091
    %v2168 = vpop.f32.mrb[0].mxu0
    %v2169 = vadd.f32 0.0, %v2168
    %v2170 = vpop.f32.mrb[0].mxu0
    %2171 = vmatprep.mubr.f32.mxu0 0.0
    %2172 = vmatmul.mubr.f32.gmra.mrb[0].mxu0 %v2094
    %v2173 = vpop.f32.mrb[0].mxu0
    %v2174 = vadd.f32 0.0, %v2173
    %v2175 = vpop.f32.mrb[0].mxu0
    %2176 = vmatprep.mubr.f32.mxu0 0.0
    %2177 = vmatmul.mubr.f32.gmra.mrb[0].mxu0 %v2097
    %v2178 = vpop.f32.mrb[0].mxu0
    %v2179 = vadd.f32 0.0, %v2178
    %v2180 = vpop.f32.mrb[0].mxu0
    %2181 = vmatprep.mubr.f32.mxu0 0.0
    %2182 = vmatmul.mubr.f32.gmra.mrb[0].mxu0 %v2100
    %v2183 = vpop.f32.mrb[0].mxu0
    %v2184 = vadd.f32 0.0, %v2183
    %v2185 = vpop.f32.mrb[0].mxu0
    %2186 = vdwg.mxu0
    %v2187 = vlaneseq
    %v2188 = vshrl.u32 %v2187, 7
    %v2189 = vsub.s32 0, %v2188
    %v2190 = vrot.slane %v2004, %v2189
    %v2191 = vadd.f32 %v1984, %v2190
    %v2192 = vadd.f32 %v1985, %v2190
    %v2193 = vadd.f32 %v1986, %v2190
    %v2194 = vadd.f32 %v1987, %v2190
    %2199 = vrot.lane.b32.xlu0 %v2169, 96
    %v2200 = vpop.permute.xlu0 %2199
    %2201 = vrot.lane.b32.xlu0 %v2174, 96
    %v2202 = vpop.permute.xlu0 %2201
    %2203 = vrot.lane.b32.xlu0 %v2179, 96
    %v2204 = vpop.permute.xlu0 %2203
    %2205 = vrot.lane.b32.xlu0 %v2184, 96
    %v2206 = vpop.permute.xlu0 %2205
    %v2207 = vsel %vm270, %v2169, 0
    %v2209 = vsel %vm270, %v2174, 0
    %v2211 = vsel %vm270, %v2179, 0
    %v2213 = vsel %vm270, %v2184, 0
    %v2215 = vsel %vm270, %v2200, 0
    %v2217 = vsel %vm270, %v2202, 0
    %v2219 = vsel %vm270, %v2204, 0
    %v2221 = vsel %vm270, %v2206, 0
    %2223 = vmatprep.subr.mxu0 0.0
    %2224 = vmatpush1.xpose.msra.mxu0 %v2215
    %2225 = vmatprep.subr.mxu0 0.0
    %2226 = vmatpush1.xpose.msra.mxu0 %v2217
    %2227 = vmatprep.subr.mxu0 0.0
    %2228 = vmatpush1.xpose.msra.mxu0 %v2219
    %2229 = vmatprep.subr.mxu0 0.0
    %2230 = vmatpush1.xpose.msra.mxu0 %v2221
    %2231 = vmatprep.subr.mxu0 0.0
    %2232 = vmatpush1.xpose.msra.mxu0 0.0
    %2233 = vmatprep.subr.mxu0 0.0
    %2234 = vmatpush1.xpose.msra.mxu0 0.0
    %2235 = vmatprep.subr.mxu0 0.0
    %2236 = vmatpush1.xpose.msra.mxu0 0.0
    %2237 = vmatprep.subr.mxu0 0.0
    %2238 = vmatpush1.xpose.msra.mxu0 0.0
    %2239 = vmatprep.subr.mxu0 0.0
    %2240 = vmatpush1.xpose.msra.mxu0 0.0
    %2241 = vmatprep.subr.mxu0 0.0
    %2242 = vmatpush1.xpose.msra.mxu0 0.0
    %2243 = vmatprep.subr.mxu0 0.0
    %2244 = vmatpush1.xpose.msra.mxu0 0.0
    %2245 = vmatprep.subr.mxu0 0.0
    %2246 = vmatpush1.xpose.msra.mxu0 0.0
    %2247 = vmatprep.subr.mxu0 0.0
    %2248 = vmatpush1.xpose.msra.mxu0 0.0
    %2249 = vmatprep.subr.mxu0 0.0
    %2250 = vmatpush1.xpose.msra.mxu0 0.0
    %2251 = vmatprep.subr.mxu0 0.0
    %2252 = vmatpush1.xpose.msra.mxu0 0.0
    %2253 = vmatprep.subr.mxu0 0.0
    %2254 = vmatpush1.xpose.msra.mxu0 0.0
    %2255 = vmatprep.subr.mxu0 0.0
    %2256 = vmatpush1.xpose.msra.mxu0 0.0
    %2257 = vmatprep.subr.mxu0 0.0
    %2258 = vmatpush1.xpose.msra.mxu0 0.0
    %2259 = vmatprep.subr.mxu0 0.0
    %2260 = vmatpush1.xpose.msra.mxu0 0.0
    %2261 = vmatprep.subr.mxu0 0.0
    %2262 = vmatpush1.xpose.msra.mxu0 0.0
    %2263 = vmatprep.subr.mxu0 0.0
    %2264 = vmatpush1.xpose.msra.mxu0 0.0
    %2265 = vmatprep.subr.mxu0 0.0
    %2266 = vmatpush1.xpose.msra.mxu0 0.0
    %2267 = vmatprep.subr.mxu0 0.0
    %2268 = vmatpush1.xpose.msra.mxu0 0.0
    %2269 = vmatprep.subr.mxu0 0.0
    %2270 = vmatpush1.xpose.msra.mxu0 0.0
    %2271 = vmatprep.subr.mxu0 0.0
    %2272 = vmatpush1.xpose.msra.mxu0 0.0
    %2273 = vmatprep.subr.mxu0 0.0
    %2274 = vmatpush1.xpose.msra.mxu0 0.0
    %2275 = vmatprep.subr.mxu0 0.0
    %2276 = vmatpush1.xpose.msra.mxu0 0.0
    %2277 = vmatprep.subr.mxu0 0.0
    %2278 = vmatpush1.xpose.msra.mxu0 0.0
    %2279 = vmatprep.subr.mxu0 0.0
    %2280 = vmatpush1.xpose.msra.mxu0 0.0
    %2281 = vmatprep.subr.mxu0 0.0
    %2282 = vmatpush1.xpose.msra.mxu0 0.0
    %2283 = vmatprep.subr.mxu0 0.0
    %2284 = vmatpush1.xpose.msra.mxu0 0.0
    %2285 = vmatprep.subr.mxu0 0.0
    %2286 = vmatpush1.xpose.msra.mxu0 0.0
    %2287 = vmatprep.mubr.f32.mxu0 0.0
    %2288 = vmatmul.mubr.f32.gmra.mrb[0].mxu0 %v2207
    %v2289 = vpop.f32.mrb[0].mxu0
    %v2290 = vadd.f32 0.0, %v2289
    %v2291 = vpop.f32.mrb[0].mxu0
    %2292 = vmatprep.mubr.f32.mxu0 0.0
    %2293 = vmatmul.mubr.f32.gmra.mrb[0].mxu0 %v2209
    %v2294 = vpop.f32.mrb[0].mxu0
    %v2295 = vadd.f32 0.0, %v2294
    %v2296 = vpop.f32.mrb[0].mxu0
    %2297 = vmatprep.mubr.f32.mxu0 0.0
    %2298 = vmatmul.mubr.f32.gmra.mrb[0].mxu0 %v2211
    %v2299 = vpop.f32.mrb[0].mxu0
    %v2300 = vadd.f32 0.0, %v2299
    %v2301 = vpop.f32.mrb[0].mxu0
    %2302 = vmatprep.mubr.f32.mxu0 0.0
    %2303 = vmatmul.mubr.f32.gmra.mrb[0].mxu0 %v2213
    %v2304 = vpop.f32.mrb[0].mxu0
    %v2305 = vadd.f32 0.0, %v2304
    %v2306 = vpop.f32.mrb[0].mxu0
    %2307 = vdwg.mxu0
    %v2308 = vmul.f32 %v2290, 0.35355338
    %v2309 = vmul.f32 %v2295, 0.35355338
    %v2310 = vmul.f32 %v2300, 0.35355338
    %v2311 = vmul.f32 %v2305, 0.35355338
    %v2312 = vadd.f32 %v2308, %v136
    %v2313 = vadd.f32 %v2309, %v1997
    %v2314 = vadd.f32 %v2310, %v1998
    %v2315 = vadd.f32 %v2311, %v1999
    %v2316 = vsel %vm164, %v2312, -inf
    %2317 = vmax.xlane.f32.xlu0 %v2316
    %v2318 = vpop.xlane.xlu0 %2317
    %v2319 = vsel %vm164, %v2313, -inf
    %2320 = vmax.xlane.f32.xlu0 %v2319
    %v2321 = vpop.xlane.xlu0 %2320
    %v2322 = vsel %vm164, %v2314, -inf
    %2323 = vmax.xlane.f32.xlu0 %v2322
    %v2324 = vpop.xlane.xlu0 %2323
    %v2325 = vsel %vm164, %v2315, -inf
    %2326 = vmax.xlane.f32.xlu0 %v2325
    %v2327 = vpop.xlane.xlu0 %2326
    %v2328 = vsub.f32 %v2312, %v2318
    %v2329 = vsub.f32 %v2313, %v2321
    %v2330 = vsub.f32 %v2314, %v2324
    %v2331 = vsub.f32 %v2315, %v2327
    %v2332 = vmul.f32 %v2328, 1.442695
    %v2333 = vpow.pop %v2332
    %v2334 = vmul.f32 %v2329, 1.442695
    %v2335 = vpow.pop %v2334
    %v2336 = vmul.f32 %v2330, 1.442695
    %v2337 = vpow.pop %v2336
    %v2338 = vmul.f32 %v2331, 1.442695
    %v2339 = vpow.pop %v2338
    %v2340 = vsel %vm164, %v2333, 0.0
    %2341 = vadd.xlane.f32.xlu0 %v2340
    %v2342 = vpop.xlane.xlu0 %2341
    %v2343 = vsel %vm164, %v2335, 0.0
    %2344 = vadd.xlane.f32.xlu0 %v2343
    %v2345 = vpop.xlane.xlu0 %2344
    %v2346 = vsel %vm164, %v2337, 0.0
    %2347 = vadd.xlane.f32.xlu0 %v2346
    %v2348 = vpop.xlane.xlu0 %2347
    %v2349 = vsel %vm164, %v2339, 0.0
    %2350 = vadd.xlane.f32.xlu0 %v2349
    %v2351 = vpop.xlane.xlu0 %2350
    %v2352 = vrcp.pop %v2342
    %v2353 = vmul.f32 %v2333, %v2352
    %v2354 = vrcp.pop %v2345
    %v2355 = vmul.f32 %v2335, %v2354
    %v2356 = vrcp.pop %v2348
    %v2357 = vmul.f32 %v2337, %v2356
    %v2358 = vrcp.pop %v2351
    %v2359 = vmul.f32 %v2339, %v2358
    %2360 = vrot.lane.b32.xlu0 %v2169, 64
    %v2361 = vpop.permute.xlu0 %2360
    %2362 = vrot.lane.b32.xlu0 %v2174, 64
    %v2363 = vpop.permute.xlu0 %2362
    %2364 = vrot.lane.b32.xlu0 %v2179, 64
    %v2365 = vpop.permute.xlu0 %2364
    %2366 = vrot.lane.b32.xlu0 %v2184, 64
    %v2367 = vpop.permute.xlu0 %2366
    %v2373 = vsel %vm164, %v2353, 0
    %v2376 = vsel %vm164, %v2355, 0
    %v2379 = vsel %vm164, %v2357, 0
    %v2382 = vsel %vm164, %v2359, 0
    %2384 = vmatprep.subr.mxu0 0.0
    %2385 = vmatpush1.msra.mxu0 %v2361
    %2386 = vmatprep.subr.mxu0 0.0
    %2387 = vmatpush1.msra.mxu0 %v2363
    %2388 = vmatprep.subr.mxu0 0.0
    %2389 = vmatpush1.msra.mxu0 %v2365
    %2390 = vmatprep.subr.mxu0 0.0
    %2391 = vmatpush1.msra.mxu0 %v2367
    %2392 = vmatprep.subr.mxu0 0.0
    %2393 = vmatpush1.msra.mxu0 0.0
    %2394 = vmatprep.subr.mxu0 0.0
    %2395 = vmatpush1.msra.mxu0 0.0
    %2396 = vmatprep.subr.mxu0 0.0
    %2397 = vmatpush1.msra.mxu0 0.0
    %2398 = vmatprep.subr.mxu0 0.0
    %2399 = vmatpush1.msra.mxu0 0.0
    %2400 = vmatprep.subr.mxu0 0.0
    %2401 = vmatpush1.msra.mxu0 0.0
    %2402 = vmatprep.subr.mxu0 0.0
    %2403 = vmatpush1.msra.mxu0 0.0
    %2404 = vmatprep.subr.mxu0 0.0
    %2405 = vmatpush1.msra.mxu0 0.0
    %2406 = vmatprep.subr.mxu0 0.0
    %2407 = vmatpush1.msra.mxu0 0.0
    %2408 = vmatprep.subr.mxu0 0.0
    %2409 = vmatpush1.msra.mxu0 0.0
    %2410 = vmatprep.subr.mxu0 0.0
    %2411 = vmatpush1.msra.mxu0 0.0
    %2412 = vmatprep.subr.mxu0 0.0
    %2413 = vmatpush1.msra.mxu0 0.0
    %2414 = vmatprep.subr.mxu0 0.0
    %2415 = vmatpush1.msra.mxu0 0.0
    %2416 = vmatprep.subr.mxu0 0.0
    %2417 = vmatpush1.msra.mxu0 0.0
    %2418 = vmatprep.subr.mxu0 0.0
    %2419 = vmatpush1.msra.mxu0 0.0
    %2420 = vmatprep.subr.mxu0 0.0
    %2421 = vmatpush1.msra.mxu0 0.0
    %2422 = vmatprep.subr.mxu0 0.0
    %2423 = vmatpush1.msra.mxu0 0.0
    %2424 = vmatprep.subr.mxu0 0.0
    %2425 = vmatpush1.msra.mxu0 0.0
    %2426 = vmatprep.subr.mxu0 0.0
    %2427 = vmatpush1.msra.mxu0 0.0
    %2428 = vmatprep.subr.mxu0 0.0
    %2429 = vmatpush1.msra.mxu0 0.0
    %2430 = vmatprep.subr.mxu0 0.0
    %2431 = vmatpush1.msra.mxu0 0.0
    %2432 = vmatprep.subr.mxu0 0.0
    %2433 = vmatpush1.msra.mxu0 0.0
    %2434 = vmatprep.subr.mxu0 0.0
    %2435 = vmatpush1.msra.mxu0 0.0
    %2436 = vmatprep.subr.mxu0 0.0
    %2437 = vmatpush1.msra.mxu0 0.0
    %2438 = vmatprep.subr.mxu0 0.0
    %2439 = vmatpush1.msra.mxu0 0.0
    %2440 = vmatprep.subr.mxu0 0.0
    %2441 = vmatpush1.msra.mxu0 0.0
    %2442 = vmatprep.subr.mxu0 0.0
    %2443 = vmatpush1.msra.mxu0 0.0
    %2444 = vmatprep.subr.mxu0 0.0
    %2445 = vmatpush1.msra.mxu0 0.0
    %2446 = vmatprep.subr.mxu0 0.0
    %2447 = vmatpush1.msra.mxu0 0.0
    %2448 = vmatprep.mubr.f32.mxu0 0.0
    %2449 = vmatmul.mubr.f32.gmra.mrb[0].mxu0 %v2373
    %v2450 = vpop.f32.mrb[0].mxu0
    %v2451 = vadd.f32 0.0, %v2450
    %v2452 = vpop.f32.mrb[0].mxu0
    %2453 = vmatprep.mubr.f32.mxu0 0.0
    %2454 = vmatmul.mubr.f32.gmra.mrb[0].mxu0 %v2376
    %v2455 = vpop.f32.mrb[0].mxu0
    %v2456 = vadd.f32 0.0, %v2455
    %v2457 = vpop.f32.mrb[0].mxu0
    %2458 = vmatprep.mubr.f32.mxu0 0.0
    %2459 = vmatmul.mubr.f32.gmra.mrb[0].mxu0 %v2379
    %v2460 = vpop.f32.mrb[0].mxu0
    %v2461 = vadd.f32 0.0, %v2460
    %v2462 = vpop.f32.mrb[0].mxu0
    %2463 = vmatprep.mubr.f32.mxu0 0.0
    %2464 = vmatmul.mubr.f32.gmra.mrb[0].mxu0 %v2382
    %v2465 = vpop.f32.mrb[0].mxu0
    %v2466 = vadd.f32 0.0, %v2465
    %v2467 = vpop.f32.mrb[0].mxu0
    %2468 = vdwg.mxu0
    %v2470 = vsel %vm270, %v2451, 0
    %v2473 = vsel %vm270, %v2456, 0
    %v2476 = vsel %vm270, %v2461, 0
    %v2479 = vsel %vm270, %v2466, 0
    %2481 = vmatprep.subr.mxu0 0.0
    %2482 = vmatpush1.msra.mxu0 %v2008
    %2483 = vmatprep.subr.mxu0 0.0
    %2484 = vmatpush1.msra.mxu0 0.0
    %2485 = vmatprep.subr.mxu0 0.0
    %2486 = vmatpush1.msra.mxu0 0.0
    %2487 = vmatprep.subr.mxu0 0.0
    %2488 = vmatpush1.msra.mxu0 0.0
    %2489 = vmatprep.subr.mxu0 0.0
    %2490 = vmatpush1.msra.mxu0 0.0
    %2491 = vmatprep.subr.mxu0 0.0
    %2492 = vmatpush1.msra.mxu0 0.0
    %2493 = vmatprep.subr.mxu0 0.0
    %2494 = vmatpush1.msra.mxu0 0.0
    %2495 = vmatprep.subr.mxu0 0.0
    %2496 = vmatpush1.msra.mxu0 0.0
    %2497 = vmatprep.subr.mxu0 0.0
    %2498 = vmatpush1.msra.mxu0 0.0
    %2499 = vmatprep.subr.mxu0 0.0
    %2500 = vmatpush1.msra.mxu0 0.0
    %2501 = vmatprep.subr.mxu0 0.0
    %2502 = vmatpush1.msra.mxu0 0.0
    %2503 = vmatprep.subr.mxu0 0.0
    %2504 = vmatpush1.msra.mxu0 0.0
    %2505 = vmatprep.subr.mxu0 0.0
    %2506 = vmatpush1.msra.mxu0 0.0
    %2507 = vmatprep.subr.mxu0 0.0
    %2508 = vmatpush1.msra.mxu0 0.0
    %2509 = vmatprep.subr.mxu0 0.0
    %2510 = vmatpush1.msra.mxu0 0.0
    %2511 = vmatprep.subr.mxu0 0.0
    %2512 = vmatpush1.msra.mxu0 0.0
    %2513 = vmatprep.subr.mxu0 0.0
    %2514 = vmatpush1.msra.mxu0 0.0
    %2515 = vmatprep.subr.mxu0 0.0
    %2516 = vmatpush1.msra.mxu0 0.0
    %2517 = vmatprep.subr.mxu0 0.0
    %2518 = vmatpush1.msra.mxu0 0.0
    %2519 = vmatprep.subr.mxu0 0.0
    %2520 = vmatpush1.msra.mxu0 0.0
    %2521 = vmatprep.subr.mxu0 0.0
    %2522 = vmatpush1.msra.mxu0 0.0
    %2523 = vmatprep.subr.mxu0 0.0
    %2524 = vmatpush1.msra.mxu0 0.0
    %2525 = vmatprep.subr.mxu0 0.0
    %2526 = vmatpush1.msra.mxu0 0.0
    %2527 = vmatprep.subr.mxu0 0.0
    %2528 = vmatpush1.msra.mxu0 0.0
    %2529 = vmatprep.subr.mxu0 0.0
    %2530 = vmatpush1.msra.mxu0 0.0
    %2531 = vmatprep.subr.mxu0 0.0
    %2532 = vmatpush1.msra.mxu0 0.0
    %2533 = vmatprep.subr.mxu0 0.0
    %2534 = vmatpush1.msra.mxu0 0.0
    %2535 = vmatprep.subr.mxu0 0.0
    %2536 = vmatpush1.msra.mxu0 0.0
    %2537 = vmatprep.subr.mxu0 0.0
    %2538 = vmatpush1.msra.mxu0 0.0
    %2539 = vmatprep.subr.mxu0 0.0
    %2540 = vmatpush1.msra.mxu0 0.0
    %2541 = vmatprep.subr.mxu0 0.0
    %2542 = vmatpush1.msra.mxu0 0.0
    %2543 = vmatprep.subr.mxu0 0.0
    %2544 = vmatpush1.msra.mxu0 0.0
    %2545 = vmatprep.mubr.f32.mxu0 0.0
    %2546 = vmatmul.mubr.f32.gmra.mrb[0].mxu0 %v2470
    %v2547 = vpop.f32.mrb[0].mxu0
    %v2548 = vadd.f32 0.0, %v2547
    %v2549 = vpop.f32.mrb[0].mxu0
    %2550 = vmatprep.mubr.f32.mxu0 0.0
    %2551 = vmatmul.mubr.f32.gmra.mrb[0].mxu0 %v2473
    %v2552 = vpop.f32.mrb[0].mxu0
    %v2553 = vadd.f32 0.0, %v2552
    %v2554 = vpop.f32.mrb[0].mxu0
    %2555 = vmatprep.mubr.f32.mxu0 0.0
    %2556 = vmatmul.mubr.f32.gmra.mrb[0].mxu0 %v2476
    %v2557 = vpop.f32.mrb[0].mxu0
    %v2558 = vadd.f32 0.0, %v2557
    %v2559 = vpop.f32.mrb[0].mxu0
    %2560 = vmatprep.mubr.f32.mxu0 0.0
    %2561 = vmatmul.mubr.f32.gmra.mrb[0].mxu0 %v2479
    %v2562 = vpop.f32.mrb[0].mxu0
    %v2563 = vadd.f32 0.0, %v2562
    %v2564 = vpop.f32.mrb[0].mxu0
    %2565 = vdwg.mxu0
    %v2566 = vadd.f32 %v2191, %v2548
    %v2567 = vadd.f32 %v2192, %v2553
    %v2568 = vadd.f32 %v2193, %v2558
    %v2569 = vadd.f32 %v2194, %v2563
    %2570 = vrot.lane.b32.xlu0 %v2169, 120
    %v2571 = vpop.permute.xlu0 %2570
    %2572 = vrot.lane.b32.xlu0 %v2174, 120
    %v2573 = vpop.permute.xlu0 %2572
    %2574 = vrot.lane.b32.xlu0 %v2179, 120
    %v2575 = vpop.permute.xlu0 %2574
    %2576 = vrot.lane.b32.xlu0 %v2184, 120
    %v2577 = vpop.permute.xlu0 %2576
    %2578 = vrot.lane.b32.xlu0 %v2169, 88
    %v2579 = vpop.permute.xlu0 %2578
    %2580 = vrot.lane.b32.xlu0 %v2174, 88
    %v2581 = vpop.permute.xlu0 %2580
    %2582 = vrot.lane.b32.xlu0 %v2179, 88
    %v2583 = vpop.permute.xlu0 %2582
    %2584 = vrot.lane.b32.xlu0 %v2184, 88
    %v2585 = vpop.permute.xlu0 %2584
    %v2586 = vsel %vm270, %v2571, 0
    %v2588 = vsel %vm270, %v2573, 0
    %v2590 = vsel %vm270, %v2575, 0
    %v2592 = vsel %vm270, %v2577, 0
    %v2594 = vsel %vm270, %v2579, 0
    %v2596 = vsel %vm270, %v2581, 0
    %v2598 = vsel %vm270, %v2583, 0
    %v2600 = vsel %vm270, %v2585, 0
    %2602 = vmatprep.subr.mxu0 0.0
    %2603 = vmatpush1.xpose.msra.mxu0 %v2594
    %2604 = vmatprep.subr.mxu0 0.0
    %2605 = vmatpush1.xpose.msra.mxu0 %v2596
    %2606 = vmatprep.subr.mxu0 0.0
    %2607 = vmatpush1.xpose.msra.mxu0 %v2598
    %2608 = vmatprep.subr.mxu0 0.0
    %2609 = vmatpush1.xpose.msra.mxu0 %v2600
    %2610 = vmatprep.subr.mxu0 0.0
    %2611 = vmatpush1.xpose.msra.mxu0 0.0
    %2612 = vmatprep.subr.mxu0 0.0
    %2613 = vmatpush1.xpose.msra.mxu0 0.0
    %2614 = vmatprep.subr.mxu0 0.0
    %2615 = vmatpush1.xpose.msra.mxu0 0.0
    %2616 = vmatprep.subr.mxu0 0.0
    %2617 = vmatpush1.xpose.msra.mxu0 0.0
    %2618 = vmatprep.subr.mxu0 0.0
    %2619 = vmatpush1.xpose.msra.mxu0 0.0
    %2620 = vmatprep.subr.mxu0 0.0
    %2621 = vmatpush1.xpose.msra.mxu0 0.0
    %2622 = vmatprep.subr.mxu0 0.0
    %2623 = vmatpush1.xpose.msra.mxu0 0.0
    %2624 = vmatprep.subr.mxu0 0.0
    %2625 = vmatpush1.xpose.msra.mxu0 0.0
    %2626 = vmatprep.subr.mxu0 0.0
    %2627 = vmatpush1.xpose.msra.mxu0 0.0
    %2628 = vmatprep.subr.mxu0 0.0
    %2629 = vmatpush1.xpose.msra.mxu0 0.0
    %2630 = vmatprep.subr.mxu0 0.0
    %2631 = vmatpush1.xpose.msra.mxu0 0.0
    %2632 = vmatprep.subr.mxu0 0.0
    %2633 = vmatpush1.xpose.msra.mxu0 0.0
    %2634 = vmatprep.subr.mxu0 0.0
    %2635 = vmatpush1.xpose.msra.mxu0 0.0
    %2636 = vmatprep.subr.mxu0 0.0
    %2637 = vmatpush1.xpose.msra.mxu0 0.0
    %2638 = vmatprep.subr.mxu0 0.0
    %2639 = vmatpush1.xpose.msra.mxu0 0.0
    %2640 = vmatprep.subr.mxu0 0.0
    %2641 = vmatpush1.xpose.msra.mxu0 0.0
    %2642 = vmatprep.subr.mxu0 0.0
    %2643 = vmatpush1.xpose.msra.mxu0 0.0
    %2644 = vmatprep.subr.mxu0 0.0
    %2645 = vmatpush1.xpose.msra.mxu0 0.0
    %2646 = vmatprep.subr.mxu0 0.0
    %2647 = vmatpush1.xpose.msra.mxu0 0.0
    %2648 = vmatprep.subr.mxu0 0.0
    %2649 = vmatpush1.xpose.msra.mxu0 0.0
    %2650 = vmatprep.subr.mxu0 0.0
    %2651 = vmatpush1.xpose.msra.mxu0 0.0
    %2652 = vmatprep.subr.mxu0 0.0
    %2653 = vmatpush1.xpose.msra.mxu0 0.0
    %2654 = vmatprep.subr.mxu0 0.0
    %2655 = vmatpush1.xpose.msra.mxu0 0.0
    %2656 = vmatprep.subr.mxu0 0.0
    %2657 = vmatpush1.xpose.msra.mxu0 0.0
    %2658 = vmatprep.subr.mxu0 0.0
    %2659 = vmatpush1.xpose.msra.mxu0 0.0
    %2660 = vmatprep.subr.mxu0 0.0
    %2661 = vmatpush1.xpose.msra.mxu0 0.0
    %2662 = vmatprep.subr.mxu0 0.0
    %2663 = vmatpush1.xpose.msra.mxu0 0.0
    %2664 = vmatprep.subr.mxu0 0.0
    %2665 = vmatpush1.xpose.msra.mxu0 0.0
    %2666 = vmatprep.mubr.f32.mxu0 0.0
    %2667 = vmatmul.mubr.f32.gmra.mrb[0].mxu0 %v2586
    %v2668 = vpop.f32.mrb[0].mxu0
    %v2669 = vadd.f32 0.0, %v2668
    %v2670 = vpop.f32.mrb[0].mxu0
    %2671 = vmatprep.mubr.f32.mxu0 0.0
    %2672 = vmatmul.mubr.f32.gmra.mrb[0].mxu0 %v2588
    %v2673 = vpop.f32.mrb[0].mxu0
    %v2674 = vadd.f32 0.0, %v2673
    %v2675 = vpop.f32.mrb[0].mxu0
    %2676 = vmatprep.mubr.f32.mxu0 0.0
    %2677 = vmatmul.mubr.f32.gmra.mrb[0].mxu0 %v2590
    %v2678 = vpop.f32.mrb[0].mxu0
    %v2679 = vadd.f32 0.0, %v2678
    %v2680 = vpop.f32.mrb[0].mxu0
    %2681 = vmatprep.mubr.f32.mxu0 0.0
    %2682 = vmatmul.mubr.f32.gmra.mrb[0].mxu0 %v2592
    %v2683 = vpop.f32.mrb[0].mxu0
    %v2684 = vadd.f32 0.0, %v2683
    %v2685 = vpop.f32.mrb[0].mxu0
    %2686 = vdwg.mxu0
    %v2687 = vmul.f32 %v2669, 0.35355338
    %v2688 = vmul.f32 %v2674, 0.35355338
    %v2689 = vmul.f32 %v2679, 0.35355338
    %v2690 = vmul.f32 %v2684, 0.35355338
    %v2691 = vadd.f32 %v2687, %v136
    %v2692 = vadd.f32 %v2688, %v1997
    %v2693 = vadd.f32 %v2689, %v1998
    %v2694 = vadd.f32 %v2690, %v1999
    %v2695 = vsel %vm164, %v2691, -inf
    %2696 = vmax.xlane.f32.xlu0 %v2695
    %v2697 = vpop.xlane.xlu0 %2696
    %v2698 = vsel %vm164, %v2692, -inf
    %2699 = vmax.xlane.f32.xlu0 %v2698
    %v2700 = vpop.xlane.xlu0 %2699
    %v2701 = vsel %vm164, %v2693, -inf
    %2702 = vmax.xlane.f32.xlu0 %v2701
    %v2703 = vpop.xlane.xlu0 %2702
    %v2704 = vsel %vm164, %v2694, -inf
    %2705 = vmax.xlane.f32.xlu0 %v2704
    %v2706 = vpop.xlane.xlu0 %2705
    %v2707 = vsub.f32 %v2691, %v2697
    %v2708 = vsub.f32 %v2692, %v2700
    %v2709 = vsub.f32 %v2693, %v2703
    %v2710 = vsub.f32 %v2694, %v2706
    %v2711 = vmul.f32 %v2707, 1.442695
    %v2712 = vpow.pop %v2711
    %v2713 = vmul.f32 %v2708, 1.442695
    %v2714 = vpow.pop %v2713
    %v2715 = vmul.f32 %v2709, 1.442695
    %v2716 = vpow.pop %v2715
    %v2717 = vmul.f32 %v2710, 1.442695
    %v2718 = vpow.pop %v2717
    %v2719 = vsel %vm164, %v2712, 0.0
    %2720 = vadd.xlane.f32.xlu0 %v2719
    %v2721 = vpop.xlane.xlu0 %2720
    %v2722 = vsel %vm164, %v2714, 0.0
    %2723 = vadd.xlane.f32.xlu0 %v2722
    %v2724 = vpop.xlane.xlu0 %2723
    %v2725 = vsel %vm164, %v2716, 0.0
    %2726 = vadd.xlane.f32.xlu0 %v2725
    %v2727 = vpop.xlane.xlu0 %2726
    %v2728 = vsel %vm164, %v2718, 0.0
    %2729 = vadd.xlane.f32.xlu0 %v2728
    %v2730 = vpop.xlane.xlu0 %2729
    %v2731 = vrcp.pop %v2721
    %v2732 = vmul.f32 %v2712, %v2731
    %v2733 = vrcp.pop %v2724
    %v2734 = vmul.f32 %v2714, %v2733
    %v2735 = vrcp.pop %v2727
    %v2736 = vmul.f32 %v2716, %v2735
    %v2737 = vrcp.pop %v2730
    %v2738 = vmul.f32 %v2718, %v2737
    %2739 = vrot.lane.b32.xlu0 %v2169, 56
    %v2740 = vpop.permute.xlu0 %2739
    %2741 = vrot.lane.b32.xlu0 %v2174, 56
    %v2742 = vpop.permute.xlu0 %2741
    %2743 = vrot.lane.b32.xlu0 %v2179, 56
    %v2744 = vpop.permute.xlu0 %2743
    %2745 = vrot.lane.b32.xlu0 %v2184, 56
    %v2746 = vpop.permute.xlu0 %2745
    %v2752 = vsel %vm164, %v2732, 0
    %v2755 = vsel %vm164, %v2734, 0
    %v2758 = vsel %vm164, %v2736, 0
    %v2761 = vsel %vm164, %v2738, 0
    %2763 = vmatprep.subr.mxu0 0.0
    %2764 = vmatpush1.msra.mxu0 %v2740
    %2765 = vmatprep.subr.mxu0 0.0
    %2766 = vmatpush1.msra.mxu0 %v2742
    %2767 = vmatprep.subr.mxu0 0.0
    %2768 = vmatpush1.msra.mxu0 %v2744
    %2769 = vmatprep.subr.mxu0 0.0
    %2770 = vmatpush1.msra.mxu0 %v2746
    %2771 = vmatprep.subr.mxu0 0.0
    %2772 = vmatpush1.msra.mxu0 0.0
    %2773 = vmatprep.subr.mxu0 0.0
    %2774 = vmatpush1.msra.mxu0 0.0
    %2775 = vmatprep.subr.mxu0 0.0
    %2776 = vmatpush1.msra.mxu0 0.0
    %2777 = vmatprep.subr.mxu0 0.0
    %2778 = vmatpush1.msra.mxu0 0.0
    %2779 = vmatprep.subr.mxu0 0.0
    %2780 = vmatpush1.msra.mxu0 0.0
    %2781 = vmatprep.subr.mxu0 0.0
    %2782 = vmatpush1.msra.mxu0 0.0
    %2783 = vmatprep.subr.mxu0 0.0
    %2784 = vmatpush1.msra.mxu0 0.0
    %2785 = vmatprep.subr.mxu0 0.0
    %2786 = vmatpush1.msra.mxu0 0.0
    %2787 = vmatprep.subr.mxu0 0.0
    %2788 = vmatpush1.msra.mxu0 0.0
    %2789 = vmatprep.subr.mxu0 0.0
    %2790 = vmatpush1.msra.mxu0 0.0
    %2791 = vmatprep.subr.mxu0 0.0
    %2792 = vmatpush1.msra.mxu0 0.0
    %2793 = vmatprep.subr.mxu0 0.0
    %2794 = vmatpush1.msra.mxu0 0.0
    %2795 = vmatprep.subr.mxu0 0.0
    %2796 = vmatpush1.msra.mxu0 0.0
    %2797 = vmatprep.subr.mxu0 0.0
    %2798 = vmatpush1.msra.mxu0 0.0
    %2799 = vmatprep.subr.mxu0 0.0
    %2800 = vmatpush1.msra.mxu0 0.0
    %2801 = vmatprep.subr.mxu0 0.0
    %2802 = vmatpush1.msra.mxu0 0.0
    %2803 = vmatprep.subr.mxu0 0.0
    %2804 = vmatpush1.msra.mxu0 0.0
    %2805 = vmatprep.subr.mxu0 0.0
    %2806 = vmatpush1.msra.mxu0 0.0
    %2807 = vmatprep.subr.mxu0 0.0
    %2808 = vmatpush1.msra.mxu0 0.0
    %2809 = vmatprep.subr.mxu0 0.0
    %2810 = vmatpush1.msra.mxu0 0.0
    %2811 = vmatprep.subr.mxu0 0.0
    %2812 = vmatpush1.msra.mxu0 0.0
    %2813 = vmatprep.subr.mxu0 0.0
    %2814 = vmatpush1.msra.mxu0 0.0
    %2815 = vmatprep.subr.mxu0 0.0
    %2816 = vmatpush1.msra.mxu0 0.0
    %2817 = vmatprep.subr.mxu0 0.0
    %2818 = vmatpush1.msra.mxu0 0.0
    %2819 = vmatprep.subr.mxu0 0.0
    %2820 = vmatpush1.msra.mxu0 0.0
    %2821 = vmatprep.subr.mxu0 0.0
    %2822 = vmatpush1.msra.mxu0 0.0
    %2823 = vmatprep.subr.mxu0 0.0
    %2824 = vmatpush1.msra.mxu0 0.0
    %2825 = vmatprep.subr.mxu0 0.0
    %2826 = vmatpush1.msra.mxu0 0.0
    %2827 = vmatprep.mubr.f32.mxu0 0.0
    %2828 = vmatmul.mubr.f32.gmra.mrb[0].mxu0 %v2752
    %v2829 = vpop.f32.mrb[0].mxu0
    %v2830 = vadd.f32 0.0, %v2829
    %v2831 = vpop.f32.mrb[0].mxu0
    %2832 = vmatprep.mubr.f32.mxu0 0.0
    %2833 = vmatmul.mubr.f32.gmra.mrb[0].mxu0 %v2755
    %v2834 = vpop.f32.mrb[0].mxu0
    %v2835 = vadd.f32 0.0, %v2834
    %v2836 = vpop.f32.mrb[0].mxu0
    %2837 = vmatprep.mubr.f32.mxu0 0.0
    %2838 = vmatmul.mubr.f32.gmra.mrb[0].mxu0 %v2758
    %v2839 = vpop.f32.mrb[0].mxu0
    %v2840 = vadd.f32 0.0, %v2839
    %v2841 = vpop.f32.mrb[0].mxu0
    %2842 = vmatprep.mubr.f32.mxu0 0.0
    %2843 = vmatmul.mubr.f32.gmra.mrb[0].mxu0 %v2761
    %v2844 = vpop.f32.mrb[0].mxu0
    %v2845 = vadd.f32 0.0, %v2844
    %v2846 = vpop.f32.mrb[0].mxu0
    %2847 = vdwg.mxu0
    %v2849 = vsel %vm270, %v2830, 0
    %v2852 = vsel %vm270, %v2835, 0
    %v2855 = vsel %vm270, %v2840, 0
    %v2858 = vsel %vm270, %v2845, 0
    %2860 = vmatprep.subr.mxu0 0.0
    %2861 = vmatpush1.msra.mxu0 %v2009
    %2862 = vmatprep.subr.mxu0 0.0
    %2863 = vmatpush1.msra.mxu0 0.0
    %2864 = vmatprep.subr.mxu0 0.0
    %2865 = vmatpush1.msra.mxu0 0.0
    %2866 = vmatprep.subr.mxu0 0.0
    %2867 = vmatpush1.msra.mxu0 0.0
    %2868 = vmatprep.subr.mxu0 0.0
    %2869 = vmatpush1.msra.mxu0 0.0
    %2870 = vmatprep.subr.mxu0 0.0
    %2871 = vmatpush1.msra.mxu0 0.0
    %2872 = vmatprep.subr.mxu0 0.0
    %2873 = vmatpush1.msra.mxu0 0.0
    %2874 = vmatprep.subr.mxu0 0.0
    %2875 = vmatpush1.msra.mxu0 0.0
    %2876 = vmatprep.subr.mxu0 0.0
    %2877 = vmatpush1.msra.mxu0 0.0
    %2878 = vmatprep.subr.mxu0 0.0
    %2879 = vmatpush1.msra.mxu0 0.0
    %2880 = vmatprep.subr.mxu0 0.0
    %2881 = vmatpush1.msra.mxu0 0.0
    %2882 = vmatprep.subr.mxu0 0.0
    %2883 = vmatpush1.msra.mxu0 0.0
    %2884 = vmatprep.subr.mxu0 0.0
    %2885 = vmatpush1.msra.mxu0 0.0
    %2886 = vmatprep.subr.mxu0 0.0
    %2887 = vmatpush1.msra.mxu0 0.0
    %2888 = vmatprep.subr.mxu0 0.0
    %2889 = vmatpush1.msra.mxu0 0.0
    %2890 = vmatprep.subr.mxu0 0.0
    %2891 = vmatpush1.msra.mxu0 0.0
    %2892 = vmatprep.subr.mxu0 0.0
    %2893 = vmatpush1.msra.mxu0 0.0
    %2894 = vmatprep.subr.mxu0 0.0
    %2895 = vmatpush1.msra.mxu0 0.0
    %2896 = vmatprep.subr.mxu0 0.0
    %2897 = vmatpush1.msra.mxu0 0.0
    %2898 = vmatprep.subr.mxu0 0.0
    %2899 = vmatpush1.msra.mxu0 0.0
    %2900 = vmatprep.subr.mxu0 0.0
    %2901 = vmatpush1.msra.mxu0 0.0
    %2902 = vmatprep.subr.mxu0 0.0
    %2903 = vmatpush1.msra.mxu0 0.0
    %2904 = vmatprep.subr.mxu0 0.0
    %2905 = vmatpush1.msra.mxu0 0.0
    %2906 = vmatprep.subr.mxu0 0.0
    %2907 = vmatpush1.msra.mxu0 0.0
    %2908 = vmatprep.subr.mxu0 0.0
    %2909 = vmatpush1.msra.mxu0 0.0
    %2910 = vmatprep.subr.mxu0 0.0
    %2911 = vmatpush1.msra.mxu0 0.0
    %2912 = vmatprep.subr.mxu0 0.0
    %2913 = vmatpush1.msra.mxu0 0.0
    %2914 = vmatprep.subr.mxu0 0.0
    %2915 = vmatpush1.msra.mxu0 0.0
    %2916 = vmatprep.subr.mxu0 0.0
    %2917 = vmatpush1.msra.mxu0 0.0
    %2918 = vmatprep.subr.mxu0 0.0
    %2919 = vmatpush1.msra.mxu0 0.0
    %2920 = vmatprep.subr.mxu0 0.0
    %2921 = vmatpush1.msra.mxu0 0.0
    %2922 = vmatprep.subr.mxu0 0.0
    %2923 = vmatpush1.msra.mxu0 0.0
    %2924 = vmatprep.mubr.f32.mxu0 0.0
    %2925 = vmatmul.mubr.f32.gmra.mrb[0].mxu0 %v2849
    %v2926 = vpop.f32.mrb[0].mxu0
    %v2927 = vadd.f32 0.0, %v2926
    %v2928 = vpop.f32.mrb[0].mxu0
    %2929 = vmatprep.mubr.f32.mxu0 0.0
    %2930 = vmatmul.mubr.f32.gmra.mrb[0].mxu0 %v2852
    %v2931 = vpop.f32.mrb[0].mxu0
    %v2932 = vadd.f32 0.0, %v2931
    %v2933 = vpop.f32.mrb[0].mxu0
    %2934 = vmatprep.mubr.f32.mxu0 0.0
    %2935 = vmatmul.mubr.f32.gmra.mrb[0].mxu0 %v2855
    %v2936 = vpop.f32.mrb[0].mxu0
    %v2937 = vadd.f32 0.0, %v2936
    %v2938 = vpop.f32.mrb[0].mxu0
    %2939 = vmatprep.mubr.f32.mxu0 0.0
    %2940 = vmatmul.mubr.f32.gmra.mrb[0].mxu0 %v2858
    %v2941 = vpop.f32.mrb[0].mxu0
    %v2942 = vadd.f32 0.0, %v2941
    %v2943 = vpop.f32.mrb[0].mxu0
    %2944 = vdwg.mxu0
    %v2945 = vadd.f32 %v2566, %v2927
    %v2946 = vadd.f32 %v2567, %v2932
    %v2947 = vadd.f32 %v2568, %v2937
    %v2948 = vadd.f32 %v2569, %v2942
    %2949 = vrot.lane.b32.xlu0 %v2169, 112
    %v2950 = vpop.permute.xlu0 %2949
    %2951 = vrot.lane.b32.xlu0 %v2174, 112
    %v2952 = vpop.permute.xlu0 %2951
    %2953 = vrot.lane.b32.xlu0 %v2179, 112
    %v2954 = vpop.permute.xlu0 %2953
    %2955 = vrot.lane.b32.xlu0 %v2184, 112
    %v2956 = vpop.permute.xlu0 %2955
    %2957 = vrot.lane.b32.xlu0 %v2169, 80
    %v2958 = vpop.permute.xlu0 %2957
    %2959 = vrot.lane.b32.xlu0 %v2174, 80
    %v2960 = vpop.permute.xlu0 %2959
    %2961 = vrot.lane.b32.xlu0 %v2179, 80
    %v2962 = vpop.permute.xlu0 %2961
    %2963 = vrot.lane.b32.xlu0 %v2184, 80
    %v2964 = vpop.permute.xlu0 %2963
    %v2965 = vsel %vm270, %v2950, 0
    %v2967 = vsel %vm270, %v2952, 0
    %v2969 = vsel %vm270, %v2954, 0
    %v2971 = vsel %vm270, %v2956, 0
    %v2973 = vsel %vm270, %v2958, 0
    %v2975 = vsel %vm270, %v2960, 0
    %v2977 = vsel %vm270, %v2962, 0
    %v2979 = vsel %vm270, %v2964, 0
    %2981 = vmatprep.subr.mxu0 0.0
    %2982 = vmatpush1.xpose.msra.mxu0 %v2973
    %2983 = vmatprep.subr.mxu0 0.0
    %2984 = vmatpush1.xpose.msra.mxu0 %v2975
    %2985 = vmatprep.subr.mxu0 0.0
    %2986 = vmatpush1.xpose.msra.mxu0 %v2977
    %2987 = vmatprep.subr.mxu0 0.0
    %2988 = vmatpush1.xpose.msra.mxu0 %v2979
    %2989 = vmatprep.subr.mxu0 0.0
    %2990 = vmatpush1.xpose.msra.mxu0 0.0
    %2991 = vmatprep.subr.mxu0 0.0
    %2992 = vmatpush1.xpose.msra.mxu0 0.0
    %2993 = vmatprep.subr.mxu0 0.0
    %2994 = vmatpush1.xpose.msra.mxu0 0.0
    %2995 = vmatprep.subr.mxu0 0.0
    %2996 = vmatpush1.xpose.msra.mxu0 0.0
    %2997 = vmatprep.subr.mxu0 0.0
    %2998 = vmatpush1.xpose.msra.mxu0 0.0
    %2999 = vmatprep.subr.mxu0 0.0
    %3000 = vmatpush1.xpose.msra.mxu0 0.0
    %3001 = vmatprep.subr.mxu0 0.0
    %3002 = vmatpush1.xpose.msra.mxu0 0.0
    %3003 = vmatprep.subr.mxu0 0.0
    %3004 = vmatpush1.xpose.msra.mxu0 0.0
    %3005 = vmatprep.subr.mxu0 0.0
    %3006 = vmatpush1.xpose.msra.mxu0 0.0
    %3007 = vmatprep.subr.mxu0 0.0
    %3008 = vmatpush1.xpose.msra.mxu0 0.0
    %3009 = vmatprep.subr.mxu0 0.0
    %3010 = vmatpush1.xpose.msra.mxu0 0.0
    %3011 = vmatprep.subr.mxu0 0.0
    %3012 = vmatpush1.xpose.msra.mxu0 0.0
    %3013 = vmatprep.subr.mxu0 0.0
    %3014 = vmatpush1.xpose.msra.mxu0 0.0
    %3015 = vmatprep.subr.mxu0 0.0
    %3016 = vmatpush1.xpose.msra.mxu0 0.0
    %3017 = vmatprep.subr.mxu0 0.0
    %3018 = vmatpush1.xpose.msra.mxu0 0.0
    %3019 = vmatprep.subr.mxu0 0.0
    %3020 = vmatpush1.xpose.msra.mxu0 0.0
    %3021 = vmatprep.subr.mxu0 0.0
    %3022 = vmatpush1.xpose.msra.mxu0 0.0
    %3023 = vmatprep.subr.mxu0 0.0
    %3024 = vmatpush1.xpose.msra.mxu0 0.0
    %3025 = vmatprep.subr.mxu0 0.0
    %3026 = vmatpush1.xpose.msra.mxu0 0.0
    %3027 = vmatprep.subr.mxu0 0.0
    %3028 = vmatpush1.xpose.msra.mxu0 0.0
    %3029 = vmatprep.subr.mxu0 0.0
    %3030 = vmatpush1.xpose.msra.mxu0 0.0
    %3031 = vmatprep.subr.mxu0 0.0
    %3032 = vmatpush1.xpose.msra.mxu0 0.0
    %3033 = vmatprep.subr.mxu0 0.0
    %3034 = vmatpush1.xpose.msra.mxu0 0.0
    %3035 = vmatprep.subr.mxu0 0.0
    %3036 = vmatpush1.xpose.msra.mxu0 0.0
    %3037 = vmatprep.subr.mxu0 0.0
    %3038 = vmatpush1.xpose.msra.mxu0 0.0
    %3039 = vmatprep.subr.mxu0 0.0
    %3040 = vmatpush1.xpose.msra.mxu0 0.0
    %3041 = vmatprep.subr.mxu0 0.0
    %3042 = vmatpush1.xpose.msra.mxu0 0.0
    %3043 = vmatprep.subr.mxu0 0.0
    %3044 = vmatpush1.xpose.msra.mxu0 0.0
    %3045 = vmatprep.mubr.f32.mxu0 0.0
    %3046 = vmatmul.mubr.f32.gmra.mrb[0].mxu0 %v2965
    %v3047 = vpop.f32.mrb[0].mxu0
    %v3048 = vadd.f32 0.0, %v3047
    %v3049 = vpop.f32.mrb[0].mxu0
    %3050 = vmatprep.mubr.f32.mxu0 0.0
    %3051 = vmatmul.mubr.f32.gmra.mrb[0].mxu0 %v2967
    %v3052 = vpop.f32.mrb[0].mxu0
    %v3053 = vadd.f32 0.0, %v3052
    %v3054 = vpop.f32.mrb[0].mxu0
    %3055 = vmatprep.mubr.f32.mxu0 0.0
    %3056 = vmatmul.mubr.f32.gmra.mrb[0].mxu0 %v2969
    %v3057 = vpop.f32.mrb[0].mxu0
    %v3058 = vadd.f32 0.0, %v3057
    %v3059 = vpop.f32.mrb[0].mxu0
    %3060 = vmatprep.mubr.f32.mxu0 0.0
    %3061 = vmatmul.mubr.f32.gmra.mrb[0].mxu0 %v2971
    %v3062 = vpop.f32.mrb[0].mxu0
    %v3063 = vadd.f32 0.0, %v3062
    %v3064 = vpop.f32.mrb[0].mxu0
    %3065 = vdwg.mxu0
    %v3066 = vmul.f32 %v3048, 0.35355338
    %v3067 = vmul.f32 %v3053, 0.35355338
    %v3068 = vmul.f32 %v3058, 0.35355338
    %v3069 = vmul.f32 %v3063, 0.35355338
    %v3070 = vadd.f32 %v3066, %v136
    %v3071 = vadd.f32 %v3067, %v1997
    %v3072 = vadd.f32 %v3068, %v1998
    %v3073 = vadd.f32 %v3069, %v1999
    %v3074 = vsel %vm164, %v3070, -inf
    %3075 = vmax.xlane.f32.xlu0 %v3074
    %v3076 = vpop.xlane.xlu0 %3075
    %v3077 = vsel %vm164, %v3071, -inf
    %3078 = vmax.xlane.f32.xlu0 %v3077
    %v3079 = vpop.xlane.xlu0 %3078
    %v3080 = vsel %vm164, %v3072, -inf
    %3081 = vmax.xlane.f32.xlu0 %v3080
    %v3082 = vpop.xlane.xlu0 %3081
    %v3083 = vsel %vm164, %v3073, -inf
    %3084 = vmax.xlane.f32.xlu0 %v3083
    %v3085 = vpop.xlane.xlu0 %3084
    %v3086 = vsub.f32 %v3070, %v3076
    %v3087 = vsub.f32 %v3071, %v3079
    %v3088 = vsub.f32 %v3072, %v3082
    %v3089 = vsub.f32 %v3073, %v3085
    %v3090 = vmul.f32 %v3086, 1.442695
    %v3091 = vpow.pop %v3090
    %v3092 = vmul.f32 %v3087, 1.442695
    %v3093 = vpow.pop %v3092
    %v3094 = vmul.f32 %v3088, 1.442695
    %v3095 = vpow.pop %v3094
    %v3096 = vmul.f32 %v3089, 1.442695
    %v3097 = vpow.pop %v3096
    %v3098 = vsel %vm164, %v3091, 0.0
    %3099 = vadd.xlane.f32.xlu0 %v3098
    %v3100 = vpop.xlane.xlu0 %3099
    %v3101 = vsel %vm164, %v3093, 0.0
    %3102 = vadd.xlane.f32.xlu0 %v3101
    %v3103 = vpop.xlane.xlu0 %3102
    %v3104 = vsel %vm164, %v3095, 0.0
    %3105 = vadd.xlane.f32.xlu0 %v3104
    %v3106 = vpop.xlane.xlu0 %3105
    %v3107 = vsel %vm164, %v3097, 0.0
    %3108 = vadd.xlane.f32.xlu0 %v3107
    %v3109 = vpop.xlane.xlu0 %3108
    %v3110 = vrcp.pop %v3100
    %v3111 = vmul.f32 %v3091, %v3110
    %v3112 = vrcp.pop %v3103
    %v3113 = vmul.f32 %v3093, %v3112
    %v3114 = vrcp.pop %v3106
    %v3115 = vmul.f32 %v3095, %v3114
    %v3116 = vrcp.pop %v3109
    %v3117 = vmul.f32 %v3097, %v3116
    %3118 = vrot.lane.b32.xlu0 %v2169, 48
    %v3119 = vpop.permute.xlu0 %3118
    %3120 = vrot.lane.b32.xlu0 %v2174, 48
    %v3121 = vpop.permute.xlu0 %3120
    %3122 = vrot.lane.b32.xlu0 %v2179, 48
    %v3123 = vpop.permute.xlu0 %3122
    %3124 = vrot.lane.b32.xlu0 %v2184, 48
    %v3125 = vpop.permute.xlu0 %3124
    %v3131 = vsel %vm164, %v3111, 0
    %v3134 = vsel %vm164, %v3113, 0
    %v3137 = vsel %vm164, %v3115, 0
    %v3140 = vsel %vm164, %v3117, 0
    %3142 = vmatprep.subr.mxu0 0.0
    %3143 = vmatpush1.msra.mxu0 %v3119
    %3144 = vmatprep.subr.mxu0 0.0
    %3145 = vmatpush1.msra.mxu0 %v3121
    %3146 = vmatprep.subr.mxu0 0.0
    %3147 = vmatpush1.msra.mxu0 %v3123
    %3148 = vmatprep.subr.mxu0 0.0
    %3149 = vmatpush1.msra.mxu0 %v3125
    %3150 = vmatprep.subr.mxu0 0.0
    %3151 = vmatpush1.msra.mxu0 0.0
    %3152 = vmatprep.subr.mxu0 0.0
    %3153 = vmatpush1.msra.mxu0 0.0
    %3154 = vmatprep.subr.mxu0 0.0
    %3155 = vmatpush1.msra.mxu0 0.0
    %3156 = vmatprep.subr.mxu0 0.0
    %3157 = vmatpush1.msra.mxu0 0.0
    %3158 = vmatprep.subr.mxu0 0.0
    %3159 = vmatpush1.msra.mxu0 0.0
    %3160 = vmatprep.subr.mxu0 0.0
    %3161 = vmatpush1.msra.mxu0 0.0
    %3162 = vmatprep.subr.mxu0 0.0
    %3163 = vmatpush1.msra.mxu0 0.0
    %3164 = vmatprep.subr.mxu0 0.0
    %3165 = vmatpush1.msra.mxu0 0.0
    %3166 = vmatprep.subr.mxu0 0.0
    %3167 = vmatpush1.msra.mxu0 0.0
    %3168 = vmatprep.subr.mxu0 0.0
    %3169 = vmatpush1.msra.mxu0 0.0
    %3170 = vmatprep.subr.mxu0 0.0
    %3171 = vmatpush1.msra.mxu0 0.0
    %3172 = vmatprep.subr.mxu0 0.0
    %3173 = vmatpush1.msra.mxu0 0.0
    %3174 = vmatprep.subr.mxu0 0.0
    %3175 = vmatpush1.msra.mxu0 0.0
    %3176 = vmatprep.subr.mxu0 0.0
    %3177 = vmatpush1.msra.mxu0 0.0
    %3178 = vmatprep.subr.mxu0 0.0
    %3179 = vmatpush1.msra.mxu0 0.0
    %3180 = vmatprep.subr.mxu0 0.0
    %3181 = vmatpush1.msra.mxu0 0.0
    %3182 = vmatprep.subr.mxu0 0.0
    %3183 = vmatpush1.msra.mxu0 0.0
    %3184 = vmatprep.subr.mxu0 0.0
    %3185 = vmatpush1.msra.mxu0 0.0
    %3186 = vmatprep.subr.mxu0 0.0
    %3187 = vmatpush1.msra.mxu0 0.0
    %3188 = vmatprep.subr.mxu0 0.0
    %3189 = vmatpush1.msra.mxu0 0.0
    %3190 = vmatprep.subr.mxu0 0.0
    %3191 = vmatpush1.msra.mxu0 0.0
    %3192 = vmatprep.subr.mxu0 0.0
    %3193 = vmatpush1.msra.mxu0 0.0
    %3194 = vmatprep.subr.mxu0 0.0
    %3195 = vmatpush1.msra.mxu0 0.0
    %3196 = vmatprep.subr.mxu0 0.0
    %3197 = vmatpush1.msra.mxu0 0.0
    %3198 = vmatprep.subr.mxu0 0.0
    %3199 = vmatpush1.msra.mxu0 0.0
    %3200 = vmatprep.subr.mxu0 0.0
    %3201 = vmatpush1.msra.mxu0 0.0
    %3202 = vmatprep.subr.mxu0 0.0
    %3203 = vmatpush1.msra.mxu0 0.0
    %3204 = vmatprep.subr.mxu0 0.0
    %3205 = vmatpush1.msra.mxu0 0.0
    %3206 = vmatprep.mubr.f32.mxu0 0.0
    %3207 = vmatmul.mubr.f32.gmra.mrb[0].mxu0 %v3131
    %v3208 = vpop.f32.mrb[0].mxu0
    %v3209 = vadd.f32 0.0, %v3208
    %v3210 = vpop.f32.mrb[0].mxu0
    %3211 = vmatprep.mubr.f32.mxu0 0.0
    %3212 = vmatmul.mubr.f32.gmra.mrb[0].mxu0 %v3134
    %v3213 = vpop.f32.mrb[0].mxu0
    %v3214 = vadd.f32 0.0, %v3213
    %v3215 = vpop.f32.mrb[0].mxu0
    %3216 = vmatprep.mubr.f32.mxu0 0.0
    %3217 = vmatmul.mubr.f32.gmra.mrb[0].mxu0 %v3137
    %v3218 = vpop.f32.mrb[0].mxu0
    %v3219 = vadd.f32 0.0, %v3218
    %v3220 = vpop.f32.mrb[0].mxu0
    %3221 = vmatprep.mubr.f32.mxu0 0.0
    %3222 = vmatmul.mubr.f32.gmra.mrb[0].mxu0 %v3140
    %v3223 = vpop.f32.mrb[0].mxu0
    %v3224 = vadd.f32 0.0, %v3223
    %v3225 = vpop.f32.mrb[0].mxu0
    %3226 = vdwg.mxu0
    %v3228 = vsel %vm270, %v3209, 0
    %v3231 = vsel %vm270, %v3214, 0
    %v3234 = vsel %vm270, %v3219, 0
    %v3237 = vsel %vm270, %v3224, 0
    %3239 = vmatprep.subr.mxu0 0.0
    %3240 = vmatpush1.msra.mxu0 %v2010
    %3241 = vmatprep.subr.mxu0 0.0
    %3242 = vmatpush1.msra.mxu0 0.0
    %3243 = vmatprep.subr.mxu0 0.0
    %3244 = vmatpush1.msra.mxu0 0.0
    %3245 = vmatprep.subr.mxu0 0.0
    %3246 = vmatpush1.msra.mxu0 0.0
    %3247 = vmatprep.subr.mxu0 0.0
    %3248 = vmatpush1.msra.mxu0 0.0
    %3249 = vmatprep.subr.mxu0 0.0
    %3250 = vmatpush1.msra.mxu0 0.0
    %3251 = vmatprep.subr.mxu0 0.0
    %3252 = vmatpush1.msra.mxu0 0.0
    %3253 = vmatprep.subr.mxu0 0.0
    %3254 = vmatpush1.msra.mxu0 0.0
    %3255 = vmatprep.subr.mxu0 0.0
    %3256 = vmatpush1.msra.mxu0 0.0
    %3257 = vmatprep.subr.mxu0 0.0
    %3258 = vmatpush1.msra.mxu0 0.0
    %3259 = vmatprep.subr.mxu0 0.0
    %3260 = vmatpush1.msra.mxu0 0.0
    %3261 = vmatprep.subr.mxu0 0.0
    %3262 = vmatpush1.msra.mxu0 0.0
    %3263 = vmatprep.subr.mxu0 0.0
    %3264 = vmatpush1.msra.mxu0 0.0
    %3265 = vmatprep.subr.mxu0 0.0
    %3266 = vmatpush1.msra.mxu0 0.0
    %3267 = vmatprep.subr.mxu0 0.0
    %3268 = vmatpush1.msra.mxu0 0.0
    %3269 = vmatprep.subr.mxu0 0.0
    %3270 = vmatpush1.msra.mxu0 0.0
    %3271 = vmatprep.subr.mxu0 0.0
    %3272 = vmatpush1.msra.mxu0 0.0
    %3273 = vmatprep.subr.mxu0 0.0
    %3274 = vmatpush1.msra.mxu0 0.0
    %3275 = vmatprep.subr.mxu0 0.0
    %3276 = vmatpush1.msra.mxu0 0.0
    %3277 = vmatprep.subr.mxu0 0.0
    %3278 = vmatpush1.msra.mxu0 0.0
    %3279 = vmatprep.subr.mxu0 0.0
    %3280 = vmatpush1.msra.mxu0 0.0
    %3281 = vmatprep.subr.mxu0 0.0
    %3282 = vmatpush1.msra.mxu0 0.0
    %3283 = vmatprep.subr.mxu0 0.0
    %3284 = vmatpush1.msra.mxu0 0.0
    %3285 = vmatprep.subr.mxu0 0.0
    %3286 = vmatpush1.msra.mxu0 0.0
    %3287 = vmatprep.subr.mxu0 0.0
    %3288 = vmatpush1.msra.mxu0 0.0
    %3289 = vmatprep.subr.mxu0 0.0
    %3290 = vmatpush1.msra.mxu0 0.0
    %3291 = vmatprep.subr.mxu0 0.0
    %3292 = vmatpush1.msra.mxu0 0.0
    %3293 = vmatprep.subr.mxu0 0.0
    %3294 = vmatpush1.msra.mxu0 0.0
    %3295 = vmatprep.subr.mxu0 0.0
    %3296 = vmatpush1.msra.mxu0 0.0
    %3297 = vmatprep.subr.mxu0 0.0
    %3298 = vmatpush1.msra.mxu0 0.0
    %3299 = vmatprep.subr.mxu0 0.0
    %3300 = vmatpush1.msra.mxu0 0.0
    %3301 = vmatprep.subr.mxu0 0.0
    %3302 = vmatpush1.msra.mxu0 0.0
    %3303 = vmatprep.mubr.f32.mxu0 0.0
    %3304 = vmatmul.mubr.f32.gmra.mrb[0].mxu0 %v3228
    %v3305 = vpop.f32.mrb[0].mxu0
    %v3306 = vadd.f32 0.0, %v3305
    %v3307 = vpop.f32.mrb[0].mxu0
    %3308 = vmatprep.mubr.f32.mxu0 0.0
    %3309 = vmatmul.mubr.f32.gmra.mrb[0].mxu0 %v3231
    %v3310 = vpop.f32.mrb[0].mxu0
    %v3311 = vadd.f32 0.0, %v3310
    %v3312 = vpop.f32.mrb[0].mxu0
    %3313 = vmatprep.mubr.f32.mxu0 0.0
    %3314 = vmatmul.mubr.f32.gmra.mrb[0].mxu0 %v3234
    %v3315 = vpop.f32.mrb[0].mxu0
    %v3316 = vadd.f32 0.0, %v3315
    %v3317 = vpop.f32.mrb[0].mxu0
    %3318 = vmatprep.mubr.f32.mxu0 0.0
    %3319 = vmatmul.mubr.f32.gmra.mrb[0].mxu0 %v3237
    %v3320 = vpop.f32.mrb[0].mxu0
    %v3321 = vadd.f32 0.0, %v3320
    %v3322 = vpop.f32.mrb[0].mxu0
    %3323 = vdwg.mxu0
    %v3324 = vadd.f32 %v2945, %v3306
    %v3325 = vadd.f32 %v2946, %v3311
    %v3326 = vadd.f32 %v2947, %v3316
    %v3327 = vadd.f32 %v2948, %v3321
    %3328 = vrot.lane.b32.xlu0 %v2169, 104
    %v3329 = vpop.permute.xlu0 %3328
    %3330 = vrot.lane.b32.xlu0 %v2174, 104
    %v3331 = vpop.permute.xlu0 %3330
    %3332 = vrot.lane.b32.xlu0 %v2179, 104
    %v3333 = vpop.permute.xlu0 %3332
    %3334 = vrot.lane.b32.xlu0 %v2184, 104
    %v3335 = vpop.permute.xlu0 %3334
    %3336 = vrot.lane.b32.xlu0 %v2169, 72
    %v3337 = vpop.permute.xlu0 %3336
    %3338 = vrot.lane.b32.xlu0 %v2174, 72
    %v3339 = vpop.permute.xlu0 %3338
    %3340 = vrot.lane.b32.xlu0 %v2179, 72
    %v3341 = vpop.permute.xlu0 %3340
    %3342 = vrot.lane.b32.xlu0 %v2184, 72
    %v3343 = vpop.permute.xlu0 %3342
    %v3344 = vsel %vm270, %v3329, 0
    %v3346 = vsel %vm270, %v3331, 0
    %v3348 = vsel %vm270, %v3333, 0
    %v3350 = vsel %vm270, %v3335, 0
    %v3352 = vsel %vm270, %v3337, 0
    %v3354 = vsel %vm270, %v3339, 0
    %v3356 = vsel %vm270, %v3341, 0
    %v3358 = vsel %vm270, %v3343, 0
    %3360 = vmatprep.subr.mxu0 0.0
    %3361 = vmatpush1.xpose.msra.mxu0 %v3352
    %3362 = vmatprep.subr.mxu0 0.0
    %3363 = vmatpush1.xpose.msra.mxu0 %v3354
    %3364 = vmatprep.subr.mxu0 0.0
    %3365 = vmatpush1.xpose.msra.mxu0 %v3356
    %3366 = vmatprep.subr.mxu0 0.0
    %3367 = vmatpush1.xpose.msra.mxu0 %v3358
    %3368 = vmatprep.subr.mxu0 0.0
    %3369 = vmatpush1.xpose.msra.mxu0 0.0
    %3370 = vmatprep.subr.mxu0 0.0
    %3371 = vmatpush1.xpose.msra.mxu0 0.0
    %3372 = vmatprep.subr.mxu0 0.0
    %3373 = vmatpush1.xpose.msra.mxu0 0.0
    %3374 = vmatprep.subr.mxu0 0.0
    %3375 = vmatpush1.xpose.msra.mxu0 0.0
    %3376 = vmatprep.subr.mxu0 0.0
    %3377 = vmatpush1.xpose.msra.mxu0 0.0
    %3378 = vmatprep.subr.mxu0 0.0
    %3379 = vmatpush1.xpose.msra.mxu0 0.0
    %3380 = vmatprep.subr.mxu0 0.0
    %3381 = vmatpush1.xpose.msra.mxu0 0.0
    %3382 = vmatprep.subr.mxu0 0.0
    %3383 = vmatpush1.xpose.msra.mxu0 0.0
    %3384 = vmatprep.subr.mxu0 0.0
    %3385 = vmatpush1.xpose.msra.mxu0 0.0
    %3386 = vmatprep.subr.mxu0 0.0
    %3387 = vmatpush1.xpose.msra.mxu0 0.0
    %3388 = vmatprep.subr.mxu0 0.0
    %3389 = vmatpush1.xpose.msra.mxu0 0.0
    %3390 = vmatprep.subr.mxu0 0.0
    %3391 = vmatpush1.xpose.msra.mxu0 0.0
    %3392 = vmatprep.subr.mxu0 0.0
    %3393 = vmatpush1.xpose.msra.mxu0 0.0
    %3394 = vmatprep.subr.mxu0 0.0
    %3395 = vmatpush1.xpose.msra.mxu0 0.0
    %3396 = vmatprep.subr.mxu0 0.0
    %3397 = vmatpush1.xpose.msra.mxu0 0.0
    %3398 = vmatprep.subr.mxu0 0.0
    %3399 = vmatpush1.xpose.msra.mxu0 0.0
    %3400 = vmatprep.subr.mxu0 0.0
    %3401 = vmatpush1.xpose.msra.mxu0 0.0
    %3402 = vmatprep.subr.mxu0 0.0
    %3403 = vmatpush1.xpose.msra.mxu0 0.0
    %3404 = vmatprep.subr.mxu0 0.0
    %3405 = vmatpush1.xpose.msra.mxu0 0.0
    %3406 = vmatprep.subr.mxu0 0.0
    %3407 = vmatpush1.xpose.msra.mxu0 0.0
    %3408 = vmatprep.subr.mxu0 0.0
    %3409 = vmatpush1.xpose.msra.mxu0 0.0
    %3410 = vmatprep.subr.mxu0 0.0
    %3411 = vmatpush1.xpose.msra.mxu0 0.0
    %3412 = vmatprep.subr.mxu0 0.0
    %3413 = vmatpush1.xpose.msra.mxu0 0.0
    %3414 = vmatprep.subr.mxu0 0.0
    %3415 = vmatpush1.xpose.msra.mxu0 0.0
    %3416 = vmatprep.subr.mxu0 0.0
    %3417 = vmatpush1.xpose.msra.mxu0 0.0
    %3418 = vmatprep.subr.mxu0 0.0
    %3419 = vmatpush1.xpose.msra.mxu0 0.0
    %3420 = vmatprep.subr.mxu0 0.0
    %3421 = vmatpush1.xpose.msra.mxu0 0.0
    %3422 = vmatprep.subr.mxu0 0.0
    %3423 = vmatpush1.xpose.msra.mxu0 0.0
    %3424 = vmatprep.mubr.f32.mxu0 0.0
    %3425 = vmatmul.mubr.f32.gmra.mrb[0].mxu0 %v3344
    %v3426 = vpop.f32.mrb[0].mxu0
    %v3427 = vadd.f32 0.0, %v3426
    %v3428 = vpop.f32.mrb[0].mxu0
    %3429 = vmatprep.mubr.f32.mxu0 0.0
    %3430 = vmatmul.mubr.f32.gmra.mrb[0].mxu0 %v3346
    %v3431 = vpop.f32.mrb[0].mxu0
    %v3432 = vadd.f32 0.0, %v3431
    %v3433 = vpop.f32.mrb[0].mxu0
    %3434 = vmatprep.mubr.f32.mxu0 0.0
    %3435 = vmatmul.mubr.f32.gmra.mrb[0].mxu0 %v3348
    %v3436 = vpop.f32.mrb[0].mxu0
    %v3437 = vadd.f32 0.0, %v3436
    %v3438 = vpop.f32.mrb[0].mxu0
    %3439 = vmatprep.mubr.f32.mxu0 0.0
    %3440 = vmatmul.mubr.f32.gmra.mrb[0].mxu0 %v3350
    %v3441 = vpop.f32.mrb[0].mxu0
    %v3442 = vadd.f32 0.0, %v3441
    %v3443 = vpop.f32.mrb[0].mxu0
    %3444 = vdwg.mxu0
    %v3445 = vmul.f32 %v3427, 0.35355338
    %v3446 = vmul.f32 %v3432, 0.35355338
    %v3447 = vmul.f32 %v3437, 0.35355338
    %v3448 = vmul.f32 %v3442, 0.35355338
    %v3449 = vadd.f32 %v3445, %v136
    %v3450 = vadd.f32 %v3446, %v1997
    %v3451 = vadd.f32 %v3447, %v1998
    %v3452 = vadd.f32 %v3448, %v1999
    %v3453 = vsel %vm164, %v3449, -inf
    %3454 = vmax.xlane.f32.xlu0 %v3453
    %v3455 = vpop.xlane.xlu0 %3454
    %v3456 = vsel %vm164, %v3450, -inf
    %3457 = vmax.xlane.f32.xlu0 %v3456
    %v3458 = vpop.xlane.xlu0 %3457
    %v3459 = vsel %vm164, %v3451, -inf
    %3460 = vmax.xlane.f32.xlu0 %v3459
    %v3461 = vpop.xlane.xlu0 %3460
    %v3462 = vsel %vm164, %v3452, -inf
    %3463 = vmax.xlane.f32.xlu0 %v3462
    %v3464 = vpop.xlane.xlu0 %3463
    %v3465 = vsub.f32 %v3449, %v3455
    %v3466 = vsub.f32 %v3450, %v3458
    %v3467 = vsub.f32 %v3451, %v3461
    %v3468 = vsub.f32 %v3452, %v3464
    %v3469 = vmul.f32 %v3465, 1.442695
    %v3470 = vpow.pop %v3469
    %v3471 = vmul.f32 %v3466, 1.442695
    %v3472 = vpow.pop %v3471
    %v3473 = vmul.f32 %v3467, 1.442695
    %v3474 = vpow.pop %v3473
    %v3475 = vmul.f32 %v3468, 1.442695
    %v3476 = vpow.pop %v3475
    %v3477 = vsel %vm164, %v3470, 0.0
    %3478 = vadd.xlane.f32.xlu0 %v3477
    %v3479 = vpop.xlane.xlu0 %3478
    %v3480 = vsel %vm164, %v3472, 0.0
    %3481 = vadd.xlane.f32.xlu0 %v3480
    %v3482 = vpop.xlane.xlu0 %3481
    %v3483 = vsel %vm164, %v3474, 0.0
    %3484 = vadd.xlane.f32.xlu0 %v3483
    %v3485 = vpop.xlane.xlu0 %3484
    %v3486 = vsel %vm164, %v3476, 0.0
    %3487 = vadd.xlane.f32.xlu0 %v3486
    %v3488 = vpop.xlane.xlu0 %3487
    %v3489 = vrcp.pop %v3479
    %v3490 = vmul.f32 %v3470, %v3489
    %v3491 = vrcp.pop %v3482
    %v3492 = vmul.f32 %v3472, %v3491
    %v3493 = vrcp.pop %v3485
    %v3494 = vmul.f32 %v3474, %v3493
    %v3495 = vrcp.pop %v3488
    %v3496 = vmul.f32 %v3476, %v3495
    %3497 = vrot.lane.b32.xlu0 %v2169, 40
    %v3498 = vpop.permute.xlu0 %3497
    %3499 = vrot.lane.b32.xlu0 %v2174, 40
    %v3500 = vpop.permute.xlu0 %3499
    %3501 = vrot.lane.b32.xlu0 %v2179, 40
    %v3502 = vpop.permute.xlu0 %3501
    %3503 = vrot.lane.b32.xlu0 %v2184, 40
    %v3504 = vpop.permute.xlu0 %3503
    %v3510 = vsel %vm164, %v3490, 0
    %v3513 = vsel %vm164, %v3492, 0
    %v3516 = vsel %vm164, %v3494, 0
    %v3519 = vsel %vm164, %v3496, 0
    %3521 = vmatprep.subr.mxu0 0.0
    %3522 = vmatpush1.msra.mxu0 %v3498
    %3523 = vmatprep.subr.mxu0 0.0
    %3524 = vmatpush1.msra.mxu0 %v3500
    %3525 = vmatprep.subr.mxu0 0.0
    %3526 = vmatpush1.msra.mxu0 %v3502
    %3527 = vmatprep.subr.mxu0 0.0
    %3528 = vmatpush1.msra.mxu0 %v3504
    %3529 = vmatprep.subr.mxu0 0.0
    %3530 = vmatpush1.msra.mxu0 0.0
    %3531 = vmatprep.subr.mxu0 0.0
    %3532 = vmatpush1.msra.mxu0 0.0
    %3533 = vmatprep.subr.mxu0 0.0
    %3534 = vmatpush1.msra.mxu0 0.0
    %3535 = vmatprep.subr.mxu0 0.0
    %3536 = vmatpush1.msra.mxu0 0.0
    %3537 = vmatprep.subr.mxu0 0.0
    %3538 = vmatpush1.msra.mxu0 0.0
    %3539 = vmatprep.subr.mxu0 0.0
    %3540 = vmatpush1.msra.mxu0 0.0
    %3541 = vmatprep.subr.mxu0 0.0
    %3542 = vmatpush1.msra.mxu0 0.0
    %3543 = vmatprep.subr.mxu0 0.0
    %3544 = vmatpush1.msra.mxu0 0.0
    %3545 = vmatprep.subr.mxu0 0.0
    %3546 = vmatpush1.msra.mxu0 0.0
    %3547 = vmatprep.subr.mxu0 0.0
    %3548 = vmatpush1.msra.mxu0 0.0
    %3549 = vmatprep.subr.mxu0 0.0
    %3550 = vmatpush1.msra.mxu0 0.0
    %3551 = vmatprep.subr.mxu0 0.0
    %3552 = vmatpush1.msra.mxu0 0.0
    %3553 = vmatprep.subr.mxu0 0.0
    %3554 = vmatpush1.msra.mxu0 0.0
    %3555 = vmatprep.subr.mxu0 0.0
    %3556 = vmatpush1.msra.mxu0 0.0
    %3557 = vmatprep.subr.mxu0 0.0
    %3558 = vmatpush1.msra.mxu0 0.0
    %3559 = vmatprep.subr.mxu0 0.0
    %3560 = vmatpush1.msra.mxu0 0.0
    %3561 = vmatprep.subr.mxu0 0.0
    %3562 = vmatpush1.msra.mxu0 0.0
    %3563 = vmatprep.subr.mxu0 0.0
    %3564 = vmatpush1.msra.mxu0 0.0
    %3565 = vmatprep.subr.mxu0 0.0
    %3566 = vmatpush1.msra.mxu0 0.0
    %3567 = vmatprep.subr.mxu0 0.0
    %3568 = vmatpush1.msra.mxu0 0.0
    %3569 = vmatprep.subr.mxu0 0.0
    %3570 = vmatpush1.msra.mxu0 0.0
    %3571 = vmatprep.subr.mxu0 0.0
    %3572 = vmatpush1.msra.mxu0 0.0
    %3573 = vmatprep.subr.mxu0 0.0
    %3574 = vmatpush1.msra.mxu0 0.0
    %3575 = vmatprep.subr.mxu0 0.0
    %3576 = vmatpush1.msra.mxu0 0.0
    %3577 = vmatprep.subr.mxu0 0.0
    %3578 = vmatpush1.msra.mxu0 0.0
    %3579 = vmatprep.subr.mxu0 0.0
    %3580 = vmatpush1.msra.mxu0 0.0
    %3581 = vmatprep.subr.mxu0 0.0
    %3582 = vmatpush1.msra.mxu0 0.0
    %3583 = vmatprep.subr.mxu0 0.0
    %3584 = vmatpush1.msra.mxu0 0.0
    %3585 = vmatprep.mubr.f32.mxu0 0.0
    %3586 = vmatmul.mubr.f32.gmra.mrb[0].mxu0 %v3510
    %v3587 = vpop.f32.mrb[0].mxu0
    %v3588 = vadd.f32 0.0, %v3587
    %v3589 = vpop.f32.mrb[0].mxu0
    %3590 = vmatprep.mubr.f32.mxu0 0.0
    %3591 = vmatmul.mubr.f32.gmra.mrb[0].mxu0 %v3513
    %v3592 = vpop.f32.mrb[0].mxu0
    %v3593 = vadd.f32 0.0, %v3592
    %v3594 = vpop.f32.mrb[0].mxu0
    %3595 = vmatprep.mubr.f32.mxu0 0.0
    %3596 = vmatmul.mubr.f32.gmra.mrb[0].mxu0 %v3516
    %v3597 = vpop.f32.mrb[0].mxu0
    %v3598 = vadd.f32 0.0, %v3597
    %v3599 = vpop.f32.mrb[0].mxu0
    %3600 = vmatprep.mubr.f32.mxu0 0.0
    %3601 = vmatmul.mubr.f32.gmra.mrb[0].mxu0 %v3519
    %v3602 = vpop.f32.mrb[0].mxu0
    %v3603 = vadd.f32 0.0, %v3602
    %v3604 = vpop.f32.mrb[0].mxu0
    %3605 = vdwg.mxu0
    %v3607 = vsel %vm270, %v3588, 0
    %v3610 = vsel %vm270, %v3593, 0
    %v3613 = vsel %vm270, %v3598, 0
    %v3616 = vsel %vm270, %v3603, 0
    %3618 = vmatprep.subr.mxu0 0.0
    %3619 = vmatpush1.msra.mxu0 %v2011
    %3620 = vmatprep.subr.mxu0 0.0
    %3621 = vmatpush1.msra.mxu0 0.0
    %3622 = vmatprep.subr.mxu0 0.0
    %3623 = vmatpush1.msra.mxu0 0.0
    %3624 = vmatprep.subr.mxu0 0.0
    %3625 = vmatpush1.msra.mxu0 0.0
    %3626 = vmatprep.subr.mxu0 0.0
    %3627 = vmatpush1.msra.mxu0 0.0
    %3628 = vmatprep.subr.mxu0 0.0
    %3629 = vmatpush1.msra.mxu0 0.0
    %3630 = vmatprep.subr.mxu0 0.0
    %3631 = vmatpush1.msra.mxu0 0.0
    %3632 = vmatprep.subr.mxu0 0.0
    %3633 = vmatpush1.msra.mxu0 0.0
    %3634 = vmatprep.subr.mxu0 0.0
    %3635 = vmatpush1.msra.mxu0 0.0
    %3636 = vmatprep.subr.mxu0 0.0
    %3637 = vmatpush1.msra.mxu0 0.0
    %3638 = vmatprep.subr.mxu0 0.0
    %3639 = vmatpush1.msra.mxu0 0.0
    %3640 = vmatprep.subr.mxu0 0.0
    %3641 = vmatpush1.msra.mxu0 0.0
    %3642 = vmatprep.subr.mxu0 0.0
    %3643 = vmatpush1.msra.mxu0 0.0
    %3644 = vmatprep.subr.mxu0 0.0
    %3645 = vmatpush1.msra.mxu0 0.0
    %3646 = vmatprep.subr.mxu0 0.0
    %3647 = vmatpush1.msra.mxu0 0.0
    %3648 = vmatprep.subr.mxu0 0.0
    %3649 = vmatpush1.msra.mxu0 0.0
    %3650 = vmatprep.subr.mxu0 0.0
    %3651 = vmatpush1.msra.mxu0 0.0
    %3652 = vmatprep.subr.mxu0 0.0
    %3653 = vmatpush1.msra.mxu0 0.0
    %3654 = vmatprep.subr.mxu0 0.0
    %3655 = vmatpush1.msra.mxu0 0.0
    %3656 = vmatprep.subr.mxu0 0.0
    %3657 = vmatpush1.msra.mxu0 0.0
    %3658 = vmatprep.subr.mxu0 0.0
    %3659 = vmatpush1.msra.mxu0 0.0
    %3660 = vmatprep.subr.mxu0 0.0
    %3661 = vmatpush1.msra.mxu0 0.0
    %3662 = vmatprep.subr.mxu0 0.0
    %3663 = vmatpush1.msra.mxu0 0.0
    %3664 = vmatprep.subr.mxu0 0.0
    %3665 = vmatpush1.msra.mxu0 0.0
    %3666 = vmatprep.subr.mxu0 0.0
    %3667 = vmatpush1.msra.mxu0 0.0
    %3668 = vmatprep.subr.mxu0 0.0
    %3669 = vmatpush1.msra.mxu0 0.0
    %3670 = vmatprep.subr.mxu0 0.0
    %3671 = vmatpush1.msra.mxu0 0.0
    %3672 = vmatprep.subr.mxu0 0.0
    %3673 = vmatpush1.msra.mxu0 0.0
    %3674 = vmatprep.subr.mxu0 0.0
    %3675 = vmatpush1.msra.mxu0 0.0
    %3676 = vmatprep.subr.mxu0 0.0
    %3677 = vmatpush1.msra.mxu0 0.0
    %3678 = vmatprep.subr.mxu0 0.0
    %3679 = vmatpush1.msra.mxu0 0.0
    %3680 = vmatprep.subr.mxu0 0.0
    %3681 = vmatpush1.msra.mxu0 0.0
    %3682 = vmatprep.mubr.f32.mxu0 0.0
    %3683 = vmatmul.mubr.f32.gmra.mrb[0].mxu0 %v3607
    %v3684 = vpop.f32.mrb[0].mxu0
    %v3685 = vadd.f32 0.0, %v3684
    %v3686 = vpop.f32.mrb[0].mxu0
    %3687 = vmatprep.mubr.f32.mxu0 0.0
    %3688 = vmatmul.mubr.f32.gmra.mrb[0].mxu0 %v3610
    %v3689 = vpop.f32.mrb[0].mxu0
    %v3690 = vadd.f32 0.0, %v3689
    %v3691 = vpop.f32.mrb[0].mxu0
    %3692 = vmatprep.mubr.f32.mxu0 0.0
    %3693 = vmatmul.mubr.f32.gmra.mrb[0].mxu0 %v3613
    %v3694 = vpop.f32.mrb[0].mxu0
    %v3695 = vadd.f32 0.0, %v3694
    %v3696 = vpop.f32.mrb[0].mxu0
    %3697 = vmatprep.mubr.f32.mxu0 0.0
    %3698 = vmatmul.mubr.f32.gmra.mrb[0].mxu0 %v3616
    %v3699 = vpop.f32.mrb[0].mxu0
    %v3700 = vadd.f32 0.0, %v3699
    %v3701 = vpop.f32.mrb[0].mxu0
    %3702 = vdwg.mxu0
    %v3703 = vadd.f32 %v3324, %v3685
    %v3704 = vadd.f32 %v3325, %v3690
    %v3705 = vadd.f32 %v3326, %v3695
    %v3706 = vadd.f32 %v3327, %v3700
    %v3707 = vsel %vm270, %v3703, 0.0
    %3708 = vadd.xlane.f32.xlu0 %v3707
    %v3709 = vpop.xlane.xlu0 %3708
    %v3710 = vsel %vm270, %v3704, 0.0
    %3711 = vadd.xlane.f32.xlu0 %v3710
    %v3712 = vpop.xlane.xlu0 %3711
    %v3713 = vsel %vm270, %v3705, 0.0
    %3714 = vadd.xlane.f32.xlu0 %v3713
    %v3715 = vpop.xlane.xlu0 %3714
    %v3716 = vsel %vm270, %v3706, 0.0
    %3717 = vadd.xlane.f32.xlu0 %v3716
    %v3718 = vpop.xlane.xlu0 %3717
    %v3719 = vmul.f32 %v3709, %v2033
    %v3720 = vmul.f32 %v3712, %v2033
    %v3721 = vmul.f32 %v3715, %v2033
    %v3722 = vmul.f32 %v3718, %v2033
    %v3723 = vsub.f32 %v3703, %v3719
    %v3724 = vsub.f32 %v3704, %v3720
    %v3725 = vsub.f32 %v3705, %v3721
    %v3726 = vsub.f32 %v3706, %v3722
    %v3727 = vmul.f32 %v3723, %v3723
    %v3728 = vmul.f32 %v3724, %v3724
    %v3729 = vmul.f32 %v3725, %v3725
    %v3730 = vmul.f32 %v3726, %v3726
    %v3731 = vsel %vm270, %v3727, 0.0
    %3732 = vadd.xlane.f32.xlu0 %v3731
    %v3733 = vpop.xlane.xlu0 %3732
    %v3734 = vsel %vm270, %v3728, 0.0
    %3735 = vadd.xlane.f32.xlu0 %v3734
    %v3736 = vpop.xlane.xlu0 %3735
    %v3737 = vsel %vm270, %v3729, 0.0
    %3738 = vadd.xlane.f32.xlu0 %v3737
    %v3739 = vpop.xlane.xlu0 %3738
    %v3740 = vsel %vm270, %v3730, 0.0
    %3741 = vadd.xlane.f32.xlu0 %v3740
    %v3742 = vpop.xlane.xlu0 %3741
    %v3743 = vmul.f32 %v3733, %v2033
    %v3744 = vmul.f32 %v3736, %v2033
    %v3745 = vmul.f32 %v3739, %v2033
    %v3746 = vmul.f32 %v3742, %v2033
    %v3747 = vadd.f32 %v3743, 1e-05
    %v3748 = vadd.f32 %v3744, 1e-05
    %v3749 = vadd.f32 %v3745, 1e-05
    %v3750 = vadd.f32 %v3746, 1e-05
    %v3751 = vrsqrt.pop %v3747
    %v3752 = vrsqrt.pop %v3748
    %v3753 = vrsqrt.pop %v3749
    %v3754 = vrsqrt.pop %v3750
    %v3755 = vmul.f32 %v3723, %v3751
    %v3756 = vmul.f32 %v3724, %v3752
    %v3757 = vmul.f32 %v3725, %v3753
    %v3758 = vmul.f32 %v3726, %v3754
    %v3759 = vlaneseq
    %v3760 = vshrl.u32 %v3759, 7
    %v3761 = vsub.s32 0, %v3760
    %v3762 = vrot.slane %v2002, %v3761
    %v3763 = vmul.f32 %v3755, %v3762
    %v3764 = vmul.f32 %v3756, %v3762
    %v3765 = vmul.f32 %v3757, %v3762
    %v3766 = vmul.f32 %v3758, %v3762
    %v3767 = vlaneseq
    %v3768 = vshrl.u32 %v3767, 7
    %v3769 = vsub.s32 0, %v3768
    %v3770 = vrot.slane %v2003, %v3769
    %v3771 = vadd.f32 %v3763, %v3770
    %v3772 = vadd.f32 %v3764, %v3770
    %v3773 = vadd.f32 %v3765, %v3770
    %v3774 = vadd.f32 %v3766, %v3770
    %v3775 = vlaneseq
    %v3776 = vshrl.u32 %v3775, 7
    %v3777 = vsub.s32 0, %v3776
    %v3778 = vrot.slane %v2005, %v3777
    %v3780 = vsel %vm270, %v3771, 0
    %v3783 = vsel %vm270, %v3772, 0
    %v3786 = vsel %vm270, %v3773, 0
    %v3789 = vsel %vm270, %v3774, 0
    %3791 = vmatprep.subr.mxu0 0.0
    %3792 = vmatpush1.msra.mxu0 %v2012
    %3793 = vmatprep.subr.mxu0 0.0
    %3794 = vmatpush1.msra.mxu0 0.0
    %3795 = vmatprep.subr.mxu0 0.0
    %3796 = vmatpush1.msra.mxu0 0.0
    %3797 = vmatprep.subr.mxu0 0.0
    %3798 = vmatpush1.msra.mxu0 0.0
    %3799 = vmatprep.subr.mxu0 0.0
    %3800 = vmatpush1.msra.mxu0 0.0
    %3801 = vmatprep.subr.mxu0 0.0
    %3802 = vmatpush1.msra.mxu0 0.0
    %3803 = vmatprep.subr.mxu0 0.0
    %3804 = vmatpush1.msra.mxu0 0.0
    %3805 = vmatprep.subr.mxu0 0.0
    %3806 = vmatpush1.msra.mxu0 0.0
    %3807 = vmatprep.subr.mxu0 0.0
    %3808 = vmatpush1.msra.mxu0 0.0
    %3809 = vmatprep.subr.mxu0 0.0
    %3810 = vmatpush1.msra.mxu0 0.0
    %3811 = vmatprep.subr.mxu0 0.0
    %3812 = vmatpush1.msra.mxu0 0.0
    %3813 = vmatprep.subr.mxu0 0.0
    %3814 = vmatpush1.msra.mxu0 0.0
    %3815 = vmatprep.subr.mxu0 0.0
    %3816 = vmatpush1.msra.mxu0 0.0
    %3817 = vmatprep.subr.mxu0 0.0
    %3818 = vmatpush1.msra.mxu0 0.0
    %3819 = vmatprep.subr.mxu0 0.0
    %3820 = vmatpush1.msra.mxu0 0.0
    %3821 = vmatprep.subr.mxu0 0.0
    %3822 = vmatpush1.msra.mxu0 0.0
    %3823 = vmatprep.subr.mxu0 0.0
    %3824 = vmatpush1.msra.mxu0 0.0
    %3825 = vmatprep.subr.mxu0 0.0
    %3826 = vmatpush1.msra.mxu0 0.0
    %3827 = vmatprep.subr.mxu0 0.0
    %3828 = vmatpush1.msra.mxu0 0.0
    %3829 = vmatprep.subr.mxu0 0.0
    %3830 = vmatpush1.msra.mxu0 0.0
    %3831 = vmatprep.subr.mxu0 0.0
    %3832 = vmatpush1.msra.mxu0 0.0
    %3833 = vmatprep.subr.mxu0 0.0
    %3834 = vmatpush1.msra.mxu0 0.0
    %3835 = vmatprep.subr.mxu0 0.0
    %3836 = vmatpush1.msra.mxu0 0.0
    %3837 = vmatprep.subr.mxu0 0.0
    %3838 = vmatpush1.msra.mxu0 0.0
    %3839 = vmatprep.subr.mxu0 0.0
    %3840 = vmatpush1.msra.mxu0 0.0
    %3841 = vmatprep.subr.mxu0 0.0
    %3842 = vmatpush1.msra.mxu0 0.0
    %3843 = vmatprep.subr.mxu0 0.0
    %3844 = vmatpush1.msra.mxu0 0.0
    %3845 = vmatprep.subr.mxu0 0.0
    %3846 = vmatpush1.msra.mxu0 0.0
    %3847 = vmatprep.subr.mxu0 0.0
    %3848 = vmatpush1.msra.mxu0 0.0
    %3849 = vmatprep.subr.mxu0 0.0
    %3850 = vmatpush1.msra.mxu0 0.0
    %3851 = vmatprep.subr.mxu0 0.0
    %3852 = vmatpush1.msra.mxu0 0.0
    %3853 = vmatprep.subr.mxu0 0.0
    %3854 = vmatpush1.msra.mxu0 0.0
    %3855 = vmatprep.mubr.f32.mxu0 0.0
    %3856 = vmatmul.mubr.f32.gmra.mrb[0].mxu0 %v3780
    %v3857 = vpop.f32.mrb[0].mxu0
    %v3858 = vadd.f32 %v3778, %v3857
    %v3859 = vpop.f32.mrb[0].mxu0
    %3860 = vmatprep.mubr.f32.mxu0 0.0
    %3861 = vmatmul.mubr.f32.gmra.mrb[0].mxu0 %v3783
    %v3862 = vpop.f32.mrb[0].mxu0
    %v3863 = vadd.f32 %v3778, %v3862
    %v3864 = vpop.f32.mrb[0].mxu0
    %3865 = vmatprep.mubr.f32.mxu0 0.0
    %3866 = vmatmul.mubr.f32.gmra.mrb[0].mxu0 %v3786
    %v3867 = vpop.f32.mrb[0].mxu0
    %v3868 = vadd.f32 %v3778, %v3867
    %v3869 = vpop.f32.mrb[0].mxu0
    %3870 = vmatprep.mubr.f32.mxu0 0.0
    %3871 = vmatmul.mubr.f32.gmra.mrb[0].mxu0 %v3789
    %v3872 = vpop.f32.mrb[0].mxu0
    %v3873 = vadd.f32 %v3778, %v3872
    %v3874 = vpop.f32.mrb[0].mxu0
    %3875 = vdwg.mxu0
    %v3876 = vmax.f32 %v3858, 0.0
    %v3877 = vmax.f32 %v3863, 0.0
    %v3878 = vmax.f32 %v3868, 0.0
    %v3879 = vmax.f32 %v3873, 0.0
    %v3881 = vsel %vm47, %v3876, 0
    %v3884 = vsel %vm47, %v3877, 0
    %v3887 = vsel %vm47, %v3878, 0
    %v3890 = vsel %vm47, %v3879, 0
    %3892 = vmatprep.subr.mxu0 0.0
    %3893 = vmatpush1.msra.mxu0 %v2013
    %3894 = vmatprep.subr.mxu0 0.0
    %3895 = vmatpush1.msra.mxu0 %v2014
    %3896 = vmatprep.subr.mxu0 0.0
    %3897 = vmatpush1.msra.mxu0 %v2015
    %3898 = vmatprep.subr.mxu0 0.0
    %3899 = vmatpush1.msra.mxu0 %v2016
    %3900 = vmatprep.subr.mxu0 0.0
    %3901 = vmatpush1.msra.mxu0 %v2017
    %3902 = vmatprep.subr.mxu0 0.0
    %3903 = vmatpush1.msra.mxu0 %v2018
    %3904 = vmatprep.subr.mxu0 0.0
    %3905 = vmatpush1.msra.mxu0 %v2019
    %3906 = vmatprep.subr.mxu0 0.0
    %3907 = vmatpush1.msra.mxu0 %v2020
    %3908 = vmatprep.subr.mxu0 0.0
    %3909 = vmatpush1.msra.mxu0 0.0
    %3910 = vmatprep.subr.mxu0 0.0
    %3911 = vmatpush1.msra.mxu0 0.0
    %3912 = vmatprep.subr.mxu0 0.0
    %3913 = vmatpush1.msra.mxu0 0.0
    %3914 = vmatprep.subr.mxu0 0.0
    %3915 = vmatpush1.msra.mxu0 0.0
    %3916 = vmatprep.subr.mxu0 0.0
    %3917 = vmatpush1.msra.mxu0 0.0
    %3918 = vmatprep.subr.mxu0 0.0
    %3919 = vmatpush1.msra.mxu0 0.0
    %3920 = vmatprep.subr.mxu0 0.0
    %3921 = vmatpush1.msra.mxu0 0.0
    %3922 = vmatprep.subr.mxu0 0.0
    %3923 = vmatpush1.msra.mxu0 0.0
    %3924 = vmatprep.subr.mxu0 0.0
    %3925 = vmatpush1.msra.mxu0 0.0
    %3926 = vmatprep.subr.mxu0 0.0
    %3927 = vmatpush1.msra.mxu0 0.0
    %3928 = vmatprep.subr.mxu0 0.0
    %3929 = vmatpush1.msra.mxu0 0.0
    %3930 = vmatprep.subr.mxu0 0.0
    %3931 = vmatpush1.msra.mxu0 0.0
    %3932 = vmatprep.subr.mxu0 0.0
    %3933 = vmatpush1.msra.mxu0 0.0
    %3934 = vmatprep.subr.mxu0 0.0
    %3935 = vmatpush1.msra.mxu0 0.0
    %3936 = vmatprep.subr.mxu0 0.0
    %3937 = vmatpush1.msra.mxu0 0.0
    %3938 = vmatprep.subr.mxu0 0.0
    %3939 = vmatpush1.msra.mxu0 0.0
    %3940 = vmatprep.subr.mxu0 0.0
    %3941 = vmatpush1.msra.mxu0 0.0
    %3942 = vmatprep.subr.mxu0 0.0
    %3943 = vmatpush1.msra.mxu0 0.0
    %3944 = vmatprep.subr.mxu0 0.0
    %3945 = vmatpush1.msra.mxu0 0.0
    %3946 = vmatprep.subr.mxu0 0.0
    %3947 = vmatpush1.msra.mxu0 0.0
    %3948 = vmatprep.subr.mxu0 0.0
    %3949 = vmatpush1.msra.mxu0 0.0
    %3950 = vmatprep.subr.mxu0 0.0
    %3951 = vmatpush1.msra.mxu0 0.0
    %3952 = vmatprep.subr.mxu0 0.0
    %3953 = vmatpush1.msra.mxu0 0.0
    %3954 = vmatprep.subr.mxu0 0.0
    %3955 = vmatpush1.msra.mxu0 0.0
    %3956 = vmatprep.mubr.f32.mxu0 0.0
    %3957 = vmatmul.mubr.f32.gmra.mrb[0].mxu0 %v3881
    %v3958 = vpop.f32.mrb[0].mxu0
    %v3959 = vadd.f32 0.0, %v3958
    %v3960 = vpop.f32.mrb[0].mxu0
    %3961 = vmatprep.mubr.f32.mxu0 0.0
    %3962 = vmatmul.mubr.f32.gmra.mrb[0].mxu0 %v3884
    %v3963 = vpop.f32.mrb[0].mxu0
    %v3964 = vadd.f32 0.0, %v3963
    %v3965 = vpop.f32.mrb[0].mxu0
    %3966 = vmatprep.mubr.f32.mxu0 0.0
    %3967 = vmatmul.mubr.f32.gmra.mrb[0].mxu0 %v3887
    %v3968 = vpop.f32.mrb[0].mxu0
    %v3969 = vadd.f32 0.0, %v3968
    %v3970 = vpop.f32.mrb[0].mxu0
    %3971 = vmatprep.mubr.f32.mxu0 0.0
    %3972 = vmatmul.mubr.f32.gmra.mrb[0].mxu0 %v3890
    %v3973 = vpop.f32.mrb[0].mxu0
    %v3974 = vadd.f32 0.0, %v3973
    %v3975 = vpop.f32.mrb[0].mxu0
    %3976 = vdwg.mxu0
    %v3977 = vadd.f32 %v3703, %v3959
    %v3978 = vadd.f32 %v3704, %v3964
    %v3979 = vadd.f32 %v3705, %v3969
    %v3980 = vadd.f32 %v3706, %v3974
    %v3981 = vlaneseq
    %v3982 = vshrl.u32 %v3981, 7
    %v3983 = vsub.s32 0, %v3982
    %v3984 = vrot.slane %v2006, %v3983
    %v3985 = vadd.f32 %v3977, %v3984
    %v3986 = vadd.f32 %v3978, %v3984
    %v3987 = vadd.f32 %v3979, %v3984
    %v3988 = vadd.f32 %v3980, %v3984
    %v3989 = vld [vmem:[%s1 + $0x39] sm:$0x1]
    %v3990 = vld [vmem:[%s1 + $0x3a] sm:$0x1]
    %v3991 = vsel %vm270, %v3985, 0.0
    %3992 = vadd.xlane.f32.xlu0 %v3991
    %v3993 = vpop.xlane.xlu0 %3992
    %v3994 = vsel %vm270, %v3986, 0.0
    %3995 = vadd.xlane.f32.xlu0 %v3994
    %v3996 = vpop.xlane.xlu0 %3995
    %v3997 = vsel %vm270, %v3987, 0.0
    %3998 = vadd.xlane.f32.xlu0 %v3997
    %v3999 = vpop.xlane.xlu0 %3998
    %v4000 = vsel %vm270, %v3988, 0.0
    %4001 = vadd.xlane.f32.xlu0 %v4000
    %v4002 = vpop.xlane.xlu0 %4001
    %v4003 = vmul.f32 %v3993, %v2033
    %v4004 = vmul.f32 %v3996, %v2033
    %v4005 = vmul.f32 %v3999, %v2033
    %v4006 = vmul.f32 %v4002, %v2033
    %v4007 = vsub.f32 %v3985, %v4003
    %v4008 = vsub.f32 %v3986, %v4004
    %v4009 = vsub.f32 %v3987, %v4005
    %v4010 = vsub.f32 %v3988, %v4006
    %v4011 = vmul.f32 %v4007, %v4007
    %v4012 = vmul.f32 %v4008, %v4008
    %v4013 = vmul.f32 %v4009, %v4009
    %v4014 = vmul.f32 %v4010, %v4010
    %v4015 = vsel %vm270, %v4011, 0.0
    %4016 = vadd.xlane.f32.xlu0 %v4015
    %v4017 = vpop.xlane.xlu0 %4016
    %v4018 = vsel %vm270, %v4012, 0.0
    %4019 = vadd.xlane.f32.xlu0 %v4018
    %v4020 = vpop.xlane.xlu0 %4019
    %v4021 = vsel %vm270, %v4013, 0.0
    %4022 = vadd.xlane.f32.xlu0 %v4021
    %v4023 = vpop.xlane.xlu0 %4022
    %v4024 = vsel %vm270, %v4014, 0.0
    %4025 = vadd.xlane.f32.xlu0 %v4024
    %v4026 = vpop.xlane.xlu0 %4025
    %v4027 = vmul.f32 %v4017, %v2033
    %v4028 = vmul.f32 %v4020, %v2033
    %v4029 = vmul.f32 %v4023, %v2033
    %v4030 = vmul.f32 %v4026, %v2033
    %v4031 = vadd.f32 %v4027, 1e-05
    %v4032 = vadd.f32 %v4028, 1e-05
    %v4033 = vadd.f32 %v4029, 1e-05
    %v4034 = vadd.f32 %v4030, 1e-05
    %v4035 = vrsqrt.pop %v4031
    %v4036 = vrsqrt.pop %v4032
    %v4037 = vrsqrt.pop %v4033
    %v4038 = vrsqrt.pop %v4034
    %v4039 = vmul.f32 %v4007, %v4035
    %v4040 = vmul.f32 %v4008, %v4036
    %v4041 = vmul.f32 %v4009, %v4037
    %v4042 = vmul.f32 %v4010, %v4038
    %v4043 = vlaneseq
    %v4044 = vshrl.u32 %v4043, 7
    %v4045 = vsub.s32 0, %v4044
    %v4046 = vrot.slane %v3989, %v4045
    %v4047 = vmul.f32 %v4039, %v4046
    %v4048 = vmul.f32 %v4040, %v4046
    %v4049 = vmul.f32 %v4041, %v4046
    %v4050 = vmul.f32 %v4042, %v4046
    %v4051 = vlaneseq
    %v4052 = vshrl.u32 %v4051, 7
    %v4053 = vsub.s32 0, %v4052
    %v4054 = vrot.slane %v3990, %v4053
    %v4055 = vadd.f32 %v4047, %v4054
    %v4056 = vadd.f32 %v4048, %v4054
    %v4057 = vadd.f32 %v4049, %v4054
    %v4058 = vadd.f32 %v4050, %v4054
    %v4059 = vld [vmem:[%s2 + $0x1d0] sm:$0xff]
    %v4060 = vld [vmem:[%s2 + $0x1d8] sm:$0xff]
    %v4061 = vld [vmem:[%s2 + $0x1e0] sm:$0xff]
    %v4062 = vld [vmem:[%s2 + $0x1e8] sm:$0xff]
    %v4063 = vld [vmem:[%s2 + $0x1f0] sm:$0xff]
    %v4064 = vld [vmem:[%s2 + $0x1f8] sm:$0xff]
    %v4065 = vld [vmem:[%s2 + $0x200] sm:$0xff]
    %v4066 = vld [vmem:[%s2 + $0x208] sm:$0xff]
    %v4067 = vld [vmem:[%s2 + $0x210] sm:$0xff]
    %v4068 = vld [vmem:[%s2 + $0x218] sm:$0xff]
    %v4069 = vld [vmem:[%s2 + $0x220] sm:$0xff]
    %v4070 = vld [vmem:[%s2 + $0x228] sm:$0xff]
    %v4071 = vld [vmem:[%s2 + $0x230] sm:$0xff]
    %v4072 = vld [vmem:[%s2 + $0x238] sm:$0xff]
    %v4073 = vld [vmem:[%s2 + $0x240] sm:$0xff]
    %v4074 = vld [vmem:[%s2 + $0x248] sm:$0xff]
    %v4075 = vld [vmem:[%s2 + $0x250] sm:$0xff]
    %v4076 = vld [vmem:[%s2 + $0x258] sm:$0xff]
    %v4077 = vld [vmem:[%s2 + $0x260] sm:$0xff]
    %v4078 = vld [vmem:[%s2 + $0x268] sm:$0xff]
    %v4079 = vld [vmem:[%s2 + $0x270] sm:$0xff]
    %v4080 = vld [vmem:[%s2 + $0x278] sm:$0xff]
    %v4081 = vld [vmem:[%s2 + $0x280] sm:$0xff]
    %v4082 = vld [vmem:[%s2 + $0x288] sm:$0xff]
    %v4084 = vsel %vm270, %v4055, 0
    %v4087 = vsel %vm270, %v4056, 0
    %v4090 = vsel %vm270, %v4057, 0
    %v4093 = vsel %vm270, %v4058, 0
    %v4096 = vsel %vm270, %v4059, 0
    %v4099 = vsel %vm270, %v4060, 0
    %v4102 = vsel %vm270, %v4061, 0
    %v4105 = vsel %vm270, %v4062, 0
    %v4108 = vsel %vm270, %v4063, 0
    %v4111 = vsel %vm270, %v4064, 0
    %v4114 = vsel %vm270, %v4065, 0
    %v4117 = vsel %vm270, %v4066, 0
    %v4120 = vsel %vm270, %v4067, 0
    %v4123 = vsel %vm270, %v4068, 0
    %v4126 = vsel %vm270, %v4069, 0
    %v4129 = vsel %vm270, %v4070, 0
    %v4132 = vsel %vm270, %v4071, 0
    %v4135 = vsel %vm270, %v4072, 0
    %v4138 = vsel %vm270, %v4073, 0
    %v4141 = vsel %vm270, %v4074, 0
    %v4144 = vsel %vm270, %v4075, 0
    %v4147 = vsel %vm270, %v4076, 0
    %v4150 = vsel %vm270, %v4077, 0
    %v4153 = vsel %vm270, %v4078, 0
    %v4156 = vsel %vm270, %v4079, 0
    %v4159 = vsel %vm270, %v4080, 0
    %v4162 = vsel %vm270, %v4081, 0
    %v4165 = vsel %vm270, %v4082, 0
    %4167 = vmatprep.subr.mxu0 0.0
    %4168 = vmatpush1.xpose.msra.mxu0 %v4096
    %4169 = vmatprep.subr.mxu0 0.0
    %4170 = vmatpush1.xpose.msra.mxu0 %v4099
    %4171 = vmatprep.subr.mxu0 0.0
    %4172 = vmatpush1.xpose.msra.mxu0 %v4102
    %4173 = vmatprep.subr.mxu0 0.0
    %4174 = vmatpush1.xpose.msra.mxu0 %v4105
    %4175 = vmatprep.subr.mxu0 0.0
    %4176 = vmatpush1.xpose.msra.mxu0 %v4108
    %4177 = vmatprep.subr.mxu0 0.0
    %4178 = vmatpush1.xpose.msra.mxu0 %v4111
    %4179 = vmatprep.subr.mxu0 0.0
    %4180 = vmatpush1.xpose.msra.mxu0 %v4114
    %4181 = vmatprep.subr.mxu0 0.0
    %4182 = vmatpush1.xpose.msra.mxu0 %v4117
    %4183 = vmatprep.subr.mxu0 0.0
    %4184 = vmatpush1.xpose.msra.mxu0 %v4120
    %4185 = vmatprep.subr.mxu0 0.0
    %4186 = vmatpush1.xpose.msra.mxu0 %v4123
    %4187 = vmatprep.subr.mxu0 0.0
    %4188 = vmatpush1.xpose.msra.mxu0 %v4126
    %4189 = vmatprep.subr.mxu0 0.0
    %4190 = vmatpush1.xpose.msra.mxu0 %v4129
    %4191 = vmatprep.subr.mxu0 0.0
    %4192 = vmatpush1.xpose.msra.mxu0 %v4132
    %4193 = vmatprep.subr.mxu0 0.0
    %4194 = vmatpush1.xpose.msra.mxu0 %v4135
    %4195 = vmatprep.subr.mxu0 0.0
    %4196 = vmatpush1.xpose.msra.mxu0 %v4138
    %4197 = vmatprep.subr.mxu0 0.0
    %4198 = vmatpush1.xpose.msra.mxu0 %v4141
    %4199 = vmatprep.subr.mxu0 0.0
    %4200 = vmatpush1.xpose.msra.mxu0 %v4144
    %4201 = vmatprep.subr.mxu0 0.0
    %4202 = vmatpush1.xpose.msra.mxu0 %v4147
    %4203 = vmatprep.subr.mxu0 0.0
    %4204 = vmatpush1.xpose.msra.mxu0 %v4150
    %4205 = vmatprep.subr.mxu0 0.0
    %4206 = vmatpush1.xpose.msra.mxu0 %v4153
    %4207 = vmatprep.subr.mxu0 0.0
    %4208 = vmatpush1.xpose.msra.mxu0 %v4156
    %4209 = vmatprep.subr.mxu0 0.0
    %4210 = vmatpush1.xpose.msra.mxu0 %v4159
    %4211 = vmatprep.subr.mxu0 0.0
    %4212 = vmatpush1.xpose.msra.mxu0 %v4162
    %4213 = vmatprep.subr.mxu0 0.0
    %4214 = vmatpush1.xpose.msra.mxu0 %v4165
    %4215 = vmatprep.subr.mxu0 0.0
    %4216 = vmatpush1.xpose.msra.mxu0 0.0
    %4217 = vmatprep.subr.mxu0 0.0
    %4218 = vmatpush1.xpose.msra.mxu0 0.0
    %4219 = vmatprep.subr.mxu0 0.0
    %4220 = vmatpush1.xpose.msra.mxu0 0.0
    %4221 = vmatprep.subr.mxu0 0.0
    %4222 = vmatpush1.xpose.msra.mxu0 0.0
    %4223 = vmatprep.subr.mxu0 0.0
    %4224 = vmatpush1.xpose.msra.mxu0 0.0
    %4225 = vmatprep.subr.mxu0 0.0
    %4226 = vmatpush1.xpose.msra.mxu0 0.0
    %4227 = vmatprep.subr.mxu0 0.0
    %4228 = vmatpush1.xpose.msra.mxu0 0.0
    %4229 = vmatprep.subr.mxu0 0.0
    %4230 = vmatpush1.xpose.msra.mxu0 0.0
    %4231 = vmatprep.mubr.f32.mxu0 0.0
    %4232 = vmatmul.mubr.f32.gmra.mrb[0].mxu0 %v4084
    %v4233 = vpop.f32.mrb[0].mxu0
    %v4234 = vadd.f32 0.0, %v4233
    %v4235 = vpop.f32.mrb[0].mxu0
    %v4236 = vadd.f32 0.0, %v4235
    %4237 = vmatprep.mubr.f32.mxu0 0.0
    %4238 = vmatmul.mubr.f32.gmra.mrb[0].mxu0 %v4087
    %v4239 = vpop.f32.mrb[0].mxu0
    %v4240 = vadd.f32 0.0, %v4239
    %v4241 = vpop.f32.mrb[0].mxu0
    %v4242 = vadd.f32 0.0, %v4241
    %4243 = vmatprep.mubr.f32.mxu0 0.0
    %4244 = vmatmul.mubr.f32.gmra.mrb[0].mxu0 %v4090
    %v4245 = vpop.f32.mrb[0].mxu0
    %v4246 = vadd.f32 0.0, %v4245
    %v4247 = vpop.f32.mrb[0].mxu0
    %v4248 = vadd.f32 0.0, %v4247
    %4249 = vmatprep.mubr.f32.mxu0 0.0
    %4250 = vmatmul.mubr.f32.gmra.mrb[0].mxu0 %v4093
    %v4251 = vpop.f32.mrb[0].mxu0
    %v4252 = vadd.f32 0.0, %v4251
    %v4253 = vpop.f32.mrb[0].mxu0
    %v4254 = vadd.f32 0.0, %v4253
    %4255 = vdwg.mxu0
    %v4256 = vadd.s32 %v126, 128
    %v4257 = vcvt.s32.f32 %v4256
    %v4258 = vadd.f32 %v4257, 0.5
    %v4259 = vrcp.pop 12.0
    %v4260 = vmul.f32 %v132, %v4259
    %v4261 = vmul.f32 %v4258, %v4259
    %v4262 = vfloor.f32 %v4260
    %v4263 = vfloor.f32 %v4261
    %vm4264 = vcmp.eq.f32.partialorder %v1458, %v4262
    %vm4265 = vcmp.eq.f32.partialorder %v1458, %v4263
    %vm4266 = vcmp.eq.f32.partialorder %v1459, %v4262
    %vm4267 = vcmp.eq.f32.partialorder %v1459, %v4263
    %vm4268 = vcmp.eq.f32.partialorder %v1460, %v4262
    %vm4269 = vcmp.eq.f32.partialorder %v1460, %v4263
    %vm4270 = vcmp.eq.f32.partialorder %v1461, %v4262
    %vm4271 = vcmp.eq.f32.partialorder %v1461, %v4263
    %v4272 = vsel %vm4264, %v4234, 0.0
    %v4273 = vsel %vm4265, %v4236, 0.0
    %v4274 = vsel %vm4266, %v4240, 0.0
    %v4275 = vsel %vm4267, %v4242, 0.0
    %v4276 = vsel %vm4268, %v4246, 0.0
    %v4277 = vsel %vm4269, %v4248, 0.0
    %v4278 = vsel %vm4270, %v4252, 0.0
    %v4279 = vsel %vm4271, %v4254, 0.0
    %v4280 = vmul.f32 %v132, %v1445
    %v4281 = vfloor.f32 %v4280
    %vm4282 = vcmp.eq.f32.partialorder %v4281, %v124
    %v4283 = vsel %vm4282, 1.0, 0.0
    %v4285 = vsel %vm164, %v4283, 0
    %4287 = vmatprep.subr.mxu0 %v4273
    %4288 = vmatpush1.msra.mxu0 %v4272
    %4289 = vmatprep.subr.mxu0 %v4275
    %4290 = vmatpush1.msra.mxu0 %v4274
    %4291 = vmatprep.subr.mxu0 %v4277
    %4292 = vmatpush1.msra.mxu0 %v4276
    %4293 = vmatprep.subr.mxu0 %v4279
    %4294 = vmatpush1.msra.mxu0 %v4278
    %4295 = vmatprep.subr.mxu0 0.0
    %4296 = vmatpush1.msra.mxu0 0.0
    %4297 = vmatprep.subr.mxu0 0.0
    %4298 = vmatpush1.msra.mxu0 0.0
    %4299 = vmatprep.subr.mxu0 0.0
    %4300 = vmatpush1.msra.mxu0 0.0
    %4301 = vmatprep.subr.mxu0 0.0
    %4302 = vmatpush1.msra.mxu0 0.0
    %4303 = vmatprep.subr.mxu0 0.0
    %4304 = vmatpush1.msra.mxu0 0.0
    %4305 = vmatprep.subr.mxu0 0.0
    %4306 = vmatpush1.msra.mxu0 0.0
    %4307 = vmatprep.subr.mxu0 0.0
    %4308 = vmatpush1.msra.mxu0 0.0
    %4309 = vmatprep.subr.mxu0 0.0
    %4310 = vmatpush1.msra.mxu0 0.0
    %4311 = vmatprep.subr.mxu0 0.0
    %4312 = vmatpush1.msra.mxu0 0.0
    %4313 = vmatprep.subr.mxu0 0.0
    %4314 = vmatpush1.msra.mxu0 0.0
    %4315 = vmatprep.subr.mxu0 0.0
    %4316 = vmatpush1.msra.mxu0 0.0
    %4317 = vmatprep.subr.mxu0 0.0
    %4318 = vmatpush1.msra.mxu0 0.0
    %4319 = vmatprep.subr.mxu0 0.0
    %4320 = vmatpush1.msra.mxu0 0.0
    %4321 = vmatprep.subr.mxu0 0.0
    %4322 = vmatpush1.msra.mxu0 0.0
    %4323 = vmatprep.subr.mxu0 0.0
    %4324 = vmatpush1.msra.mxu0 0.0
    %4325 = vmatprep.subr.mxu0 0.0
    %4326 = vmatpush1.msra.mxu0 0.0
    %4327 = vmatprep.subr.mxu0 0.0
    %4328 = vmatpush1.msra.mxu0 0.0
    %4329 = vmatprep.subr.mxu0 0.0
    %4330 = vmatpush1.msra.mxu0 0.0
    %4331 = vmatprep.subr.mxu0 0.0
    %4332 = vmatpush1.msra.mxu0 0.0
    %4333 = vmatprep.subr.mxu0 0.0
    %4334 = vmatpush1.msra.mxu0 0.0
    %4335 = vmatprep.subr.mxu0 0.0
    %4336 = vmatpush1.msra.mxu0 0.0
    %4337 = vmatprep.subr.mxu0 0.0
    %4338 = vmatpush1.msra.mxu0 0.0
    %4339 = vmatprep.subr.mxu0 0.0
    %4340 = vmatpush1.msra.mxu0 0.0
    %4341 = vmatprep.subr.mxu0 0.0
    %4342 = vmatpush1.msra.mxu0 0.0
    %4343 = vmatprep.subr.mxu0 0.0
    %4344 = vmatpush1.msra.mxu0 0.0
    %4345 = vmatprep.subr.mxu0 0.0
    %4346 = vmatpush1.msra.mxu0 0.0
    %4347 = vmatprep.subr.mxu0 0.0
    %4348 = vmatpush1.msra.mxu0 0.0
    %4349 = vmatprep.subr.mxu0 0.0
    %4350 = vmatpush1.msra.mxu0 0.0
    %4351 = vmatprep.mubr.f32.mxu0 0.0
    %4352 = vmatmul.mubr.f32.gmra.mrb[0].mxu0 %v4285
    %v4353 = vpop.f32.mrb[0].mxu0
    %v4354 = vadd.f32 0.0, %v4353
    %v4355 = vpop.f32.mrb[0].mxu0
    %v4356 = vadd.f32 0.0, %v4355
    %4357 = vdwg.mxu0
    %v4358 = vadd.f32 %v4354, 0.0
    %4360 = vrot.lane.b32.xlu0 %v4354, 116
    %v4361 = vpop.permute.xlu0 %4360
    %v4363 = vadd.f32 %v4358, %v4361
    %4364 = vrot.lane.b32.xlu0 %v4354, 104
    %v4365 = vpop.permute.xlu0 %4364
    %v4367 = vadd.f32 %v4363, %v4365
    %4368 = vrot.lane.b32.xlu0 %v4354, 92
    %v4369 = vpop.permute.xlu0 %4368
    %v4371 = vadd.f32 %v4367, %v4369
    %4372 = vrot.lane.b32.xlu0 %v4354, 80
    %v4373 = vpop.permute.xlu0 %4372
    %v4375 = vadd.f32 %v4371, %v4373
    %4376 = vrot.lane.b32.xlu0 %v4354, 68
    %v4377 = vpop.permute.xlu0 %4376
    %v4379 = vadd.f32 %v4375, %v4377
    %4380 = vrot.lane.b32.xlu0 %v4354, 56
    %v4381 = vpop.permute.xlu0 %4380
    %v4383 = vadd.f32 %v4379, %v4381
    %4384 = vrot.lane.b32.xlu0 %v4354, 44
    %v4385 = vpop.permute.xlu0 %4384
    %v4387 = vadd.f32 %v4383, %v4385
    %4388 = vrot.lane.b32.xlu0 %v4354, 32
    %v4389 = vpop.permute.xlu0 %4388
    %v4391 = vadd.f32 %v4387, %v4389
    %4392 = vrot.lane.b32.xlu0 %v4354, 20
    %v4393 = vpop.permute.xlu0 %4392
    %v4395 = vadd.f32 %v4391, %v4393
    %4397 = vrot.lane.b32.xlu0 %v4354, 8
    %v4398 = vpop.permute.xlu0 %4397
    %4399 = vrot.lane.b32.xlu0 %v4356, 8
    %v4400 = vpop.permute.xlu0 %4399
    %v4401 = vsel %vm270, %v4398, %v4400
    %v4403 = vadd.f32 %v4395, %v4401
    %4404 = vrot.lane.b32.xlu0 %v4356, 124
    %v4405 = vpop.permute.xlu0 %4404
    %v4407 = vadd.f32 %v4403, %v4405
    %4408 = vrot.lane.b32.xlu0 %v4356, 112
    %v4409 = vpop.permute.xlu0 %4408
    %v4411 = vadd.f32 %v4407, %v4409
    %4412 = vrot.lane.b32.xlu0 %v4356, 100
    %v4413 = vpop.permute.xlu0 %4412
    %v4415 = vadd.f32 %v4411, %v4413
    %4416 = vrot.lane.b32.xlu0 %v4356, 88
    %v4417 = vpop.permute.xlu0 %4416
    %v4419 = vadd.f32 %v4415, %v4417
    %4420 = vrot.lane.b32.xlu0 %v4356, 76
    %v4421 = vpop.permute.xlu0 %4420
    %v4423 = vadd.f32 %v4419, %v4421
    %v4424 = vld [vmem:[%s1 + $0x3b] sm:$0x1]
    %v4425 = vlaneseq
    %v4426 = vshrl.u32 %v4425, 7
    %v4427 = vsub.s32 0, %v4426
    %v4428 = vrot.slane %v4424, %v4427
    %v4429 = vadd.f32 %v4423, %v4428
    %v4430 = vmul.f32 %v4429, 0.5
    %v4431 = vmul.f32 %v4429, 0.70710677
    %v4432 = verf.f32.pop %v4431
    %v4433 = vadd.f32 %v4432, 1.0
    %v4434 = vmul.f32 %v4430, %v4433
    %v4435 = vld [vmem:[%s2 + $0x290] sm:$0xff]
    %v4436 = vld [vmem:[%s2 + $0x298] sm:$0xf]
    %v4437 = vld [vmem:[%s1 + $0x3c] sm:$0x1]
    %v4438 = vlaneseq
    %v4439 = vshrl.u32 %v4438, 7
    %v4440 = vsub.s32 0, %v4439
    %v4441 = vrot.slane %v4437, %v4440
    %vm4442 = vcmask 97280
    %v4444 = vsel %vm4442, %v4434, 0
    %vm4446 = vcmask 1043456
    %v4448 = vsel %vm4446, %v4436, 0
    %4450 = vmatprep.subr.mxu0 0.0
    %4451 = vmatpush1.msra.mxu0 %v4435
    %4452 = vmatprep.subr.mxu0 0.0
    %4453 = vmatpush1.msra.mxu0 %v4448
    %4454 = vmatprep.subr.mxu0 0.0
    %4455 = vmatpush1.msra.mxu0 0.0
    %4456 = vmatprep.subr.mxu0 0.0
    %4457 = vmatpush1.msra.mxu0 0.0
    %4458 = vmatprep.subr.mxu0 0.0
    %4459 = vmatpush1.msra.mxu0 0.0
    %4460 = vmatprep.subr.mxu0 0.0
    %4461 = vmatpush1.msra.mxu0 0.0
    %4462 = vmatprep.subr.mxu0 0.0
    %4463 = vmatpush1.msra.mxu0 0.0
    %4464 = vmatprep.subr.mxu0 0.0
    %4465 = vmatpush1.msra.mxu0 0.0
    %4466 = vmatprep.subr.mxu0 0.0
    %4467 = vmatpush1.msra.mxu0 0.0
    %4468 = vmatprep.subr.mxu0 0.0
    %4469 = vmatpush1.msra.mxu0 0.0
    %4470 = vmatprep.subr.mxu0 0.0
    %4471 = vmatpush1.msra.mxu0 0.0
    %4472 = vmatprep.subr.mxu0 0.0
    %4473 = vmatpush1.msra.mxu0 0.0
    %4474 = vmatprep.subr.mxu0 0.0
    %4475 = vmatpush1.msra.mxu0 0.0
    %4476 = vmatprep.subr.mxu0 0.0
    %4477 = vmatpush1.msra.mxu0 0.0
    %4478 = vmatprep.subr.mxu0 0.0
    %4479 = vmatpush1.msra.mxu0 0.0
    %4480 = vmatprep.subr.mxu0 0.0
    %4481 = vmatpush1.msra.mxu0 0.0
    %4482 = vmatprep.subr.mxu0 0.0
    %4483 = vmatpush1.msra.mxu0 0.0
    %4484 = vmatprep.subr.mxu0 0.0
    %4485 = vmatpush1.msra.mxu0 0.0
    %4486 = vmatprep.subr.mxu0 0.0
    %4487 = vmatpush1.msra.mxu0 0.0
    %4488 = vmatprep.subr.mxu0 0.0
    %4489 = vmatpush1.msra.mxu0 0.0
    %4490 = vmatprep.subr.mxu0 0.0
    %4491 = vmatpush1.msra.mxu0 0.0
    %4492 = vmatprep.subr.mxu0 0.0
    %4493 = vmatpush1.msra.mxu0 0.0
    %4494 = vmatprep.subr.mxu0 0.0
    %4495 = vmatpush1.msra.mxu0 0.0
    %4496 = vmatprep.subr.mxu0 0.0
    %4497 = vmatpush1.msra.mxu0 0.0
    %4498 = vmatprep.subr.mxu0 0.0
    %4499 = vmatpush1.msra.mxu0 0.0
    %4500 = vmatprep.subr.mxu0 0.0
    %4501 = vmatpush1.msra.mxu0 0.0
    %4502 = vmatprep.subr.mxu0 0.0
    %4503 = vmatpush1.msra.mxu0 0.0
    %4504 = vmatprep.subr.mxu0 0.0
    %4505 = vmatpush1.msra.mxu0 0.0
    %4506 = vmatprep.subr.mxu0 0.0
    %4507 = vmatpush1.msra.mxu0 0.0
    %4508 = vmatprep.subr.mxu0 0.0
    %4509 = vmatpush1.msra.mxu0 0.0
    %4510 = vmatprep.subr.mxu0 0.0
    %4511 = vmatpush1.msra.mxu0 0.0
    %4512 = vmatprep.subr.mxu0 0.0
    %4513 = vmatpush1.msra.mxu0 0.0
    %4514 = vmatprep.mubr.f32.mxu0 0.0
    %4515 = vmatmul.mubr.f32.gmra.mrb[0].mxu0 %v4444
    %v4516 = vpop.f32.mrb[0].mxu0
    %v4517 = vadd.f32 %v4441, %v4516
    %v4518 = vpop.f32.mrb[0].mxu0
    %4519 = vdwg.mxu0
    %vm4520 = vcmask 9216
    %4521 = vst.msk [vmem:[#allocation2] sm:$0x3] %vm4520, %v4517
    // Predicated region
    $region14: #{tsvit_forward.1} parent=1 // pred_check
      _
    $region15: #{tsvit_forward.1} parent=1 // pred_check_branch
      %4523 = sbr.rel (0) target = $region17
    $region16: #{tsvit_forward.1} parent=1 // pred_region
      %s4525 = ssub.s32 32, 32
      %4526 = vsyncadd [#allocation3], %s4525
      %s4528 = sshll.u32 [#allocation2], 4
      %s4529 = int_to_ptr.vmem [resolvable:$true] %s4528
      %4531 = dma.vmem_to_hbm [thread:$0]  %s4529, 32, %s3, [#allocation3]
    $region17: #{tsvit_forward.1} parent=1 // pred_fallthru
      _
    // Predicated region
    $region18: #{tsvit_forward.1} parent=1 // pred_check
      _
    $region19: #{tsvit_forward.1} parent=1 // pred_check_branch
      %4533 = sbr.rel (0) target = $region21
    $region20: #{tsvit_forward.1} parent=1 // pred_region
      %4534 = dma.done [#allocation3], 32
    $region21: #{tsvit_forward.1} parent=1 // pred_fallthru
      _
    %4535 = vsyncpa [#allocation3], 1

</llo_original>
